<compile_context>
chip_gen: v5e
topology: v5e:2x2
jax: 0.10.0
libtpu: 0.0.40
codegen_flags: <defaults>
</compile_context>

<pallas_src>
import functools

import jax
import jax.numpy as jnp
from jax import lax
from jax.experimental import pallas as pl
from jax.experimental.pallas import tpu as pltpu

EPS = 1e-5
LANES = 128


def _round_up(n, m):
    return (n + m - 1) // m * m


# ----------------------------------------------------------------------------
# Kernel: full DEQ forward for one batch element (Picard solver + final f)
# ----------------------------------------------------------------------------
def make_deq_kernel(H, W, C, Ci, num_groups, max_iter, tol):
    Hp, Wp = H + 2, W + 2
    Np = Hp * Wp
    Np_pad = _round_up(Np, LANES)          # lane-dense last dim (384 for 16x16)
    npix = float(H * W)
    gsi = Ci // num_groups
    gso = C // num_groups
    # 3x3 tap offsets in padded-flat pixel coordinates; tap order matches the
    # (cout, 9*cin) weight layout (dy-major, then dx, then cin).
    offs = [(dy - 1) * Wp + (dx - 1) for dy in range(3) for dx in range(3)]

    def conv3x3(a, w, cin):
        # a: (cin, Np_pad), zero at border + padding lanes; w: (cout, 9*cin).
        # Each tap is a static XLU lane rotation; interior pixels never wrap
        # (|offset| <= Wp+1 = 19 <= first interior index), wrapped values only
        # land on border/padding lanes which get re-masked before any conv.
        taps = [a if o == 0
                else pltpu.roll(a, shift=(Np_pad - o) % Np_pad, axis=1)
                for o in offs]
        cols = jnp.concatenate(taps, axis=0)                   # (9*cin, Np_pad)
        return jnp.dot(w, cols, preferred_element_type=jnp.float32)

    def group_norm(a, mask, gamma, beta, A, gsize, remask):
        # Statistics over interior pixels only (mask), per channel group.
        # Fused: a single lane reduction over [a*mask ; a*a*mask] and a single
        # tiny (c,c)x(c,2) group-sum matmul.
        c = a.shape[0]
        am = a * mask
        pair = jnp.concatenate([am, am * a], axis=0)           # (2c, Np_pad)
        sums = jnp.sum(pair, axis=1, keepdims=True)            # (2c, 1)
        s_s2 = jnp.concatenate([sums[:c], sums[c:]], axis=1)   # (c, 2)
        SS = jnp.dot(A, s_s2, preferred_element_type=jnp.float32)  # (c, 2)
        inv_n = 1.0 / (npix * gsize)
        mean = SS[:, 0:1] * inv_n
        var = jnp.maximum(SS[:, 1:2] * inv_n - mean * mean, 0.0)  # clamp cancel.
        scale = gamma * lax.rsqrt(var + EPS)                   # folded affine
        shift = beta - mean * scale
        out = a * scale + shift
        if remask:
            out = out * mask   # keep border/padding exactly zero for next conv
        return out

    def kernel(x_ref, w1_ref, w2_ref, g1_ref, b1_ref, g2_ref, b2_ref,
               g3_ref, b3_ref, Ai_ref, Ao_ref, mask_ref, o_ref, res_ref):
        x = x_ref[0]              # (C, Np_pad), zero-padded-flat
        mask = mask_ref[...]      # (1, Np_pad)
        w1 = w1_ref[...]          # (Ci, 9*C)
        w2 = w2_ref[...]          # (C, 9*Ci)
        g1, b1 = g1_ref[...], b1_ref[...]
        g2, b2 = g2_ref[...], b2_ref[...]
        g3, b3 = g3_ref[...], b3_ref[...]
        Ai, Ao = Ai_ref[...], Ao_ref[...]

        def f(z):
            y = conv3x3(z, w1, C)
            y = jnp.maximum(y, 0.0)
            y = group_norm(y, mask, g1, b1, Ai, gsi, remask=True)     # feeds conv2
            t = x + conv3x3(y, w2, Ci)
            t = group_norm(t, mask, g2, b2, Ao, gso, remask=False)    # no conv next
            r = jnp.maximum(z + t, 0.0)
            return group_norm(r, mask, g3, b3, Ao, gso, remask=True)  # feeds conv1

        def residual(fz, z):
            # ||fz - z|| / (||fz|| + 1e-8) fused into one lane reduction.
            d = fz - z
            pair = jnp.concatenate([d * d, fz * fz], axis=0)   # (2C, Np_pad)
            sums = jnp.sum(pair, axis=1, keepdims=True)        # (2C, 1)
            num = jnp.sqrt(jnp.sum(sums[:C]))
            den = jnp.sqrt(jnp.sum(sums[C:])) + 1e-8
            return num / den

        def cond(carry):
            i, _, res = carry
            return jnp.logical_and(i < max_iter, res > tol)

        def body(carry):
            # Two Picard steps per residual / loop-condition check.
            i, z, _ = carry
            z1 = f(z)
            z2 = f(z1)
            return i + 2, z2, residual(z2, z1)

        z0 = jnp.zeros((C, Np_pad), jnp.float32)
        _, z_star, res = lax.while_loop(
            cond, body, (jnp.int32(0), z0, jnp.float32(jnp.inf)))

        o_ref[0] = f(z_star)               # final (differentiable) f(z*, x)
        res_ref[0] = jnp.broadcast_to(res, (1, LANES))   # lane-dense scalar store

    return kernel


# ----------------------------------------------------------------------------
# pallas_call builder and host-side layout helpers
# ----------------------------------------------------------------------------
def build_deq_call(B, H, W, C, Ci, num_groups, max_iter, tol):
    Np_pad = _round_up((H + 2) * (W + 2), LANES)
    kernel = make_deq_kernel(H, W, C, Ci, num_groups, max_iter, tol)

    per_sample = lambda b: (b, 0, 0)
    full2 = lambda b: (0, 0)

    return pl.pallas_call(
        kernel,
        out_shape=(jax.ShapeDtypeStruct((B, C, Np_pad), jnp.float32),
                   jax.ShapeDtypeStruct((B, 1, LANES), jnp.float32)),
        grid_spec=pltpu.PrefetchScalarGridSpec(
            num_scalar_prefetch=0,
            grid=(B,),
            in_specs=[
                pl.BlockSpec((1, C, Np_pad), per_sample),   # x (padded flat, ch-first)
                pl.BlockSpec((Ci, 9 * C), full2),           # conv1 weights (cout, 9*cin)
                pl.BlockSpec((C, 9 * Ci), full2),           # conv2 weights
                pl.BlockSpec((Ci, 1), full2),               # norm1 gamma
                pl.BlockSpec((Ci, 1), full2),               # norm1 beta
                pl.BlockSpec((C, 1), full2),                # norm2 gamma
                pl.BlockSpec((C, 1), full2),                # norm2 beta
                pl.BlockSpec((C, 1), full2),                # norm3 gamma
                pl.BlockSpec((C, 1), full2),                # norm3 beta
                pl.BlockSpec((Ci, Ci), full2),              # group-sum matrix (inner)
                pl.BlockSpec((C, C), full2),                # group-sum matrix (outer)
                pl.BlockSpec((1, Np_pad), full2),           # interior mask
            ],
            out_specs=(pl.BlockSpec((1, C, Np_pad), per_sample),
                       pl.BlockSpec((1, 1, LANES), per_sample)),
        ),
        compiler_params=pltpu.CompilerParams(
            dimension_semantics=("parallel",)),
    )


def to_flat(x_nchw):
    B, C, H, W = x_nchw.shape
    Np = (H + 2) * (W + 2)
    Np_pad = _round_up(Np, LANES)
    xp = jnp.pad(x_nchw, ((0, 0), (0, 0), (1, 1), (1, 1))).reshape(B, C, Np)
    return jnp.pad(xp, ((0, 0), (0, 0), (0, Np_pad - Np)))


def from_flat(z_flat, H, W):
    B, C, _ = z_flat.shape
    Np = (H + 2) * (W + 2)
    return z_flat[:, :, :Np].reshape(B, C, H + 2, W + 2)[:, :, 1:-1, 1:-1]


def deq_forward(x_nchw, deq_call, params_packed, H, W):
    x_flat = to_flat(x_nchw)
    z_flat, res = deq_call(x_flat, *params_packed)
    # TODO(synk): forward-only kernel; the original module's backward (stop_grad
    # on z* + one differentiable f, or the implicit-function hook) is not wired up.
    return from_flat(z_flat, H, W), res[:, 0, 0]


def group_matrix(channels, num_groups):
    gs = channels // num_groups
    g = jnp.arange(channels) // gs
    return (g[:, None] == g[None, :]).astype(jnp.float32)


def interior_mask(H, W):
    Hp, Wp = H + 2, W + 2
    Np = Hp * Wp
    Np_pad = _round_up(Np, LANES)
    m = jnp.zeros((Hp, Wp), jnp.float32).at[1:-1, 1:-1].set(1.0).reshape(1, Np)
    return jnp.pad(m, ((0, 0), (0, Np_pad - Np)))


# ----------------------------------------------------------------------------
# Pure-JAX reference (per-sample solver, same arithmetic) for sanity checking
# ----------------------------------------------------------------------------
def f_reference(z_nhwc, x_nhwc, params, num_groups):
    W1, W2, g1, b1, g2, b2, g3, b3 = params
    Ci, C = W1.shape[0], W2.shape[0]
    w1h = W1.reshape(Ci, 3, 3, C).transpose(1, 2, 3, 0)   # HWIO
    w2h = W2.reshape(C, 3, 3, Ci).transpose(1, 2, 3, 0)

    def conv(a, w):
        dn = lax.conv_dimension_numbers(a.shape, w.shape, ("NHWC", "HWIO", "NHWC"))
        return lax.conv_general_dilated(a, w, (1, 1), "SAME", dimension_numbers=dn)

    def gn(a, gamma, beta):
        Bb, Hh, Ww, Cc = a.shape
        gs = Cc // num_groups
        ar = a.reshape(Bb, Hh, Ww, num_groups, gs)
        mean = ar.mean(axis=(1, 2, 4), keepdims=True)
        var = ar.var(axis=(1, 2, 4), keepdims=True)
        ar = (ar - mean) / jnp.sqrt(var + EPS)
        a = ar.reshape(Bb, Hh, Ww, Cc)
        return a * gamma.reshape(1, 1, 1, Cc) + beta.reshape(1, 1, 1, Cc)

    y = gn(jnp.maximum(conv(z_nhwc, w1h), 0.0), g1[:, 0], b1[:, 0])
    t = gn(x_nhwc + conv(y, w2h), g2[:, 0], b2[:, 0])
    return gn(jnp.maximum(z_nhwc + t, 0.0), g3[:, 0], b3[:, 0])


def deq_reference(x_nchw, params, num_groups, max_iter, tol):
    outs, ress = [], []
    for b in range(x_nchw.shape[0]):
        xb = jnp.transpose(x_nchw[b:b + 1], (0, 2, 3, 1))      # (1,H,W,C)

        def f(z):
            return f_reference(z, xb, params, num_groups)

        def resid(fz, z):
            return jnp.sqrt(jnp.sum((fz - z) ** 2)) / (jnp.sqrt(jnp.sum(fz ** 2)) + 1e-8)

        def cond(c):
            i, _, r = c
            return jnp.logical_and(i < max_iter, r > tol)

        def body(c):
            i, z, _ = c
            fz = f(z)
            return i + 1, fz, resid(fz, z)

        _, z_star, r = lax.while_loop(
            cond, body, (jnp.int32(0), jnp.zeros_like(xb), jnp.float32(jnp.inf)))
        outs.append(jnp.transpose(f(z_star), (0, 3, 1, 2)))
        ress.append(r)
    return jnp.concatenate(outs, axis=0), jnp.stack(ress)


# ----------------------------------------------------------------------------
if __name__ == "__main__":
    B, C, H, W = 2, 8, 16, 16      # input x: NCHW (B even -> both v7x TCs busy)
    Ci = 16                        # inner channels of the ResNetLayer f
    NUM_GROUPS = 4
    MAX_ITER, TOL = 25, 1e-4

    key = jax.random.PRNGKey(0)
    k1, k2, k3, k4, k5, kx = jax.random.split(key, 6)

    W1 = 0.1 * jax.random.normal(k1, (Ci, 9 * C), jnp.float32)   # conv1: C -> Ci
    W2 = 0.1 * jax.random.normal(k2, (C, 9 * Ci), jnp.float32)   # conv2: Ci -> C
    g1 = jnp.ones((Ci, 1), jnp.float32)
    b1 = jnp.zeros((Ci, 1), jnp.float32)
    g2 = jnp.ones((C, 1), jnp.float32) + 0.05 * jax.random.normal(k3, (C, 1), jnp.float32)
    b2 = 0.01 * jax.random.normal(k4, (C, 1), jnp.float32)
    g3 = jnp.ones((C, 1), jnp.float32) + 0.05 * jax.random.normal(k5, (C, 1), jnp.float32)
    b3 = jnp.zeros((C, 1), jnp.float32)
    params = (W1, W2, g1, b1, g2, b2, g3, b3)

    packed = params + (group_matrix(Ci, NUM_GROUPS),
                       group_matrix(C, NUM_GROUPS),
                       interior_mask(H, W))

    x = jax.random.normal(kx, (B, C, H, W), jnp.float32)

    # --- correctness check with a deterministic trip count -------------------
    # tol=-1 forces exactly max_iter=2 Picard iterations (one double-step in
    # the kernel, two single steps in the reference) followed by the final f.
    call2 = build_deq_call(B, H, W, C, Ci, NUM_GROUPS, max_iter=2, tol=-1.0)
    run2 = jax.jit(functools.partial(deq_forward, deq_call=call2,
                                     params_packed=packed, H=H, W=W))
    out2, _ = run2(x)
    ref2, _ = deq_reference(x, params, NUM_GROUPS, max_iter=2, tol=-1.0)
    max_err = float(jnp.max(jnp.abs(out2 - ref2)))
    assert jnp.allclose(out2, ref2, rtol=2e-2, atol=2e-2), max_err

    # --- full DEQ forward pass (Picard solver fully inside the kernel) -------
    call = build_deq_call(B, H, W, C, Ci, NUM_GROUPS, MAX_ITER, TOL)
    run = jax.jit(functools.partial(deq_forward, deq_call=call,
                                    params_packed=packed, H=H, W=W))
    z_out, forward_res = run(x)
    z_out = jax.block_until_ready(z_out)

    assert z_out.shape == (B, C, H, W)
    assert bool(jnp.all(jnp.isfinite(z_out)))
    assert bool(jnp.all(jnp.isfinite(forward_res)))
    print("KERNEL_OK")
</pallas_src>

<mosaic_0001>
module attributes {stable_mosaic.version = 11 : i64} {
  func.func @kernel(%arg0: i32, %arg1: memref<1x8x384xf32, #tpu.memory_space<vmem>>, %arg2: memref<16x72xf32, #tpu.memory_space<vmem>>, %arg3: memref<8x144xf32, #tpu.memory_space<vmem>>, %arg4: memref<16x1xf32, #tpu.memory_space<vmem>>, %arg5: memref<16x1xf32, #tpu.memory_space<vmem>>, %arg6: memref<8x1xf32, #tpu.memory_space<vmem>>, %arg7: memref<8x1xf32, #tpu.memory_space<vmem>>, %arg8: memref<8x1xf32, #tpu.memory_space<vmem>>, %arg9: memref<8x1xf32, #tpu.memory_space<vmem>>, %arg10: memref<16x16xf32, #tpu.memory_space<vmem>>, %arg11: memref<8x8xf32, #tpu.memory_space<vmem>>, %arg12: memref<1x384xf32, #tpu.memory_space<vmem>>, %arg13: memref<1x8x384xf32, #tpu.memory_space<vmem>>, %arg14: memref<1x1x128xf32, #tpu.memory_space<vmem>>) attributes {dimension_semantics = [#tpu.dimension_semantics<parallel>], iteration_bounds = array<i64: 2>, scalar_prefetch = 0 : i64, scratch_operands = 0 : i64, tpu.core_type = #tpu.core_type<tc>, window_params = [{transform_indices = @transform_0, window_bounds = array<i64: 1, 8, 384>}, {pipeline_mode = #tpu.pipeline_mode<synchronous>, transform_indices = @transform_1, window_bounds = array<i64: 16, 72>}, {pipeline_mode = #tpu.pipeline_mode<synchronous>, transform_indices = @transform_2, window_bounds = array<i64: 8, 144>}, {pipeline_mode = #tpu.pipeline_mode<synchronous>, transform_indices = @transform_3, window_bounds = array<i64: 16, 1>}, {pipeline_mode = #tpu.pipeline_mode<synchronous>, transform_indices = @transform_4, window_bounds = array<i64: 16, 1>}, {pipeline_mode = #tpu.pipeline_mode<synchronous>, transform_indices = @transform_5, window_bounds = array<i64: 8, 1>}, {pipeline_mode = #tpu.pipeline_mode<synchronous>, transform_indices = @transform_6, window_bounds = array<i64: 8, 1>}, {pipeline_mode = #tpu.pipeline_mode<synchronous>, transform_indices = @transform_7, window_bounds = array<i64: 8, 1>}, {pipeline_mode = #tpu.pipeline_mode<synchronous>, transform_indices = @transform_8, window_bounds = array<i64: 8, 1>}, {pipeline_mode = #tpu.pipeline_mode<synchronous>, transform_indices = @transform_9, window_bounds = array<i64: 16, 16>}, {pipeline_mode = #tpu.pipeline_mode<synchronous>, transform_indices = @transform_10, window_bounds = array<i64: 8, 8>}, {pipeline_mode = #tpu.pipeline_mode<synchronous>, transform_indices = @transform_11, window_bounds = array<i64: 1, 384>}, {transform_indices = @transform_12, window_bounds = array<i64: 1, 8, 384>}, {transform_indices = @transform_13, window_bounds = array<i64: 1, 1, 128>}]} {
    %c0 = arith.constant 0 : index
    %c0_0 = arith.constant 0 : index
    %c0_1 = arith.constant 0 : index
    %0 = vector.load %arg1[%c0, %c0_0, %c0_1] : memref<1x8x384xf32, #tpu.memory_space<vmem>>, vector<1x8x384xf32>
    %1 = vector.shape_cast %0 : vector<1x8x384xf32> to vector<8x384xf32>
    %c0_2 = arith.constant 0 : index
    %c0_3 = arith.constant 0 : index
    %2 = vector.load %arg12[%c0_2, %c0_3] : memref<1x384xf32, #tpu.memory_space<vmem>>, vector<1x384xf32>
    %c0_4 = arith.constant 0 : index
    %c0_5 = arith.constant 0 : index
    %3 = vector.load %arg2[%c0_4, %c0_5] : memref<16x72xf32, #tpu.memory_space<vmem>>, vector<16x72xf32>
    %c0_6 = arith.constant 0 : index
    %c0_7 = arith.constant 0 : index
    %4 = vector.load %arg3[%c0_6, %c0_7] : memref<8x144xf32, #tpu.memory_space<vmem>>, vector<8x144xf32>
    %c0_8 = arith.constant 0 : index
    %c0_9 = arith.constant 0 : index
    %5 = vector.load %arg4[%c0_8, %c0_9] : memref<16x1xf32, #tpu.memory_space<vmem>>, vector<16x1xf32>
    %c0_10 = arith.constant 0 : index
    %c0_11 = arith.constant 0 : index
    %6 = vector.load %arg5[%c0_10, %c0_11] : memref<16x1xf32, #tpu.memory_space<vmem>>, vector<16x1xf32>
    %c0_12 = arith.constant 0 : index
    %c0_13 = arith.constant 0 : index
    %7 = vector.load %arg6[%c0_12, %c0_13] : memref<8x1xf32, #tpu.memory_space<vmem>>, vector<8x1xf32>
    %c0_14 = arith.constant 0 : index
    %c0_15 = arith.constant 0 : index
    %8 = vector.load %arg7[%c0_14, %c0_15] : memref<8x1xf32, #tpu.memory_space<vmem>>, vector<8x1xf32>
    %c0_16 = arith.constant 0 : index
    %c0_17 = arith.constant 0 : index
    %9 = vector.load %arg8[%c0_16, %c0_17] : memref<8x1xf32, #tpu.memory_space<vmem>>, vector<8x1xf32>
    %c0_18 = arith.constant 0 : index
    %c0_19 = arith.constant 0 : index
    %10 = vector.load %arg9[%c0_18, %c0_19] : memref<8x1xf32, #tpu.memory_space<vmem>>, vector<8x1xf32>
    %c0_20 = arith.constant 0 : index
    %c0_21 = arith.constant 0 : index
    %11 = vector.load %arg10[%c0_20, %c0_21] : memref<16x16xf32, #tpu.memory_space<vmem>>, vector<16x16xf32>
    %c0_22 = arith.constant 0 : index
    %c0_23 = arith.constant 0 : index
    %12 = vector.load %arg11[%c0_22, %c0_23] : memref<8x8xf32, #tpu.memory_space<vmem>>, vector<8x8xf32>
    %cst = arith.constant 0.000000e+00 : f32
    %13 = vector.broadcast %cst : f32 to vector<8x384xf32>
    %c0_i32 = arith.constant 0 : i32
    %cst_24 = arith.constant 0x7F800000 : f32
    %14:3 = scf.while (%arg15 = %c0_i32, %arg16 = %13, %arg17 = %cst_24) : (i32, vector<8x384xf32>, f32) -> (i32, vector<8x384xf32>, f32) {
      %c2_i32 = arith.constant 2 : i32
      %142 = arith.cmpi slt, %arg15, %c2_i32 : i32
      %cst_61 = arith.constant -1.000000e+00 : f32
      %143 = arith.cmpf ogt, %arg17, %cst_61 : f32
      %144 = arith.andi %142, %143 : i1
      scf.condition(%144) %arg15, %arg16, %arg17 : i32, vector<8x384xf32>, f32
    } do {
    ^bb0(%arg15: i32, %arg16: vector<8x384xf32>, %arg17: f32):
      %c19_i32_61 = arith.constant 19 : i32
      %142 = tpu.dynamic_rotate %arg16 by %c19_i32_61 dim 1 : vector<8x384xf32>, i32 -> vector<8x384xf32>
      %c18_i32_62 = arith.constant 18 : i32
      %143 = tpu.dynamic_rotate %arg16 by %c18_i32_62 dim 1 : vector<8x384xf32>, i32 -> vector<8x384xf32>
      %c17_i32_63 = arith.constant 17 : i32
      %144 = tpu.dynamic_rotate %arg16 by %c17_i32_63 dim 1 : vector<8x384xf32>, i32 -> vector<8x384xf32>
      %c1_i32_64 = arith.constant 1 : i32
      %145 = tpu.dynamic_rotate %arg16 by %c1_i32_64 dim 1 : vector<8x384xf32>, i32 -> vector<8x384xf32>
      %c383_i32_65 = arith.constant 383 : i32
      %146 = tpu.dynamic_rotate %arg16 by %c383_i32_65 dim 1 : vector<8x384xf32>, i32 -> vector<8x384xf32>
      %c367_i32_66 = arith.constant 367 : i32
      %147 = tpu.dynamic_rotate %arg16 by %c367_i32_66 dim 1 : vector<8x384xf32>, i32 -> vector<8x384xf32>
      %c366_i32_67 = arith.constant 366 : i32
      %148 = tpu.dynamic_rotate %arg16 by %c366_i32_67 dim 1 : vector<8x384xf32>, i32 -> vector<8x384xf32>
      %c365_i32_68 = arith.constant 365 : i32
      %149 = tpu.dynamic_rotate %arg16 by %c365_i32_68 dim 1 : vector<8x384xf32>, i32 -> vector<8x384xf32>
      %150 = tpu.concatenate %142, %143, %144, %145, %arg16, %146, %147, %148, %149 in 0 : vector<8x384xf32>, vector<8x384xf32>, vector<8x384xf32>, vector<8x384xf32>, vector<8x384xf32>, vector<8x384xf32>, vector<8x384xf32>, vector<8x384xf32>, vector<8x384xf32> -> vector<72x384xf32>
      %cst_69 = arith.constant dense<0.000000e+00> : vector<16x384xf32>
      %151 = tpu.matmul %3, %150, %cst_69 {dimension_numbers = #tpu.dot_dimension_numbers<[1], [0], [0], [1], [0, 0, 1, 1], [], []>} : vector<16x72xf32>, vector<72x384xf32>, vector<16x384xf32> -> vector<16x384xf32>
      %cst_70 = arith.constant 0.000000e+00 : f32
      %152 = vector.broadcast %cst_70 : f32 to vector<16x384xf32>
      %153 = arith.maximumf %151, %152 : vector<16x384xf32>
      %154 = vector.broadcast %2 : vector<1x384xf32> to vector<16x384xf32>
      %155 = arith.mulf %153, %154 : vector<16x384xf32>
      %156 = arith.mulf %155, %153 : vector<16x384xf32>
      %157 = tpu.concatenate %155, %156 in 0 : vector<16x384xf32>, vector<16x384xf32> -> vector<32x384xf32>
      %cst_71 = arith.constant dense<0.000000e+00> : vector<32xf32>
      %158 = vector.multi_reduction <add>, %157, %cst_71 [1] : vector<32x384xf32> to vector<32xf32>
      %159 = vector.shape_cast %158 : vector<32xf32> to vector<32x1xf32>
      %160 = vector.extract_strided_slice %159 {offsets = [0, 0], sizes = [16, 1], strides = [1, 1]} : vector<32x1xf32> to vector<16x1xf32>
      %161 = vector.extract_strided_slice %159 {offsets = [16, 0], sizes = [16, 1], strides = [1, 1]} : vector<32x1xf32> to vector<16x1xf32>
      %162 = tpu.concatenate %160, %161 in 1 : vector<16x1xf32>, vector<16x1xf32> -> vector<16x2xf32>
      %cst_72 = arith.constant dense<0.000000e+00> : vector<16x2xf32>
      %163 = tpu.matmul %11, %162, %cst_72 {dimension_numbers = #tpu.dot_dimension_numbers<[1], [0], [0], [1], [0, 0, 1, 1], [], []>} : vector<16x16xf32>, vector<16x2xf32>, vector<16x2xf32> -> vector<16x2xf32>
      %164 = vector.extract_strided_slice %163 {offsets = [0, 0], sizes = [16, 1], strides = [1, 1]} : vector<16x2xf32> to vector<16x1xf32>
      %cst_73 = arith.constant 9.765625E-4 : f32
      %165 = vector.broadcast %cst_73 : f32 to vector<16x1xf32>
      %166 = arith.mulf %164, %165 : vector<16x1xf32>
      %167 = vector.extract_strided_slice %163 {offsets = [0, 1], sizes = [16, 1], strides = [1, 1]} : vector<16x2xf32> to vector<16x1xf32>
      %cst_74 = arith.constant 9.765625E-4 : f32
      %168 = vector.broadcast %cst_74 : f32 to vector<16x1xf32>
      %169 = arith.mulf %167, %168 : vector<16x1xf32>
      %170 = arith.mulf %166, %166 : vector<16x1xf32>
      %171 = arith.subf %169, %170 : vector<16x1xf32>
      %cst_75 = arith.constant 0.000000e+00 : f32
      %172 = vector.broadcast %cst_75 : f32 to vector<16x1xf32>
      %173 = arith.maximumf %171, %172 : vector<16x1xf32>
      %cst_76 = arith.constant 9.99999974E-6 : f32
      %174 = vector.broadcast %cst_76 : f32 to vector<16x1xf32>
      %175 = arith.addf %173, %174 : vector<16x1xf32>
      %176 = math.rsqrt %175 : vector<16x1xf32>
      %177 = arith.mulf %5, %176 : vector<16x1xf32>
      %178 = arith.mulf %166, %177 : vector<16x1xf32>
      %179 = arith.subf %6, %178 : vector<16x1xf32>
      %180 = vector.broadcast %177 : vector<16x1xf32> to vector<16x384xf32>
      %181 = arith.mulf %153, %180 : vector<16x384xf32>
      %182 = vector.broadcast %179 : vector<16x1xf32> to vector<16x384xf32>
      %183 = arith.addf %181, %182 : vector<16x384xf32>
      %184 = vector.broadcast %2 : vector<1x384xf32> to vector<16x384xf32>
      %185 = arith.mulf %183, %184 : vector<16x384xf32>
      %c19_i32_77 = arith.constant 19 : i32
      %186 = tpu.dynamic_rotate %185 by %c19_i32_77 dim 1 : vector<16x384xf32>, i32 -> vector<16x384xf32>
      %c18_i32_78 = arith.constant 18 : i32
      %187 = tpu.dynamic_rotate %185 by %c18_i32_78 dim 1 : vector<16x384xf32>, i32 -> vector<16x384xf32>
      %c17_i32_79 = arith.constant 17 : i32
      %188 = tpu.dynamic_rotate %185 by %c17_i32_79 dim 1 : vector<16x384xf32>, i32 -> vector<16x384xf32>
      %c1_i32_80 = arith.constant 1 : i32
      %189 = tpu.dynamic_rotate %185 by %c1_i32_80 dim 1 : vector<16x384xf32>, i32 -> vector<16x384xf32>
      %c383_i32_81 = arith.constant 383 : i32
      %190 = tpu.dynamic_rotate %185 by %c383_i32_81 dim 1 : vector<16x384xf32>, i32 -> vector<16x384xf32>
      %c367_i32_82 = arith.constant 367 : i32
      %191 = tpu.dynamic_rotate %185 by %c367_i32_82 dim 1 : vector<16x384xf32>, i32 -> vector<16x384xf32>
      %c366_i32_83 = arith.constant 366 : i32
      %192 = tpu.dynamic_rotate %185 by %c366_i32_83 dim 1 : vector<16x384xf32>, i32 -> vector<16x384xf32>
      %c365_i32_84 = arith.constant 365 : i32
      %193 = tpu.dynamic_rotate %185 by %c365_i32_84 dim 1 : vector<16x384xf32>, i32 -> vector<16x384xf32>
      %194 = tpu.concatenate %186, %187, %188, %189, %185, %190, %191, %192, %193 in 0 : vector<16x384xf32>, vector<16x384xf32>, vector<16x384xf32>, vector<16x384xf32>, vector<16x384xf32>, vector<16x384xf32>, vector<16x384xf32>, vector<16x384xf32>, vector<16x384xf32> -> vector<144x384xf32>
      %cst_85 = arith.constant dense<0.000000e+00> : vector<8x384xf32>
      %195 = tpu.matmul %4, %194, %cst_85 {dimension_numbers = #tpu.dot_dimension_numbers<[1], [0], [0], [1], [0, 0, 1, 1], [], []>} : vector<8x144xf32>, vector<144x384xf32>, vector<8x384xf32> -> vector<8x384xf32>
      %196 = arith.addf %1, %195 : vector<8x384xf32>
      %197 = vector.broadcast %2 : vector<1x384xf32> to vector<8x384xf32>
      %198 = arith.mulf %196, %197 : vector<8x384xf32>
      %199 = arith.mulf %198, %196 : vector<8x384xf32>
      %200 = tpu.concatenate %198, %199 in 0 : vector<8x384xf32>, vector<8x384xf32> -> vector<16x384xf32>
      %cst_86 = arith.constant dense<0.000000e+00> : vector<16xf32>
      %201 = vector.multi_reduction <add>, %200, %cst_86 [1] : vector<16x384xf32> to vector<16xf32>
      %202 = vector.shape_cast %201 : vector<16xf32> to vector<16x1xf32>
      %203 = vector.extract_strided_slice %202 {offsets = [0, 0], sizes = [8, 1], strides = [1, 1]} : vector<16x1xf32> to vector<8x1xf32>
      %204 = vector.extract_strided_slice %202 {offsets = [8, 0], sizes = [8, 1], strides = [1, 1]} : vector<16x1xf32> to vector<8x1xf32>
      %205 = tpu.concatenate %203, %204 in 1 : vector<8x1xf32>, vector<8x1xf32> -> vector<8x2xf32>
      %cst_87 = arith.constant dense<0.000000e+00> : vector<8x2xf32>
      %206 = tpu.matmul %12, %205, %cst_87 {dimension_numbers = #tpu.dot_dimension_numbers<[1], [0], [0], [1], [0, 0, 1, 1], [], []>} : vector<8x8xf32>, vector<8x2xf32>, vector<8x2xf32> -> vector<8x2xf32>
      %207 = vector.extract_strided_slice %206 {offsets = [0, 0], sizes = [8, 1], strides = [1, 1]} : vector<8x2xf32> to vector<8x1xf32>
      %cst_88 = arith.constant 0.001953125 : f32
      %208 = vector.broadcast %cst_88 : f32 to vector<8x1xf32>
      %209 = arith.mulf %207, %208 : vector<8x1xf32>
      %210 = vector.extract_strided_slice %206 {offsets = [0, 1], sizes = [8, 1], strides = [1, 1]} : vector<8x2xf32> to vector<8x1xf32>
      %cst_89 = arith.constant 0.001953125 : f32
      %211 = vector.broadcast %cst_89 : f32 to vector<8x1xf32>
      %212 = arith.mulf %210, %211 : vector<8x1xf32>
      %213 = arith.mulf %209, %209 : vector<8x1xf32>
      %214 = arith.subf %212, %213 : vector<8x1xf32>
      %cst_90 = arith.constant 0.000000e+00 : f32
      %215 = vector.broadcast %cst_90 : f32 to vector<8x1xf32>
      %216 = arith.maximumf %214, %215 : vector<8x1xf32>
      %cst_91 = arith.constant 9.99999974E-6 : f32
      %217 = vector.broadcast %cst_91 : f32 to vector<8x1xf32>
      %218 = arith.addf %216, %217 : vector<8x1xf32>
      %219 = math.rsqrt %218 : vector<8x1xf32>
      %220 = arith.mulf %7, %219 : vector<8x1xf32>
      %221 = arith.mulf %209, %220 : vector<8x1xf32>
      %222 = arith.subf %8, %221 : vector<8x1xf32>
      %223 = vector.broadcast %220 : vector<8x1xf32> to vector<8x384xf32>
      %224 = arith.mulf %196, %223 : vector<8x384xf32>
      %225 = vector.broadcast %222 : vector<8x1xf32> to vector<8x384xf32>
      %226 = arith.addf %224, %225 : vector<8x384xf32>
      %227 = arith.addf %arg16, %226 : vector<8x384xf32>
      %cst_92 = arith.constant 0.000000e+00 : f32
      %228 = vector.broadcast %cst_92 : f32 to vector<8x384xf32>
      %229 = arith.maximumf %227, %228 : vector<8x384xf32>
      %230 = vector.broadcast %2 : vector<1x384xf32> to vector<8x384xf32>
      %231 = arith.mulf %229, %230 : vector<8x384xf32>
      %232 = arith.mulf %231, %229 : vector<8x384xf32>
      %233 = tpu.concatenate %231, %232 in 0 : vector<8x384xf32>, vector<8x384xf32> -> vector<16x384xf32>
      %cst_93 = arith.constant dense<0.000000e+00> : vector<16xf32>
      %234 = vector.multi_reduction <add>, %233, %cst_93 [1] : vector<16x384xf32> to vector<16xf32>
      %235 = vector.shape_cast %234 : vector<16xf32> to vector<16x1xf32>
      %236 = vector.extract_strided_slice %235 {offsets = [0, 0], sizes = [8, 1], strides = [1, 1]} : vector<16x1xf32> to vector<8x1xf32>
      %237 = vector.extract_strided_slice %235 {offsets = [8, 0], sizes = [8, 1], strides = [1, 1]} : vector<16x1xf32> to vector<8x1xf32>
      %238 = tpu.concatenate %236, %237 in 1 : vector<8x1xf32>, vector<8x1xf32> -> vector<8x2xf32>
      %cst_94 = arith.constant dense<0.000000e+00> : vector<8x2xf32>
      %239 = tpu.matmul %12, %238, %cst_94 {dimension_numbers = #tpu.dot_dimension_numbers<[1], [0], [0], [1], [0, 0, 1, 1], [], []>} : vector<8x8xf32>, vector<8x2xf32>, vector<8x2xf32> -> vector<8x2xf32>
      %240 = vector.extract_strided_slice %239 {offsets = [0, 0], sizes = [8, 1], strides = [1, 1]} : vector<8x2xf32> to vector<8x1xf32>
      %cst_95 = arith.constant 0.001953125 : f32
      %241 = vector.broadcast %cst_95 : f32 to vector<8x1xf32>
      %242 = arith.mulf %240, %241 : vector<8x1xf32>
      %243 = vector.extract_strided_slice %239 {offsets = [0, 1], sizes = [8, 1], strides = [1, 1]} : vector<8x2xf32> to vector<8x1xf32>
      %cst_96 = arith.constant 0.001953125 : f32
      %244 = vector.broadcast %cst_96 : f32 to vector<8x1xf32>
      %245 = arith.mulf %243, %244 : vector<8x1xf32>
      %246 = arith.mulf %242, %242 : vector<8x1xf32>
      %247 = arith.subf %245, %246 : vector<8x1xf32>
      %cst_97 = arith.constant 0.000000e+00 : f32
      %248 = vector.broadcast %cst_97 : f32 to vector<8x1xf32>
      %249 = arith.maximumf %247, %248 : vector<8x1xf32>
      %cst_98 = arith.constant 9.99999974E-6 : f32
      %250 = vector.broadcast %cst_98 : f32 to vector<8x1xf32>
      %251 = arith.addf %249, %250 : vector<8x1xf32>
      %252 = math.rsqrt %251 : vector<8x1xf32>
      %253 = arith.mulf %9, %252 : vector<8x1xf32>
      %254 = arith.mulf %242, %253 : vector<8x1xf32>
      %255 = arith.subf %10, %254 : vector<8x1xf32>
      %256 = vector.broadcast %253 : vector<8x1xf32> to vector<8x384xf32>
      %257 = arith.mulf %229, %256 : vector<8x384xf32>
      %258 = vector.broadcast %255 : vector<8x1xf32> to vector<8x384xf32>
      %259 = arith.addf %257, %258 : vector<8x384xf32>
      %260 = vector.broadcast %2 : vector<1x384xf32> to vector<8x384xf32>
      %261 = arith.mulf %259, %260 : vector<8x384xf32>
      %c19_i32_99 = arith.constant 19 : i32
      %262 = tpu.dynamic_rotate %261 by %c19_i32_99 dim 1 : vector<8x384xf32>, i32 -> vector<8x384xf32>
      %c18_i32_100 = arith.constant 18 : i32
      %263 = tpu.dynamic_rotate %261 by %c18_i32_100 dim 1 : vector<8x384xf32>, i32 -> vector<8x384xf32>
      %c17_i32_101 = arith.constant 17 : i32
      %264 = tpu.dynamic_rotate %261 by %c17_i32_101 dim 1 : vector<8x384xf32>, i32 -> vector<8x384xf32>
      %c1_i32_102 = arith.constant 1 : i32
      %265 = tpu.dynamic_rotate %261 by %c1_i32_102 dim 1 : vector<8x384xf32>, i32 -> vector<8x384xf32>
      %c383_i32_103 = arith.constant 383 : i32
      %266 = tpu.dynamic_rotate %261 by %c383_i32_103 dim 1 : vector<8x384xf32>, i32 -> vector<8x384xf32>
      %c367_i32_104 = arith.constant 367 : i32
      %267 = tpu.dynamic_rotate %261 by %c367_i32_104 dim 1 : vector<8x384xf32>, i32 -> vector<8x384xf32>
      %c366_i32_105 = arith.constant 366 : i32
      %268 = tpu.dynamic_rotate %261 by %c366_i32_105 dim 1 : vector<8x384xf32>, i32 -> vector<8x384xf32>
      %c365_i32_106 = arith.constant 365 : i32
      %269 = tpu.dynamic_rotate %261 by %c365_i32_106 dim 1 : vector<8x384xf32>, i32 -> vector<8x384xf32>
      %270 = tpu.concatenate %262, %263, %264, %265, %261, %266, %267, %268, %269 in 0 : vector<8x384xf32>, vector<8x384xf32>, vector<8x384xf32>, vector<8x384xf32>, vector<8x384xf32>, vector<8x384xf32>, vector<8x384xf32>, vector<8x384xf32>, vector<8x384xf32> -> vector<72x384xf32>
      %cst_107 = arith.constant dense<0.000000e+00> : vector<16x384xf32>
      %271 = tpu.matmul %3, %270, %cst_107 {dimension_numbers = #tpu.dot_dimension_numbers<[1], [0], [0], [1], [0, 0, 1, 1], [], []>} : vector<16x72xf32>, vector<72x384xf32>, vector<16x384xf32> -> vector<16x384xf32>
      %cst_108 = arith.constant 0.000000e+00 : f32
      %272 = vector.broadcast %cst_108 : f32 to vector<16x384xf32>
      %273 = arith.maximumf %271, %272 : vector<16x384xf32>
      %274 = vector.broadcast %2 : vector<1x384xf32> to vector<16x384xf32>
      %275 = arith.mulf %273, %274 : vector<16x384xf32>
      %276 = arith.mulf %275, %273 : vector<16x384xf32>
      %277 = tpu.concatenate %275, %276 in 0 : vector<16x384xf32>, vector<16x384xf32> -> vector<32x384xf32>
      %cst_109 = arith.constant dense<0.000000e+00> : vector<32xf32>
      %278 = vector.multi_reduction <add>, %277, %cst_109 [1] : vector<32x384xf32> to vector<32xf32>
      %279 = vector.shape_cast %278 : vector<32xf32> to vector<32x1xf32>
      %280 = vector.extract_strided_slice %279 {offsets = [0, 0], sizes = [16, 1], strides = [1, 1]} : vector<32x1xf32> to vector<16x1xf32>
      %281 = vector.extract_strided_slice %279 {offsets = [16, 0], sizes = [16, 1], strides = [1, 1]} : vector<32x1xf32> to vector<16x1xf32>
      %282 = tpu.concatenate %280, %281 in 1 : vector<16x1xf32>, vector<16x1xf32> -> vector<16x2xf32>
      %cst_110 = arith.constant dense<0.000000e+00> : vector<16x2xf32>
      %283 = tpu.matmul %11, %282, %cst_110 {dimension_numbers = #tpu.dot_dimension_numbers<[1], [0], [0], [1], [0, 0, 1, 1], [], []>} : vector<16x16xf32>, vector<16x2xf32>, vector<16x2xf32> -> vector<16x2xf32>
      %284 = vector.extract_strided_slice %283 {offsets = [0, 0], sizes = [16, 1], strides = [1, 1]} : vector<16x2xf32> to vector<16x1xf32>
      %cst_111 = arith.constant 9.765625E-4 : f32
      %285 = vector.broadcast %cst_111 : f32 to vector<16x1xf32>
      %286 = arith.mulf %284, %285 : vector<16x1xf32>
      %287 = vector.extract_strided_slice %283 {offsets = [0, 1], sizes = [16, 1], strides = [1, 1]} : vector<16x2xf32> to vector<16x1xf32>
      %cst_112 = arith.constant 9.765625E-4 : f32
      %288 = vector.broadcast %cst_112 : f32 to vector<16x1xf32>
      %289 = arith.mulf %287, %288 : vector<16x1xf32>
      %290 = arith.mulf %286, %286 : vector<16x1xf32>
      %291 = arith.subf %289, %290 : vector<16x1xf32>
      %cst_113 = arith.constant 0.000000e+00 : f32
      %292 = vector.broadcast %cst_113 : f32 to vector<16x1xf32>
      %293 = arith.maximumf %291, %292 : vector<16x1xf32>
      %cst_114 = arith.constant 9.99999974E-6 : f32
      %294 = vector.broadcast %cst_114 : f32 to vector<16x1xf32>
      %295 = arith.addf %293, %294 : vector<16x1xf32>
      %296 = math.rsqrt %295 : vector<16x1xf32>
      %297 = arith.mulf %5, %296 : vector<16x1xf32>
      %298 = arith.mulf %286, %297 : vector<16x1xf32>
      %299 = arith.subf %6, %298 : vector<16x1xf32>
      %300 = vector.broadcast %297 : vector<16x1xf32> to vector<16x384xf32>
      %301 = arith.mulf %273, %300 : vector<16x384xf32>
      %302 = vector.broadcast %299 : vector<16x1xf32> to vector<16x384xf32>
      %303 = arith.addf %301, %302 : vector<16x384xf32>
      %304 = vector.broadcast %2 : vector<1x384xf32> to vector<16x384xf32>
      %305 = arith.mulf %303, %304 : vector<16x384xf32>
      %c19_i32_115 = arith.constant 19 : i32
      %306 = tpu.dynamic_rotate %305 by %c19_i32_115 dim 1 : vector<16x384xf32>, i32 -> vector<16x384xf32>
      %c18_i32_116 = arith.constant 18 : i32
      %307 = tpu.dynamic_rotate %305 by %c18_i32_116 dim 1 : vector<16x384xf32>, i32 -> vector<16x384xf32>
      %c17_i32_117 = arith.constant 17 : i32
      %308 = tpu.dynamic_rotate %305 by %c17_i32_117 dim 1 : vector<16x384xf32>, i32 -> vector<16x384xf32>
      %c1_i32_118 = arith.constant 1 : i32
      %309 = tpu.dynamic_rotate %305 by %c1_i32_118 dim 1 : vector<16x384xf32>, i32 -> vector<16x384xf32>
      %c383_i32_119 = arith.constant 383 : i32
      %310 = tpu.dynamic_rotate %305 by %c383_i32_119 dim 1 : vector<16x384xf32>, i32 -> vector<16x384xf32>
      %c367_i32_120 = arith.constant 367 : i32
      %311 = tpu.dynamic_rotate %305 by %c367_i32_120 dim 1 : vector<16x384xf32>, i32 -> vector<16x384xf32>
      %c366_i32_121 = arith.constant 366 : i32
      %312 = tpu.dynamic_rotate %305 by %c366_i32_121 dim 1 : vector<16x384xf32>, i32 -> vector<16x384xf32>
      %c365_i32_122 = arith.constant 365 : i32
      %313 = tpu.dynamic_rotate %305 by %c365_i32_122 dim 1 : vector<16x384xf32>, i32 -> vector<16x384xf32>
      %314 = tpu.concatenate %306, %307, %308, %309, %305, %310, %311, %312, %313 in 0 : vector<16x384xf32>, vector<16x384xf32>, vector<16x384xf32>, vector<16x384xf32>, vector<16x384xf32>, vector<16x384xf32>, vector<16x384xf32>, vector<16x384xf32>, vector<16x384xf32> -> vector<144x384xf32>
      %cst_123 = arith.constant dense<0.000000e+00> : vector<8x384xf32>
      %315 = tpu.matmul %4, %314, %cst_123 {dimension_numbers = #tpu.dot_dimension_numbers<[1], [0], [0], [1], [0, 0, 1, 1], [], []>} : vector<8x144xf32>, vector<144x384xf32>, vector<8x384xf32> -> vector<8x384xf32>
      %316 = arith.addf %1, %315 : vector<8x384xf32>
      %317 = vector.broadcast %2 : vector<1x384xf32> to vector<8x384xf32>
      %318 = arith.mulf %316, %317 : vector<8x384xf32>
      %319 = arith.mulf %318, %316 : vector<8x384xf32>
      %320 = tpu.concatenate %318, %319 in 0 : vector<8x384xf32>, vector<8x384xf32> -> vector<16x384xf32>
      %cst_124 = arith.constant dense<0.000000e+00> : vector<16xf32>
      %321 = vector.multi_reduction <add>, %320, %cst_124 [1] : vector<16x384xf32> to vector<16xf32>
      %322 = vector.shape_cast %321 : vector<16xf32> to vector<16x1xf32>
      %323 = vector.extract_strided_slice %322 {offsets = [0, 0], sizes = [8, 1], strides = [1, 1]} : vector<16x1xf32> to vector<8x1xf32>
      %324 = vector.extract_strided_slice %322 {offsets = [8, 0], sizes = [8, 1], strides = [1, 1]} : vector<16x1xf32> to vector<8x1xf32>
      %325 = tpu.concatenate %323, %324 in 1 : vector<8x1xf32>, vector<8x1xf32> -> vector<8x2xf32>
      %cst_125 = arith.constant dense<0.000000e+00> : vector<8x2xf32>
      %326 = tpu.matmul %12, %325, %cst_125 {dimension_numbers = #tpu.dot_dimension_numbers<[1], [0], [0], [1], [0, 0, 1, 1], [], []>} : vector<8x8xf32>, vector<8x2xf32>, vector<8x2xf32> -> vector<8x2xf32>
      %327 = vector.extract_strided_slice %326 {offsets = [0, 0], sizes = [8, 1], strides = [1, 1]} : vector<8x2xf32> to vector<8x1xf32>
      %cst_126 = arith.constant 0.001953125 : f32
      %328 = vector.broadcast %cst_126 : f32 to vector<8x1xf32>
      %329 = arith.mulf %327, %328 : vector<8x1xf32>
      %330 = vector.extract_strided_slice %326 {offsets = [0, 1], sizes = [8, 1], strides = [1, 1]} : vector<8x2xf32> to vector<8x1xf32>
      %cst_127 = arith.constant 0.001953125 : f32
      %331 = vector.broadcast %cst_127 : f32 to vector<8x1xf32>
      %332 = arith.mulf %330, %331 : vector<8x1xf32>
      %333 = arith.mulf %329, %329 : vector<8x1xf32>
      %334 = arith.subf %332, %333 : vector<8x1xf32>
      %cst_128 = arith.constant 0.000000e+00 : f32
      %335 = vector.broadcast %cst_128 : f32 to vector<8x1xf32>
      %336 = arith.maximumf %334, %335 : vector<8x1xf32>
      %cst_129 = arith.constant 9.99999974E-6 : f32
      %337 = vector.broadcast %cst_129 : f32 to vector<8x1xf32>
      %338 = arith.addf %336, %337 : vector<8x1xf32>
      %339 = math.rsqrt %338 : vector<8x1xf32>
      %340 = arith.mulf %7, %339 : vector<8x1xf32>
      %341 = arith.mulf %329, %340 : vector<8x1xf32>
      %342 = arith.subf %8, %341 : vector<8x1xf32>
      %343 = vector.broadcast %340 : vector<8x1xf32> to vector<8x384xf32>
      %344 = arith.mulf %316, %343 : vector<8x384xf32>
      %345 = vector.broadcast %342 : vector<8x1xf32> to vector<8x384xf32>
      %346 = arith.addf %344, %345 : vector<8x384xf32>
      %347 = arith.addf %261, %346 : vector<8x384xf32>
      %cst_130 = arith.constant 0.000000e+00 : f32
      %348 = vector.broadcast %cst_130 : f32 to vector<8x384xf32>
      %349 = arith.maximumf %347, %348 : vector<8x384xf32>
      %350 = vector.broadcast %2 : vector<1x384xf32> to vector<8x384xf32>
      %351 = arith.mulf %349, %350 : vector<8x384xf32>
      %352 = arith.mulf %351, %349 : vector<8x384xf32>
      %353 = tpu.concatenate %351, %352 in 0 : vector<8x384xf32>, vector<8x384xf32> -> vector<16x384xf32>
      %cst_131 = arith.constant dense<0.000000e+00> : vector<16xf32>
      %354 = vector.multi_reduction <add>, %353, %cst_131 [1] : vector<16x384xf32> to vector<16xf32>
      %355 = vector.shape_cast %354 : vector<16xf32> to vector<16x1xf32>
      %356 = vector.extract_strided_slice %355 {offsets = [0, 0], sizes = [8, 1], strides = [1, 1]} : vector<16x1xf32> to vector<8x1xf32>
      %357 = vector.extract_strided_slice %355 {offsets = [8, 0], sizes = [8, 1], strides = [1, 1]} : vector<16x1xf32> to vector<8x1xf32>
      %358 = tpu.concatenate %356, %357 in 1 : vector<8x1xf32>, vector<8x1xf32> -> vector<8x2xf32>
      %cst_132 = arith.constant dense<0.000000e+00> : vector<8x2xf32>
      %359 = tpu.matmul %12, %358, %cst_132 {dimension_numbers = #tpu.dot_dimension_numbers<[1], [0], [0], [1], [0, 0, 1, 1], [], []>} : vector<8x8xf32>, vector<8x2xf32>, vector<8x2xf32> -> vector<8x2xf32>
      %360 = vector.extract_strided_slice %359 {offsets = [0, 0], sizes = [8, 1], strides = [1, 1]} : vector<8x2xf32> to vector<8x1xf32>
      %cst_133 = arith.constant 0.001953125 : f32
      %361 = vector.broadcast %cst_133 : f32 to vector<8x1xf32>
      %362 = arith.mulf %360, %361 : vector<8x1xf32>
      %363 = vector.extract_strided_slice %359 {offsets = [0, 1], sizes = [8, 1], strides = [1, 1]} : vector<8x2xf32> to vector<8x1xf32>
      %cst_134 = arith.constant 0.001953125 : f32
      %364 = vector.broadcast %cst_134 : f32 to vector<8x1xf32>
      %365 = arith.mulf %363, %364 : vector<8x1xf32>
      %366 = arith.mulf %362, %362 : vector<8x1xf32>
      %367 = arith.subf %365, %366 : vector<8x1xf32>
      %cst_135 = arith.constant 0.000000e+00 : f32
      %368 = vector.broadcast %cst_135 : f32 to vector<8x1xf32>
      %369 = arith.maximumf %367, %368 : vector<8x1xf32>
      %cst_136 = arith.constant 9.99999974E-6 : f32
      %370 = vector.broadcast %cst_136 : f32 to vector<8x1xf32>
      %371 = arith.addf %369, %370 : vector<8x1xf32>
      %372 = math.rsqrt %371 : vector<8x1xf32>
      %373 = arith.mulf %9, %372 : vector<8x1xf32>
      %374 = arith.mulf %362, %373 : vector<8x1xf32>
      %375 = arith.subf %10, %374 : vector<8x1xf32>
      %376 = vector.broadcast %373 : vector<8x1xf32> to vector<8x384xf32>
      %377 = arith.mulf %349, %376 : vector<8x384xf32>
      %378 = vector.broadcast %375 : vector<8x1xf32> to vector<8x384xf32>
      %379 = arith.addf %377, %378 : vector<8x384xf32>
      %380 = vector.broadcast %2 : vector<1x384xf32> to vector<8x384xf32>
      %381 = arith.mulf %379, %380 : vector<8x384xf32>
      %c2_i32 = arith.constant 2 : i32
      %382 = arith.addi %arg15, %c2_i32 : i32
      %383 = arith.subf %381, %261 : vector<8x384xf32>
      %384 = arith.mulf %383, %383 : vector<8x384xf32>
      %385 = arith.mulf %381, %381 : vector<8x384xf32>
      %386 = tpu.concatenate %384, %385 in 0 : vector<8x384xf32>, vector<8x384xf32> -> vector<16x384xf32>
      %cst_137 = arith.constant dense<0.000000e+00> : vector<16xf32>
      %387 = vector.multi_reduction <add>, %386, %cst_137 [1] : vector<16x384xf32> to vector<16xf32>
      %388 = vector.shape_cast %387 : vector<16xf32> to vector<16x1xf32>
      %389 = vector.extract_strided_slice %388 {offsets = [0, 0], sizes = [8, 1], strides = [1, 1]} : vector<16x1xf32> to vector<8x1xf32>
      %390 = vector.shape_cast %389 : vector<8x1xf32> to vector<1x8x1xf32>
      %cst_138 = arith.constant dense<0.000000e+00> : vector<1xf32>
      %391 = vector.multi_reduction <add>, %390, %cst_138 [1, 2] : vector<1x8x1xf32> to vector<1xf32>
      %392 = vector.shape_cast %391 : vector<1xf32> to vector<1x1x1xf32>
      %393 = vector.extract %392[0, 0, 0] : f32 from vector<1x1x1xf32>
      %394 = math.sqrt %393 : f32
      %395 = vector.extract_strided_slice %388 {offsets = [8, 0], sizes = [8, 1], strides = [1, 1]} : vector<16x1xf32> to vector<8x1xf32>
      %396 = vector.shape_cast %395 : vector<8x1xf32> to vector<1x8x1xf32>
      %cst_139 = arith.constant dense<0.000000e+00> : vector<1xf32>
      %397 = vector.multi_reduction <add>, %396, %cst_139 [1, 2] : vector<1x8x1xf32> to vector<1xf32>
      %398 = vector.shape_cast %397 : vector<1xf32> to vector<1x1x1xf32>
      %399 = vector.extract %398[0, 0, 0] : f32 from vector<1x1x1xf32>
      %400 = math.sqrt %399 : f32
      %cst_140 = arith.constant 9.99999993E-9 : f32
      %401 = arith.addf %400, %cst_140 : f32
      %402 = arith.divf %394, %401 : f32
      scf.yield %382, %381, %402 : i32, vector<8x384xf32>, f32
    }
    %c19_i32 = arith.constant 19 : i32
    %15 = tpu.dynamic_rotate %14#1 by %c19_i32 dim 1 : vector<8x384xf32>, i32 -> vector<8x384xf32>
    %c18_i32 = arith.constant 18 : i32
    %16 = tpu.dynamic_rotate %14#1 by %c18_i32 dim 1 : vector<8x384xf32>, i32 -> vector<8x384xf32>
    %c17_i32 = arith.constant 17 : i32
    %17 = tpu.dynamic_rotate %14#1 by %c17_i32 dim 1 : vector<8x384xf32>, i32 -> vector<8x384xf32>
    %c1_i32 = arith.constant 1 : i32
    %18 = tpu.dynamic_rotate %14#1 by %c1_i32 dim 1 : vector<8x384xf32>, i32 -> vector<8x384xf32>
    %c383_i32 = arith.constant 383 : i32
    %19 = tpu.dynamic_rotate %14#1 by %c383_i32 dim 1 : vector<8x384xf32>, i32 -> vector<8x384xf32>
    %c367_i32 = arith.constant 367 : i32
    %20 = tpu.dynamic_rotate %14#1 by %c367_i32 dim 1 : vector<8x384xf32>, i32 -> vector<8x384xf32>
    %c366_i32 = arith.constant 366 : i32
    %21 = tpu.dynamic_rotate %14#1 by %c366_i32 dim 1 : vector<8x384xf32>, i32 -> vector<8x384xf32>
    %c365_i32 = arith.constant 365 : i32
    %22 = tpu.dynamic_rotate %14#1 by %c365_i32 dim 1 : vector<8x384xf32>, i32 -> vector<8x384xf32>
    %23 = tpu.concatenate %15, %16, %17, %18, %14#1, %19, %20, %21, %22 in 0 : vector<8x384xf32>, vector<8x384xf32>, vector<8x384xf32>, vector<8x384xf32>, vector<8x384xf32>, vector<8x384xf32>, vector<8x384xf32>, vector<8x384xf32>, vector<8x384xf32> -> vector<72x384xf32>
    %cst_25 = arith.constant dense<0.000000e+00> : vector<16x384xf32>
    %24 = tpu.matmul %3, %23, %cst_25 {dimension_numbers = #tpu.dot_dimension_numbers<[1], [0], [0], [1], [0, 0, 1, 1], [], []>} : vector<16x72xf32>, vector<72x384xf32>, vector<16x384xf32> -> vector<16x384xf32>
    %cst_26 = arith.constant 0.000000e+00 : f32
    %25 = vector.broadcast %cst_26 : f32 to vector<16x384xf32>
    %26 = arith.maximumf %24, %25 : vector<16x384xf32>
    %27 = vector.broadcast %2 : vector<1x384xf32> to vector<16x384xf32>
    %28 = arith.mulf %26, %27 : vector<16x384xf32>
    %29 = arith.mulf %28, %26 : vector<16x384xf32>
    %30 = tpu.concatenate %28, %29 in 0 : vector<16x384xf32>, vector<16x384xf32> -> vector<32x384xf32>
    %cst_27 = arith.constant dense<0.000000e+00> : vector<32xf32>
    %31 = vector.multi_reduction <add>, %30, %cst_27 [1] : vector<32x384xf32> to vector<32xf32>
    %32 = vector.shape_cast %31 : vector<32xf32> to vector<32x1xf32>
    %33 = vector.extract_strided_slice %32 {offsets = [0, 0], sizes = [16, 1], strides = [1, 1]} : vector<32x1xf32> to vector<16x1xf32>
    %34 = vector.extract_strided_slice %32 {offsets = [16, 0], sizes = [16, 1], strides = [1, 1]} : vector<32x1xf32> to vector<16x1xf32>
    %35 = tpu.concatenate %33, %34 in 1 : vector<16x1xf32>, vector<16x1xf32> -> vector<16x2xf32>
    %cst_28 = arith.constant dense<0.000000e+00> : vector<16x2xf32>
    %36 = tpu.matmul %11, %35, %cst_28 {dimension_numbers = #tpu.dot_dimension_numbers<[1], [0], [0], [1], [0, 0, 1, 1], [], []>} : vector<16x16xf32>, vector<16x2xf32>, vector<16x2xf32> -> vector<16x2xf32>
    %37 = vector.extract_strided_slice %36 {offsets = [0, 0], sizes = [16, 1], strides = [1, 1]} : vector<16x2xf32> to vector<16x1xf32>
    %cst_29 = arith.constant 9.765625E-4 : f32
    %38 = vector.broadcast %cst_29 : f32 to vector<16x1xf32>
    %39 = arith.mulf %37, %38 : vector<16x1xf32>
    %40 = vector.extract_strided_slice %36 {offsets = [0, 1], sizes = [16, 1], strides = [1, 1]} : vector<16x2xf32> to vector<16x1xf32>
    %cst_30 = arith.constant 9.765625E-4 : f32
    %41 = vector.broadcast %cst_30 : f32 to vector<16x1xf32>
    %42 = arith.mulf %40, %41 : vector<16x1xf32>
    %43 = arith.mulf %39, %39 : vector<16x1xf32>
    %44 = arith.subf %42, %43 : vector<16x1xf32>
    %cst_31 = arith.constant 0.000000e+00 : f32
    %45 = vector.broadcast %cst_31 : f32 to vector<16x1xf32>
    %46 = arith.maximumf %44, %45 : vector<16x1xf32>
    %cst_32 = arith.constant 9.99999974E-6 : f32
    %47 = vector.broadcast %cst_32 : f32 to vector<16x1xf32>
    %48 = arith.addf %46, %47 : vector<16x1xf32>
    %49 = math.rsqrt %48 : vector<16x1xf32>
    %50 = arith.mulf %5, %49 : vector<16x1xf32>
    %51 = arith.mulf %39, %50 : vector<16x1xf32>
    %52 = arith.subf %6, %51 : vector<16x1xf32>
    %53 = vector.broadcast %50 : vector<16x1xf32> to vector<16x384xf32>
    %54 = arith.mulf %26, %53 : vector<16x384xf32>
    %55 = vector.broadcast %52 : vector<16x1xf32> to vector<16x384xf32>
    %56 = arith.addf %54, %55 : vector<16x384xf32>
    %57 = vector.broadcast %2 : vector<1x384xf32> to vector<16x384xf32>
    %58 = arith.mulf %56, %57 : vector<16x384xf32>
    %c19_i32_33 = arith.constant 19 : i32
    %59 = tpu.dynamic_rotate %58 by %c19_i32_33 dim 1 : vector<16x384xf32>, i32 -> vector<16x384xf32>
    %c18_i32_34 = arith.constant 18 : i32
    %60 = tpu.dynamic_rotate %58 by %c18_i32_34 dim 1 : vector<16x384xf32>, i32 -> vector<16x384xf32>
    %c17_i32_35 = arith.constant 17 : i32
    %61 = tpu.dynamic_rotate %58 by %c17_i32_35 dim 1 : vector<16x384xf32>, i32 -> vector<16x384xf32>
    %c1_i32_36 = arith.constant 1 : i32
    %62 = tpu.dynamic_rotate %58 by %c1_i32_36 dim 1 : vector<16x384xf32>, i32 -> vector<16x384xf32>
    %c383_i32_37 = arith.constant 383 : i32
    %63 = tpu.dynamic_rotate %58 by %c383_i32_37 dim 1 : vector<16x384xf32>, i32 -> vector<16x384xf32>
    %c367_i32_38 = arith.constant 367 : i32
    %64 = tpu.dynamic_rotate %58 by %c367_i32_38 dim 1 : vector<16x384xf32>, i32 -> vector<16x384xf32>
    %c366_i32_39 = arith.constant 366 : i32
    %65 = tpu.dynamic_rotate %58 by %c366_i32_39 dim 1 : vector<16x384xf32>, i32 -> vector<16x384xf32>
    %c365_i32_40 = arith.constant 365 : i32
    %66 = tpu.dynamic_rotate %58 by %c365_i32_40 dim 1 : vector<16x384xf32>, i32 -> vector<16x384xf32>
    %67 = tpu.concatenate %59, %60, %61, %62, %58, %63, %64, %65, %66 in 0 : vector<16x384xf32>, vector<16x384xf32>, vector<16x384xf32>, vector<16x384xf32>, vector<16x384xf32>, vector<16x384xf32>, vector<16x384xf32>, vector<16x384xf32>, vector<16x384xf32> -> vector<144x384xf32>
    %cst_41 = arith.constant dense<0.000000e+00> : vector<8x384xf32>
    %68 = tpu.matmul %4, %67, %cst_41 {dimension_numbers = #tpu.dot_dimension_numbers<[1], [0], [0], [1], [0, 0, 1, 1], [], []>} : vector<8x144xf32>, vector<144x384xf32>, vector<8x384xf32> -> vector<8x384xf32>
    %69 = arith.addf %1, %68 : vector<8x384xf32>
    %70 = vector.broadcast %2 : vector<1x384xf32> to vector<8x384xf32>
    %71 = arith.mulf %69, %70 : vector<8x384xf32>
    %72 = arith.mulf %71, %69 : vector<8x384xf32>
    %73 = tpu.concatenate %71, %72 in 0 : vector<8x384xf32>, vector<8x384xf32> -> vector<16x384xf32>
    %cst_42 = arith.constant dense<0.000000e+00> : vector<16xf32>
    %74 = vector.multi_reduction <add>, %73, %cst_42 [1] : vector<16x384xf32> to vector<16xf32>
    %75 = vector.shape_cast %74 : vector<16xf32> to vector<16x1xf32>
    %76 = vector.extract_strided_slice %75 {offsets = [0, 0], sizes = [8, 1], strides = [1, 1]} : vector<16x1xf32> to vector<8x1xf32>
    %77 = vector.extract_strided_slice %75 {offsets = [8, 0], sizes = [8, 1], strides = [1, 1]} : vector<16x1xf32> to vector<8x1xf32>
    %78 = tpu.concatenate %76, %77 in 1 : vector<8x1xf32>, vector<8x1xf32> -> vector<8x2xf32>
    %cst_43 = arith.constant dense<0.000000e+00> : vector<8x2xf32>
    %79 = tpu.matmul %12, %78, %cst_43 {dimension_numbers = #tpu.dot_dimension_numbers<[1], [0], [0], [1], [0, 0, 1, 1], [], []>} : vector<8x8xf32>, vector<8x2xf32>, vector<8x2xf32> -> vector<8x2xf32>
    %80 = vector.extract_strided_slice %79 {offsets = [0, 0], sizes = [8, 1], strides = [1, 1]} : vector<8x2xf32> to vector<8x1xf32>
    %cst_44 = arith.constant 0.001953125 : f32
    %81 = vector.broadcast %cst_44 : f32 to vector<8x1xf32>
    %82 = arith.mulf %80, %81 : vector<8x1xf32>
    %83 = vector.extract_strided_slice %79 {offsets = [0, 1], sizes = [8, 1], strides = [1, 1]} : vector<8x2xf32> to vector<8x1xf32>
    %cst_45 = arith.constant 0.001953125 : f32
    %84 = vector.broadcast %cst_45 : f32 to vector<8x1xf32>
    %85 = arith.mulf %83, %84 : vector<8x1xf32>
    %86 = arith.mulf %82, %82 : vector<8x1xf32>
    %87 = arith.subf %85, %86 : vector<8x1xf32>
    %cst_46 = arith.constant 0.000000e+00 : f32
    %88 = vector.broadcast %cst_46 : f32 to vector<8x1xf32>
    %89 = arith.maximumf %87, %88 : vector<8x1xf32>
    %cst_47 = arith.constant 9.99999974E-6 : f32
    %90 = vector.broadcast %cst_47 : f32 to vector<8x1xf32>
    %91 = arith.addf %89, %90 : vector<8x1xf32>
    %92 = math.rsqrt %91 : vector<8x1xf32>
    %93 = arith.mulf %7, %92 : vector<8x1xf32>
    %94 = arith.mulf %82, %93 : vector<8x1xf32>
    %95 = arith.subf %8, %94 : vector<8x1xf32>
    %96 = vector.broadcast %93 : vector<8x1xf32> to vector<8x384xf32>
    %97 = arith.mulf %69, %96 : vector<8x384xf32>
    %98 = vector.broadcast %95 : vector<8x1xf32> to vector<8x384xf32>
    %99 = arith.addf %97, %98 : vector<8x384xf32>
    %100 = arith.addf %14#1, %99 : vector<8x384xf32>
    %cst_48 = arith.constant 0.000000e+00 : f32
    %101 = vector.broadcast %cst_48 : f32 to vector<8x384xf32>
    %102 = arith.maximumf %100, %101 : vector<8x384xf32>
    %103 = vector.broadcast %2 : vector<1x384xf32> to vector<8x384xf32>
    %104 = arith.mulf %102, %103 : vector<8x384xf32>
    %105 = arith.mulf %104, %102 : vector<8x384xf32>
    %106 = tpu.concatenate %104, %105 in 0 : vector<8x384xf32>, vector<8x384xf32> -> vector<16x384xf32>
    %cst_49 = arith.constant dense<0.000000e+00> : vector<16xf32>
    %107 = vector.multi_reduction <add>, %106, %cst_49 [1] : vector<16x384xf32> to vector<16xf32>
    %108 = vector.shape_cast %107 : vector<16xf32> to vector<16x1xf32>
    %109 = vector.extract_strided_slice %108 {offsets = [0, 0], sizes = [8, 1], strides = [1, 1]} : vector<16x1xf32> to vector<8x1xf32>
    %110 = vector.extract_strided_slice %108 {offsets = [8, 0], sizes = [8, 1], strides = [1, 1]} : vector<16x1xf32> to vector<8x1xf32>
    %111 = tpu.concatenate %109, %110 in 1 : vector<8x1xf32>, vector<8x1xf32> -> vector<8x2xf32>
    %cst_50 = arith.constant dense<0.000000e+00> : vector<8x2xf32>
    %112 = tpu.matmul %12, %111, %cst_50 {dimension_numbers = #tpu.dot_dimension_numbers<[1], [0], [0], [1], [0, 0, 1, 1], [], []>} : vector<8x8xf32>, vector<8x2xf32>, vector<8x2xf32> -> vector<8x2xf32>
    %113 = vector.extract_strided_slice %112 {offsets = [0, 0], sizes = [8, 1], strides = [1, 1]} : vector<8x2xf32> to vector<8x1xf32>
    %cst_51 = arith.constant 0.001953125 : f32
    %114 = vector.broadcast %cst_51 : f32 to vector<8x1xf32>
    %115 = arith.mulf %113, %114 : vector<8x1xf32>
    %116 = vector.extract_strided_slice %112 {offsets = [0, 1], sizes = [8, 1], strides = [1, 1]} : vector<8x2xf32> to vector<8x1xf32>
    %cst_52 = arith.constant 0.001953125 : f32
    %117 = vector.broadcast %cst_52 : f32 to vector<8x1xf32>
    %118 = arith.mulf %116, %117 : vector<8x1xf32>
    %119 = arith.mulf %115, %115 : vector<8x1xf32>
    %120 = arith.subf %118, %119 : vector<8x1xf32>
    %cst_53 = arith.constant 0.000000e+00 : f32
    %121 = vector.broadcast %cst_53 : f32 to vector<8x1xf32>
    %122 = arith.maximumf %120, %121 : vector<8x1xf32>
    %cst_54 = arith.constant 9.99999974E-6 : f32
    %123 = vector.broadcast %cst_54 : f32 to vector<8x1xf32>
    %124 = arith.addf %122, %123 : vector<8x1xf32>
    %125 = math.rsqrt %124 : vector<8x1xf32>
    %126 = arith.mulf %9, %125 : vector<8x1xf32>
    %127 = arith.mulf %115, %126 : vector<8x1xf32>
    %128 = arith.subf %10, %127 : vector<8x1xf32>
    %129 = vector.broadcast %126 : vector<8x1xf32> to vector<8x384xf32>
    %130 = arith.mulf %102, %129 : vector<8x384xf32>
    %131 = vector.broadcast %128 : vector<8x1xf32> to vector<8x384xf32>
    %132 = arith.addf %130, %131 : vector<8x384xf32>
    %133 = vector.broadcast %2 : vector<1x384xf32> to vector<8x384xf32>
    %134 = arith.mulf %132, %133 : vector<8x384xf32>
    %c0_55 = arith.constant 0 : index
    %c0_56 = arith.constant 0 : index
    %c0_57 = arith.constant 0 : index
    %135 = vector.load %arg13[%c0_55, %c0_56, %c0_57] : memref<1x8x384xf32, #tpu.memory_space<vmem>>, vector<1x8x384xf32>
    %136 = vector.shape_cast %135 : vector<1x8x384xf32> to vector<8x384xf32>
    %137 = vector.shape_cast %134 : vector<8x384xf32> to vector<1x8x384xf32>
    tpu.vector_store %arg13[%c0_55, %c0_56, %c0_57], %137 {strides = array<i32>} : memref<1x8x384xf32, #tpu.memory_space<vmem>>, vector<1x8x384xf32>,
    %138 = vector.broadcast %14#2 : f32 to vector<1x128xf32>
    %c0_58 = arith.constant 0 : index
    %c0_59 = arith.constant 0 : index
    %c0_60 = arith.constant 0 : index
    %139 = vector.load %arg14[%c0_58, %c0_59, %c0_60] : memref<1x1x128xf32, #tpu.memory_space<vmem>>, vector<1x1x128xf32>
    %140 = vector.shape_cast %139 : vector<1x1x128xf32> to vector<1x128xf32>
    %141 = vector.shape_cast %138 : vector<1x128xf32> to vector<1x1x128xf32>
    tpu.vector_store %arg14[%c0_58, %c0_59, %c0_60], %141 {strides = array<i32>} : memref<1x1x128xf32, #tpu.memory_space<vmem>>, vector<1x1x128xf32>,
    return
  }
  func.func @transform_0(%arg0: i32) -> (i32, i32, i32) {
    %c0_i32 = arith.constant 0 : i32
    %c0_i32_0 = arith.constant 0 : i32
    %c0_i32_1 = arith.constant 0 : i32
    return %arg0, %c0_i32, %c0_i32_0 : i32, i32, i32
  }
  func.func @transform_1(%arg0: i32) -> (i32, i32) {
    %c0_i32 = arith.constant 0 : i32
    %c0_i32_0 = arith.constant 0 : i32
    %c0_i32_1 = arith.constant 0 : i32
    return %c0_i32, %c0_i32_0 : i32, i32
  }
  func.func @transform_2(%arg0: i32) -> (i32, i32) {
    %c0_i32 = arith.constant 0 : i32
    %c0_i32_0 = arith.constant 0 : i32
    %c0_i32_1 = arith.constant 0 : i32
    return %c0_i32, %c0_i32_0 : i32, i32
  }
  func.func @transform_3(%arg0: i32) -> (i32, i32) {
    %c0_i32 = arith.constant 0 : i32
    %c0_i32_0 = arith.constant 0 : i32
    %c0_i32_1 = arith.constant 0 : i32
    return %c0_i32, %c0_i32_0 : i32, i32
  }
  func.func @transform_4(%arg0: i32) -> (i32, i32) {
    %c0_i32 = arith.constant 0 : i32
    %c0_i32_0 = arith.constant 0 : i32
    %c0_i32_1 = arith.constant 0 : i32
    return %c0_i32, %c0_i32_0 : i32, i32
  }
  func.func @transform_5(%arg0: i32) -> (i32, i32) {
    %c0_i32 = arith.constant 0 : i32
    %c0_i32_0 = arith.constant 0 : i32
    %c0_i32_1 = arith.constant 0 : i32
    return %c0_i32, %c0_i32_0 : i32, i32
  }
  func.func @transform_6(%arg0: i32) -> (i32, i32) {
    %c0_i32 = arith.constant 0 : i32
    %c0_i32_0 = arith.constant 0 : i32
    %c0_i32_1 = arith.constant 0 : i32
    return %c0_i32, %c0_i32_0 : i32, i32
  }
  func.func @transform_7(%arg0: i32) -> (i32, i32) {
    %c0_i32 = arith.constant 0 : i32
    %c0_i32_0 = arith.constant 0 : i32
    %c0_i32_1 = arith.constant 0 : i32
    return %c0_i32, %c0_i32_0 : i32, i32
  }
  func.func @transform_8(%arg0: i32) -> (i32, i32) {
    %c0_i32 = arith.constant 0 : i32
    %c0_i32_0 = arith.constant 0 : i32
    %c0_i32_1 = arith.constant 0 : i32
    return %c0_i32, %c0_i32_0 : i32, i32
  }
  func.func @transform_9(%arg0: i32) -> (i32, i32) {
    %c0_i32 = arith.constant 0 : i32
    %c0_i32_0 = arith.constant 0 : i32
    %c0_i32_1 = arith.constant 0 : i32
    return %c0_i32, %c0_i32_0 : i32, i32
  }
  func.func @transform_10(%arg0: i32) -> (i32, i32) {
    %c0_i32 = arith.constant 0 : i32
    %c0_i32_0 = arith.constant 0 : i32
    %c0_i32_1 = arith.constant 0 : i32
    return %c0_i32, %c0_i32_0 : i32, i32
  }
  func.func @transform_11(%arg0: i32) -> (i32, i32) {
    %c0_i32 = arith.constant 0 : i32
    %c0_i32_0 = arith.constant 0 : i32
    %c0_i32_1 = arith.constant 0 : i32
    return %c0_i32, %c0_i32_0 : i32, i32
  }
  func.func @transform_12(%arg0: i32) -> (i32, i32, i32) {
    %c0_i32 = arith.constant 0 : i32
    %c0_i32_0 = arith.constant 0 : i32
    %c0_i32_1 = arith.constant 0 : i32
    return %arg0, %c0_i32, %c0_i32_0 : i32, i32, i32
  }
  func.func @transform_13(%arg0: i32) -> (i32, i32, i32) {
    %c0_i32 = arith.constant 0 : i32
    %c0_i32_0 = arith.constant 0 : i32
    %c0_i32_1 = arith.constant 0 : i32
    return %arg0, %c0_i32, %c0_i32_0 : i32, i32, i32
  }
}

</mosaic_0001>

<llo_original>
// kernel: deq_forward.1
$region0: #{deq_forward.1}
  #allocation0 [shape = 'u32[]', space=smem, size = 0x4, offset = 0x4, fixed_abs, tag = 'smem constant byte address 0x4 - core index']
  #allocation1 [shape = 'u32[72,128]{1,0:T(1,128)}', space=vmem, size = 0x9000, scoped, tag = 'internal scratch']
  %s0 = inlined_call_operand.vmem [shape: f32[2,8,384], index: 0, kind: input, shape index: {}]
  %s1 = inlined_call_operand.vmem [shape: f32[16,72], index: 1, kind: input, shape index: {}]
  %s2 = inlined_call_operand.vmem [shape: f32[8,144], index: 2, kind: input, shape index: {}]
  %s3 = inlined_call_operand.vmem [shape: f32[16,1], index: 3, kind: input, shape index: {}]
  %s4 = inlined_call_operand.vmem [shape: f32[16,1], index: 4, kind: input, shape index: {}]
  %s5 = inlined_call_operand.vmem [shape: f32[8,1], index: 5, kind: input, shape index: {}]
  %s6 = inlined_call_operand.vmem [shape: f32[8,1], index: 6, kind: input, shape index: {}]
  %s7 = inlined_call_operand.vmem [shape: f32[8,1], index: 7, kind: input, shape index: {}]
  %s8 = inlined_call_operand.vmem [shape: f32[8,1], index: 8, kind: input, shape index: {}]
  %s9 = inlined_call_operand.vmem [shape: f32[16,16], index: 9, kind: input, shape index: {}]
  %s10 = inlined_call_operand.vmem [shape: f32[8,8], index: 10, kind: input, shape index: {}]
  %s11 = inlined_call_operand.vmem [shape: f32[1,384], index: 11, kind: input, shape index: {}]
  %s12 = inlined_call_operand.vmem [shape: f32[2,8,384], index: 12, kind: output, shape index: {0}]
  %s13 = inlined_call_operand.vmem [shape: f32[2,1,128], index: 13, kind: output, shape index: {1}]
  %14 = xla_tuple %s12, %s13
  %s15 = sld [smem:[#allocation0]]
  $region96: #{deq_forward.1} parent=0
    _
  %s17 = ssub.s32 1, %s15
  %s18 = scalar_select 0, %s17, %s15
  loop: start=0, step=1, limit=4
  $region2: #{deq_forward.1} parent=0 // loop_pre_header
    _
  $region3: #{deq_forward.1} parent=0 // loop_header
    %s20 = sphi 0, %s24
    %p21 = scmp.ge.s32.totalorder %s20, 4
    %s30 = sphi 0, %s32
    %s33 = sphi 0, %s30
    %s34 = sphi 0, %s33
    %s50 = sphi 0, %s34
    %s54 = sphi 0, %s54
    %s56 = sphi 0, %s54
    %s57 = sphi 0, %s56
    %s71 = sphi 0, %s57
    %s75 = sphi 0, %s75
    %s77 = sphi 0, %s75
    %s78 = sphi 0, %s77
    %s92 = sphi 0, %s78
    %s96 = sphi 0, %s96
    %s98 = sphi 0, %s96
    %s99 = sphi 0, %s98
    %s113 = sphi 0, %s99
    %s117 = sphi 0, %s117
    %s119 = sphi 0, %s117
    %s120 = sphi 0, %s119
    %s134 = sphi 0, %s120
    %s138 = sphi 0, %s138
    %s140 = sphi 0, %s138
    %s141 = sphi 0, %s140
    %s155 = sphi 0, %s141
    %s159 = sphi 0, %s159
    %s161 = sphi 0, %s159
    %s162 = sphi 0, %s161
    %s176 = sphi 0, %s162
    %s180 = sphi 0, %s180
    %s182 = sphi 0, %s180
    %s183 = sphi 0, %s182
    %s197 = sphi 0, %s183
    %s201 = sphi 0, %s201
    %s203 = sphi 0, %s201
    %s204 = sphi 0, %s203
    %s218 = sphi 0, %s204
    %s222 = sphi 0, %s222
    %s224 = sphi 0, %s222
    %s225 = sphi 0, %s224
    %s239 = sphi 0, %s225
    %s243 = sphi 0, %s243
    %s245 = sphi 0, %s243
    %s246 = sphi 0, %s245
    %s260 = sphi 0, %s246
    %s264 = sphi 0, %s264
    %s266 = sphi 0, %s264
    %s267 = sphi 0, %s266
    %s281 = sphi 0, %s267
    %s287 = sphi 0, %s289
    %s290 = sphi 0, %s287
    %s291 = sphi 0, %s290
    %s307 = sphi 0, %s291
    %s313 = sphi 0, %s315
    %s316 = sphi 0, %s313
    %s317 = sphi 0, %s316
    %s333 = sphi 0, %s317
  $region4: #{deq_forward.1} parent=0 // loop_header_branch
    %23 = sbr.rel (%p21) target = $region8
  $region5: #{deq_forward.1} parent=0 // loop_body
    %s25 = ssub.s32 %s20, 1
    %s26 = ssub.s32 %s20, 2
    %s27 = sadd.s32 %s20, 1
    %s28 = ssub.s32 %s20, %s27
    %p29 = scmp.eq.s32.totalorder %s28, 0
    %s31 = sadd.s32 %s30, 1
    %s32 = scalar_select %p29, %s30, %s31
    %p35 = pneg %p29
    %p36 = scmp.eq.s32.totalorder %s20, 1
    %p37 = por %p35, %p36
    %p38 = scmp.ne.s32.totalorder %s30, %s33
    %p39 = scmp.eq.s32.totalorder %s20, 0
    %p40 = por %p38, %p39
    %p41 = scmp.ne.s32.totalorder %s30, %s33
    %p42 = scmp.eq.s32.totalorder %s25, 1
    %p43 = por %p41, %p42
    %p44 = scmp.ne.s32.totalorder %s33, %s34
    %p45 = scmp.eq.s32.totalorder %s25, 0
    %p46 = por %p44, %p45
    %p47 = scmp.ne.s32.totalorder %s33, %s34
    %p48 = scmp.eq.s32.totalorder %s26, 1
    %p49 = por %p47, %p48
    %p51 = scmp.ne.s32.totalorder %s34, %s50
    %p52 = scmp.eq.s32.totalorder %s26, 0
    %p53 = por %p51, %p52
    %s55 = sadd.s32 %s54, 1
    %p58 = scmp.eq.s32.totalorder %s20, 1
    %p59 = scmp.ne.s32.totalorder %s54, %s56
    %p60 = scmp.eq.s32.totalorder %s20, 0
    %p61 = por %p59, %p60
    %p62 = scmp.ne.s32.totalorder %s54, %s56
    %p63 = scmp.eq.s32.totalorder %s25, 1
    %p64 = por %p62, %p63
    %p65 = scmp.ne.s32.totalorder %s56, %s57
    %p66 = scmp.eq.s32.totalorder %s25, 0
    %p67 = por %p65, %p66
    %p68 = scmp.ne.s32.totalorder %s56, %s57
    %p69 = scmp.eq.s32.totalorder %s26, 1
    %p70 = por %p68, %p69
    %p72 = scmp.ne.s32.totalorder %s57, %s71
    %p73 = scmp.eq.s32.totalorder %s26, 0
    %p74 = por %p72, %p73
    %s76 = sadd.s32 %s75, 1
    %p79 = scmp.eq.s32.totalorder %s20, 1
    %p80 = scmp.ne.s32.totalorder %s75, %s77
    %p81 = scmp.eq.s32.totalorder %s20, 0
    %p82 = por %p80, %p81
    %p83 = scmp.ne.s32.totalorder %s75, %s77
    %p84 = scmp.eq.s32.totalorder %s25, 1
    %p85 = por %p83, %p84
    %p86 = scmp.ne.s32.totalorder %s77, %s78
    %p87 = scmp.eq.s32.totalorder %s25, 0
    %p88 = por %p86, %p87
    %p89 = scmp.ne.s32.totalorder %s77, %s78
    %p90 = scmp.eq.s32.totalorder %s26, 1
    %p91 = por %p89, %p90
    %p93 = scmp.ne.s32.totalorder %s78, %s92
    %p94 = scmp.eq.s32.totalorder %s26, 0
    %p95 = por %p93, %p94
    %s97 = sadd.s32 %s96, 1
    %p100 = scmp.eq.s32.totalorder %s20, 1
    %p101 = scmp.ne.s32.totalorder %s96, %s98
    %p102 = scmp.eq.s32.totalorder %s20, 0
    %p103 = por %p101, %p102
    %p104 = scmp.ne.s32.totalorder %s96, %s98
    %p105 = scmp.eq.s32.totalorder %s25, 1
    %p106 = por %p104, %p105
    %p107 = scmp.ne.s32.totalorder %s98, %s99
    %p108 = scmp.eq.s32.totalorder %s25, 0
    %p109 = por %p107, %p108
    %p110 = scmp.ne.s32.totalorder %s98, %s99
    %p111 = scmp.eq.s32.totalorder %s26, 1
    %p112 = por %p110, %p111
    %p114 = scmp.ne.s32.totalorder %s99, %s113
    %p115 = scmp.eq.s32.totalorder %s26, 0
    %p116 = por %p114, %p115
    %s118 = sadd.s32 %s117, 1
    %p121 = scmp.eq.s32.totalorder %s20, 1
    %p122 = scmp.ne.s32.totalorder %s117, %s119
    %p123 = scmp.eq.s32.totalorder %s20, 0
    %p124 = por %p122, %p123
    %p125 = scmp.ne.s32.totalorder %s117, %s119
    %p126 = scmp.eq.s32.totalorder %s25, 1
    %p127 = por %p125, %p126
    %p128 = scmp.ne.s32.totalorder %s119, %s120
    %p129 = scmp.eq.s32.totalorder %s25, 0
    %p130 = por %p128, %p129
    %p131 = scmp.ne.s32.totalorder %s119, %s120
    %p132 = scmp.eq.s32.totalorder %s26, 1
    %p133 = por %p131, %p132
    %p135 = scmp.ne.s32.totalorder %s120, %s134
    %p136 = scmp.eq.s32.totalorder %s26, 0
    %p137 = por %p135, %p136
    %s139 = sadd.s32 %s138, 1
    %p142 = scmp.eq.s32.totalorder %s20, 1
    %p143 = scmp.ne.s32.totalorder %s138, %s140
    %p144 = scmp.eq.s32.totalorder %s20, 0
    %p145 = por %p143, %p144
    %p146 = scmp.ne.s32.totalorder %s138, %s140
    %p147 = scmp.eq.s32.totalorder %s25, 1
    %p148 = por %p146, %p147
    %p149 = scmp.ne.s32.totalorder %s140, %s141
    %p150 = scmp.eq.s32.totalorder %s25, 0
    %p151 = por %p149, %p150
    %p152 = scmp.ne.s32.totalorder %s140, %s141
    %p153 = scmp.eq.s32.totalorder %s26, 1
    %p154 = por %p152, %p153
    %p156 = scmp.ne.s32.totalorder %s141, %s155
    %p157 = scmp.eq.s32.totalorder %s26, 0
    %p158 = por %p156, %p157
    %s160 = sadd.s32 %s159, 1
    %p163 = scmp.eq.s32.totalorder %s20, 1
    %p164 = scmp.ne.s32.totalorder %s159, %s161
    %p165 = scmp.eq.s32.totalorder %s20, 0
    %p166 = por %p164, %p165
    %p167 = scmp.ne.s32.totalorder %s159, %s161
    %p168 = scmp.eq.s32.totalorder %s25, 1
    %p169 = por %p167, %p168
    %p170 = scmp.ne.s32.totalorder %s161, %s162
    %p171 = scmp.eq.s32.totalorder %s25, 0
    %p172 = por %p170, %p171
    %p173 = scmp.ne.s32.totalorder %s161, %s162
    %p174 = scmp.eq.s32.totalorder %s26, 1
    %p175 = por %p173, %p174
    %p177 = scmp.ne.s32.totalorder %s162, %s176
    %p178 = scmp.eq.s32.totalorder %s26, 0
    %p179 = por %p177, %p178
    %s181 = sadd.s32 %s180, 1
    %p184 = scmp.eq.s32.totalorder %s20, 1
    %p185 = scmp.ne.s32.totalorder %s180, %s182
    %p186 = scmp.eq.s32.totalorder %s20, 0
    %p187 = por %p185, %p186
    %p188 = scmp.ne.s32.totalorder %s180, %s182
    %p189 = scmp.eq.s32.totalorder %s25, 1
    %p190 = por %p188, %p189
    %p191 = scmp.ne.s32.totalorder %s182, %s183
    %p192 = scmp.eq.s32.totalorder %s25, 0
    %p193 = por %p191, %p192
    %p194 = scmp.ne.s32.totalorder %s182, %s183
    %p195 = scmp.eq.s32.totalorder %s26, 1
    %p196 = por %p194, %p195
    %p198 = scmp.ne.s32.totalorder %s183, %s197
    %p199 = scmp.eq.s32.totalorder %s26, 0
    %p200 = por %p198, %p199
    %s202 = sadd.s32 %s201, 1
    %p205 = scmp.eq.s32.totalorder %s20, 1
    %p206 = scmp.ne.s32.totalorder %s201, %s203
    %p207 = scmp.eq.s32.totalorder %s20, 0
    %p208 = por %p206, %p207
    %p209 = scmp.ne.s32.totalorder %s201, %s203
    %p210 = scmp.eq.s32.totalorder %s25, 1
    %p211 = por %p209, %p210
    %p212 = scmp.ne.s32.totalorder %s203, %s204
    %p213 = scmp.eq.s32.totalorder %s25, 0
    %p214 = por %p212, %p213
    %p215 = scmp.ne.s32.totalorder %s203, %s204
    %p216 = scmp.eq.s32.totalorder %s26, 1
    %p217 = por %p215, %p216
    %p219 = scmp.ne.s32.totalorder %s204, %s218
    %p220 = scmp.eq.s32.totalorder %s26, 0
    %p221 = por %p219, %p220
    %s223 = sadd.s32 %s222, 1
    %p226 = scmp.eq.s32.totalorder %s20, 1
    %p227 = scmp.ne.s32.totalorder %s222, %s224
    %p228 = scmp.eq.s32.totalorder %s20, 0
    %p229 = por %p227, %p228
    %p230 = scmp.ne.s32.totalorder %s222, %s224
    %p231 = scmp.eq.s32.totalorder %s25, 1
    %p232 = por %p230, %p231
    %p233 = scmp.ne.s32.totalorder %s224, %s225
    %p234 = scmp.eq.s32.totalorder %s25, 0
    %p235 = por %p233, %p234
    %p236 = scmp.ne.s32.totalorder %s224, %s225
    %p237 = scmp.eq.s32.totalorder %s26, 1
    %p238 = por %p236, %p237
    %p240 = scmp.ne.s32.totalorder %s225, %s239
    %p241 = scmp.eq.s32.totalorder %s26, 0
    %p242 = por %p240, %p241
    %s244 = sadd.s32 %s243, 1
    %p247 = scmp.eq.s32.totalorder %s20, 1
    %p248 = scmp.ne.s32.totalorder %s243, %s245
    %p249 = scmp.eq.s32.totalorder %s20, 0
    %p250 = por %p248, %p249
    %p251 = scmp.ne.s32.totalorder %s243, %s245
    %p252 = scmp.eq.s32.totalorder %s25, 1
    %p253 = por %p251, %p252
    %p254 = scmp.ne.s32.totalorder %s245, %s246
    %p255 = scmp.eq.s32.totalorder %s25, 0
    %p256 = por %p254, %p255
    %p257 = scmp.ne.s32.totalorder %s245, %s246
    %p258 = scmp.eq.s32.totalorder %s26, 1
    %p259 = por %p257, %p258
    %p261 = scmp.ne.s32.totalorder %s246, %s260
    %p262 = scmp.eq.s32.totalorder %s26, 0
    %p263 = por %p261, %p262
    %s265 = sadd.s32 %s264, 1
    %p268 = scmp.eq.s32.totalorder %s20, 1
    %p269 = scmp.ne.s32.totalorder %s264, %s266
    %p270 = scmp.eq.s32.totalorder %s20, 0
    %p271 = por %p269, %p270
    %p272 = scmp.ne.s32.totalorder %s264, %s266
    %p273 = scmp.eq.s32.totalorder %s25, 1
    %p274 = por %p272, %p273
    %p275 = scmp.ne.s32.totalorder %s266, %s267
    %p276 = scmp.eq.s32.totalorder %s25, 0
    %p277 = por %p275, %p276
    %p278 = scmp.ne.s32.totalorder %s266, %s267
    %p279 = scmp.eq.s32.totalorder %s26, 1
    %p280 = por %p278, %p279
    %p282 = scmp.ne.s32.totalorder %s267, %s281
    %p283 = scmp.eq.s32.totalorder %s26, 0
    %p284 = por %p282, %p283
    %s285 = ssub.s32 %s20, %s27
    %p286 = scmp.eq.s32.totalorder %s285, 0
    %s288 = sadd.s32 %s287, 1
    %s289 = scalar_select %p286, %s287, %s288
    %p292 = pneg %p286
    %p293 = scmp.eq.s32.totalorder %s20, 1
    %p294 = por %p292, %p293
    %p295 = scmp.ne.s32.totalorder %s287, %s290
    %p296 = scmp.eq.s32.totalorder %s20, 0
    %p297 = por %p295, %p296
    %p298 = scmp.ne.s32.totalorder %s287, %s290
    %p299 = scmp.eq.s32.totalorder %s25, 1
    %p300 = por %p298, %p299
    %p301 = scmp.ne.s32.totalorder %s290, %s291
    %p302 = scmp.eq.s32.totalorder %s25, 0
    %p303 = por %p301, %p302
    %p304 = scmp.ne.s32.totalorder %s290, %s291
    %p305 = scmp.eq.s32.totalorder %s26, 1
    %p306 = por %p304, %p305
    %p308 = scmp.ne.s32.totalorder %s291, %s307
    %p309 = scmp.eq.s32.totalorder %s26, 0
    %p310 = por %p308, %p309
    %s311 = ssub.s32 %s20, %s27
    %p312 = scmp.eq.s32.totalorder %s311, 0
    %s314 = sadd.s32 %s313, 1
    %s315 = scalar_select %p312, %s313, %s314
    %p318 = pneg %p312
    %p319 = scmp.eq.s32.totalorder %s20, 1
    %p320 = por %p318, %p319
    %p321 = scmp.ne.s32.totalorder %s313, %s316
    %p322 = scmp.eq.s32.totalorder %s20, 0
    %p323 = por %p321, %p322
    %p324 = scmp.ne.s32.totalorder %s313, %s316
    %p325 = scmp.eq.s32.totalorder %s25, 1
    %p326 = por %p324, %p325
    %p327 = scmp.ne.s32.totalorder %s316, %s317
    %p328 = scmp.eq.s32.totalorder %s25, 0
    %p329 = por %p327, %p328
    %p330 = scmp.ne.s32.totalorder %s316, %s317
    %p331 = scmp.eq.s32.totalorder %s26, 1
    %p332 = por %p330, %p331
    %p334 = scmp.ne.s32.totalorder %s317, %s333
    %p335 = scmp.eq.s32.totalorder %s26, 0
    %p336 = por %p334, %p335
    %p337 = scmp.le.s32.totalorder 1, %s20
    %p338 = scmp.lt.s32.totalorder %s20, 3
    %p339 = pnand %p337, %p338
    %p340 = pneg %p339
    // Predicated region
    $region9: #{deq_forward.1} parent=5 // pred_check
      _
    $region10: #{deq_forward.1} parent=5 // pred_check_branch
      %342 = sbr.rel (%p339) target = $region12
    $region11: #{deq_forward.1} parent=5 // pred_region
      %s343 = ssub.s32 %s20, 1
      // Predicated region
      $region13: #{deq_forward.1} parent=11 // pred_check
        %p344 = pneg %p67
      $region14: #{deq_forward.1} parent=11 // pred_check_branch
        %346 = sbr.rel (%p344) target = $region16
      $region15: #{deq_forward.1} parent=11 // pred_region
        _
      $region16: #{deq_forward.1} parent=11 // pred_fallthru
        _
      // Predicated region
      $region17: #{deq_forward.1} parent=11 // pred_check
        %p347 = pneg %p88
      $region18: #{deq_forward.1} parent=11 // pred_check_branch
        %349 = sbr.rel (%p347) target = $region20
      $region19: #{deq_forward.1} parent=11 // pred_region
        _
      $region20: #{deq_forward.1} parent=11 // pred_fallthru
        _
      // Predicated region
      $region21: #{deq_forward.1} parent=11 // pred_check
        %p350 = pneg %p109
      $region22: #{deq_forward.1} parent=11 // pred_check_branch
        %352 = sbr.rel (%p350) target = $region24
      $region23: #{deq_forward.1} parent=11 // pred_region
        _
      $region24: #{deq_forward.1} parent=11 // pred_fallthru
        _
      // Predicated region
      $region25: #{deq_forward.1} parent=11 // pred_check
        %p353 = pneg %p130
      $region26: #{deq_forward.1} parent=11 // pred_check_branch
        %355 = sbr.rel (%p353) target = $region28
      $region27: #{deq_forward.1} parent=11 // pred_region
        _
      $region28: #{deq_forward.1} parent=11 // pred_fallthru
        _
      // Predicated region
      $region29: #{deq_forward.1} parent=11 // pred_check
        %p356 = pneg %p151
      $region30: #{deq_forward.1} parent=11 // pred_check_branch
        %358 = sbr.rel (%p356) target = $region32
      $region31: #{deq_forward.1} parent=11 // pred_region
        _
      $region32: #{deq_forward.1} parent=11 // pred_fallthru
        _
      // Predicated region
      $region33: #{deq_forward.1} parent=11 // pred_check
        %p359 = pneg %p172
      $region34: #{deq_forward.1} parent=11 // pred_check_branch
        %361 = sbr.rel (%p359) target = $region36
      $region35: #{deq_forward.1} parent=11 // pred_region
        _
      $region36: #{deq_forward.1} parent=11 // pred_fallthru
        _
      // Predicated region
      $region37: #{deq_forward.1} parent=11 // pred_check
        %p362 = pneg %p193
      $region38: #{deq_forward.1} parent=11 // pred_check_branch
        %364 = sbr.rel (%p362) target = $region40
      $region39: #{deq_forward.1} parent=11 // pred_region
        _
      $region40: #{deq_forward.1} parent=11 // pred_fallthru
        _
      // Predicated region
      $region41: #{deq_forward.1} parent=11 // pred_check
        %p365 = pneg %p214
      $region42: #{deq_forward.1} parent=11 // pred_check_branch
        %367 = sbr.rel (%p365) target = $region44
      $region43: #{deq_forward.1} parent=11 // pred_region
        _
      $region44: #{deq_forward.1} parent=11 // pred_fallthru
        _
      // Predicated region
      $region45: #{deq_forward.1} parent=11 // pred_check
        %p368 = pneg %p235
      $region46: #{deq_forward.1} parent=11 // pred_check_branch
        %370 = sbr.rel (%p368) target = $region48
      $region47: #{deq_forward.1} parent=11 // pred_region
        _
      $region48: #{deq_forward.1} parent=11 // pred_fallthru
        _
      // Predicated region
      $region49: #{deq_forward.1} parent=11 // pred_check
        %p371 = pneg %p256
      $region50: #{deq_forward.1} parent=11 // pred_check_branch
        %373 = sbr.rel (%p371) target = $region52
      $region51: #{deq_forward.1} parent=11 // pred_region
        _
      $region52: #{deq_forward.1} parent=11 // pred_fallthru
        _
      // Predicated region
      $region53: #{deq_forward.1} parent=11 // pred_check
        %p374 = pneg %p277
      $region54: #{deq_forward.1} parent=11 // pred_check_branch
        %376 = sbr.rel (%p374) target = $region56
      $region55: #{deq_forward.1} parent=11 // pred_region
        _
      $region56: #{deq_forward.1} parent=11 // pred_fallthru
        _
    $region12: #{deq_forward.1} parent=5 // pred_fallthru
      _
    %p377 = scmp.lt.s32.totalorder %s20, 2
    // Predicated region
    $region57: #{deq_forward.1} parent=5 // pred_check
      %p378 = pneg %p377
    $region58: #{deq_forward.1} parent=5 // pred_check_branch
      %380 = sbr.rel (%p378) target = $region60
    $region59: #{deq_forward.1} parent=5 // pred_region
      // Predicated region
      $region61: #{deq_forward.1} parent=59 // pred_check
        %p381 = pneg %p40
      $region62: #{deq_forward.1} parent=59 // pred_check_branch
        %383 = sbr.rel (%p381) target = $region64
      $region63: #{deq_forward.1} parent=59 // pred_region
        %p384 = scmp.lt.s32.totalorder %s20, 1
        %s385 = scalar_select %p384, %s20, 1
        %s386 = smul.addr %s385, 3
        %s387 = smul.addr %s386, 8
        %s388 = scalar_lea.vmem %s0, %s387
      $region64: #{deq_forward.1} parent=59 // pred_fallthru
        _
    $region60: #{deq_forward.1} parent=5 // pred_fallthru
      _
    %p389 = scmp.le.s32.totalorder 1, %s20
    %p390 = scmp.lt.s32.totalorder %s20, 3
    %p391 = pnand %p389, %p390
    %p392 = pneg %p391
    // Predicated region
    $region65: #{deq_forward.1} parent=5 // pred_check
      _
    $region66: #{deq_forward.1} parent=5 // pred_check_branch
      %394 = sbr.rel (%p391) target = $region68
    $region67: #{deq_forward.1} parent=5 // pred_region
      %s395 = ssub.s32 %s20, 1
      %p396 = scmp.lt.s32.totalorder %s25, 1
      %s397 = scalar_select %p396, %s25, 1
      %s398 = smul.addr %s397, 3
      %s399 = smul.addr %s398, 8
      %s400 = scalar_lea.vmem %s0, %s399
      %p401 = pneg %p46
      %p402 = pneg %p43
      %p403 = pneg %p67
      %p404 = pneg %p64
      %p405 = pneg %p88
      %p406 = pneg %p85
      %p407 = pneg %p109
      %p408 = pneg %p106
      %p409 = pneg %p130
      %p410 = pneg %p127
      %p411 = pneg %p151
      %p412 = pneg %p148
      %p413 = pneg %p172
      %p414 = pneg %p169
      %p415 = pneg %p193
      %p416 = pneg %p190
      %p417 = pneg %p214
      %p418 = pneg %p211
      %p419 = pneg %p235
      %p420 = pneg %p232
      %p421 = pneg %p256
      %p422 = pneg %p253
      %p423 = pneg %p277
      %p424 = pneg %p274
      %p425 = pneg %p303
      %p426 = pneg %p300
      %p427 = scmp.lt.s32.totalorder %s25, 1
      %s428 = scalar_select %p427, %s25, 1
      %s429 = smul.addr %s428, 3
      %s430 = smul.addr %s429, 8
      %s431 = scalar_lea.vmem %s12, %s430
      %p432 = pneg %p329
      %p433 = pneg %p326
      %p434 = scmp.lt.s32.totalorder %s25, 1
      %s435 = scalar_select %p434, %s25, 1
      %s436 = scalar_lea.vmem %s13, %s435
      %p437 = scmp.lt.s32.totalorder %s25, 1
      %s438 = scalar_select %p437, %s25, 1
      %s439 = smul.addr %s438, 3
      %s440 = smul.addr %s439, 8
      %s441 = scalar_lea.vmem %s0, %s440
      %p442 = scmp.lt.s32.totalorder %s25, 1
      %s443 = scalar_select %p442, %s25, 1
      %s444 = smul.addr %s443, 3
      %s445 = smul.addr %s444, 8
      %s446 = scalar_lea.vmem %s12, %s445
      %p447 = scmp.lt.s32.totalorder %s25, 1
      %s448 = scalar_select %p447, %s25, 1
      %s449 = scalar_lea.vmem %s13, %s448
      %v450 = vld [vmem:[%s441] sm:$0xff]
      %v451 = vld [vmem:[%s441 + $0x8] sm:$0xff]
      %v452 = vld [vmem:[%s441 + $0x10] sm:$0xff]
      %v453 = vld [vmem:[%s11] sm:$0x7]
      %v454 = vld [vmem:[%s1] sm:$0xff]
      %v455 = vld [vmem:[%s1 + $0x8] sm:$0xff]
      %v456 = vld [vmem:[%s2] sm:$0xff]
      %v457 = vld [vmem:[%s2 + $0x8] sm:$0xff]
      %v458 = vld [vmem:[%s3] sm:$0xff]
      %v459 = vld [vmem:[%s3 + $0x8] sm:$0xff]
      %v460 = vld [vmem:[%s4] sm:$0xff]
      %v461 = vld [vmem:[%s4 + $0x8] sm:$0xff]
      %v462 = vld [vmem:[%s5] sm:$0xff]
      %v463 = vld [vmem:[%s6] sm:$0xff]
      %v464 = vld [vmem:[%s7] sm:$0xff]
      %v465 = vld [vmem:[%s8] sm:$0xff]
      %v466 = vld [vmem:[%s9] sm:$0xff]
      %v467 = vld [vmem:[%s9 + $0x8] sm:$0xff]
      %v468 = vld [vmem:[%s10] sm:$0xff]
      // While loop
      $region69: #{deq_forward.1} parent=67 // loop_pre_header
        _
      $region70: #{deq_forward.1} parent=67 // loop_header
        %s470 = sphi 0, %s1960
        %v471 = vphi 0.0, %v1957
        %v472 = vphi 0.0, %v1958
        %v473 = vphi 0.0, %v1959
        %s474 = sphi inf, %s2043
        %p475 = scmp.lt.s32.totalorder %s470, 2
        %p476 = scmp.gt.f32.partialorder %s474, -1.0
        %p477 = pnand %p475, %p476
        %p478 = pneg %p477
      $region71: #{deq_forward.1} parent=67 // loop_header_branch
        %480 = sbr.rel (%p477) target = $region75
      $region72: #{deq_forward.1} parent=67 // loop_body
        %481 = vrot.lane.b32.xlu0 %v471, 19
        %v482 = vpop.permute.xlu0 %481
        %483 = vrot.lane.b32.xlu0 %v472, 19
        %v484 = vpop.permute.xlu0 %483
        %485 = vrot.lane.b32.xlu0 %v473, 19
        %v486 = vpop.permute.xlu0 %485
        %v487 = vlaneseq
        %v488 = vand.u32 %v487, 127
        %vm489 = vcmp.lt.s32.totalorder %v488, 19
        %v490 = vsel %vm489, %v484, %v486
        %v491 = vsel %vm489, %v482, %v484
        %v492 = vsel %vm489, %v486, %v482
        %493 = vrot.lane.b32.xlu0 %v471, 18
        %v494 = vpop.permute.xlu0 %493
        %495 = vrot.lane.b32.xlu0 %v472, 18
        %v496 = vpop.permute.xlu0 %495
        %497 = vrot.lane.b32.xlu0 %v473, 18
        %v498 = vpop.permute.xlu0 %497
        %vm499 = vcmp.lt.s32.totalorder %v488, 18
        %v500 = vsel %vm499, %v496, %v498
        %v501 = vsel %vm499, %v494, %v496
        %v502 = vsel %vm499, %v498, %v494
        %503 = vrot.lane.b32.xlu0 %v471, 17
        %v504 = vpop.permute.xlu0 %503
        %505 = vrot.lane.b32.xlu0 %v472, 17
        %v506 = vpop.permute.xlu0 %505
        %507 = vrot.lane.b32.xlu0 %v473, 17
        %v508 = vpop.permute.xlu0 %507
        %vm509 = vcmp.lt.s32.totalorder %v488, 17
        %v510 = vsel %vm509, %v506, %v508
        %v511 = vsel %vm509, %v504, %v506
        %v512 = vsel %vm509, %v508, %v504
        %513 = vrot.lane.b32.xlu0 %v471, 1
        %v514 = vpop.permute.xlu0 %513
        %515 = vrot.lane.b32.xlu0 %v472, 1
        %v516 = vpop.permute.xlu0 %515
        %517 = vrot.lane.b32.xlu0 %v473, 1
        %v518 = vpop.permute.xlu0 %517
        %vm519 = vcmp.lt.s32.totalorder %v488, 1
        %v520 = vsel %vm519, %v516, %v518
        %v521 = vsel %vm519, %v514, %v516
        %v522 = vsel %vm519, %v518, %v514
        %523 = vrot.lane.b32.xlu0 %v471, 127
        %v524 = vpop.permute.xlu0 %523
        %525 = vrot.lane.b32.xlu0 %v472, 127
        %v526 = vpop.permute.xlu0 %525
        %527 = vrot.lane.b32.xlu0 %v473, 127
        %v528 = vpop.permute.xlu0 %527
        %vm529 = vcmp.lt.s32.totalorder %v488, 127
        %v530 = vsel %vm529, %v526, %v528
        %v531 = vsel %vm529, %v524, %v526
        %v532 = vsel %vm529, %v528, %v524
        %533 = vrot.lane.b32.xlu0 %v471, 111
        %v534 = vpop.permute.xlu0 %533
        %535 = vrot.lane.b32.xlu0 %v472, 111
        %v536 = vpop.permute.xlu0 %535
        %537 = vrot.lane.b32.xlu0 %v473, 111
        %v538 = vpop.permute.xlu0 %537
        %vm539 = vcmp.lt.s32.totalorder %v488, 111
        %v540 = vsel %vm539, %v536, %v538
        %v541 = vsel %vm539, %v534, %v536
        %v542 = vsel %vm539, %v538, %v534
        %543 = vrot.lane.b32.xlu0 %v471, 110
        %v544 = vpop.permute.xlu0 %543
        %545 = vrot.lane.b32.xlu0 %v472, 110
        %v546 = vpop.permute.xlu0 %545
        %547 = vrot.lane.b32.xlu0 %v473, 110
        %v548 = vpop.permute.xlu0 %547
        %vm549 = vcmp.lt.s32.totalorder %v488, 110
        %v550 = vsel %vm549, %v546, %v548
        %v551 = vsel %vm549, %v544, %v546
        %v552 = vsel %vm549, %v548, %v544
        %553 = vrot.lane.b32.xlu0 %v471, 109
        %v554 = vpop.permute.xlu0 %553
        %555 = vrot.lane.b32.xlu0 %v472, 109
        %v556 = vpop.permute.xlu0 %555
        %557 = vrot.lane.b32.xlu0 %v473, 109
        %v558 = vpop.permute.xlu0 %557
        %vm559 = vcmp.lt.s32.totalorder %v488, 109
        %v560 = vsel %vm559, %v556, %v558
        %v561 = vsel %vm559, %v554, %v556
        %v562 = vsel %vm559, %v558, %v554
        %vm563 = vcmask 588800
        %v565 = vsel %vm563, %v454, 0
        %v568 = vsel %vm563, %v455, 0
        %570 = vmatpush.msra.mxu0 0.0
        %571 = vmatpush.msra.mxu0 0.0
        %572 = vmatpush.msra.mxu0 0.0
        %573 = vmatpush.msra.mxu0 0.0
        %574 = vmatpush.msra.mxu0 0.0
        %575 = vmatpush.msra.mxu0 0.0
        %576 = vmatpush.msra.mxu0 0.0
        %577 = vmatpush.msra.mxu0 %v561
        %578 = vmatpush.msra.mxu0 %v551
        %579 = vmatpush.msra.mxu0 %v541
        %580 = vmatpush.msra.mxu0 %v531
        %581 = vmatpush.msra.mxu0 %v471
        %582 = vmatpush.msra.mxu0 %v522
        %583 = vmatpush.msra.mxu0 %v512
        %584 = vmatpush.msra.mxu0 %v502
        %585 = vmatpush.msra.mxu0 %v492
        %586 = vmatmul.f32.gmra.mxu0 %v565
        %v587 = vpop.f32.mrf.mxu0
        %v588 = vadd.f32 0.0, %v587
        %589 = vmatmul.f32.gmra.mxu0 %v568
        %v590 = vpop.f32.mrf.mxu0
        %v591 = vadd.f32 0.0, %v590
        %592 = vdwg.mxu0
        %593 = vmatpush.msra.mxu0 0.0
        %594 = vmatpush.msra.mxu0 0.0
        %595 = vmatpush.msra.mxu0 0.0
        %596 = vmatpush.msra.mxu0 0.0
        %597 = vmatpush.msra.mxu0 0.0
        %598 = vmatpush.msra.mxu0 0.0
        %599 = vmatpush.msra.mxu0 0.0
        %600 = vmatpush.msra.mxu0 %v560
        %601 = vmatpush.msra.mxu0 %v550
        %602 = vmatpush.msra.mxu0 %v540
        %603 = vmatpush.msra.mxu0 %v530
        %604 = vmatpush.msra.mxu0 %v472
        %605 = vmatpush.msra.mxu0 %v521
        %606 = vmatpush.msra.mxu0 %v511
        %607 = vmatpush.msra.mxu0 %v501
        %608 = vmatpush.msra.mxu0 %v491
        %609 = vmatmul.f32.gmra.mxu0 %v565
        %v610 = vpop.f32.mrf.mxu0
        %v611 = vadd.f32 0.0, %v610
        %612 = vmatmul.f32.gmra.mxu0 %v568
        %v613 = vpop.f32.mrf.mxu0
        %v614 = vadd.f32 0.0, %v613
        %615 = vdwg.mxu0
        %616 = vmatpush.msra.mxu0 0.0
        %617 = vmatpush.msra.mxu0 0.0
        %618 = vmatpush.msra.mxu0 0.0
        %619 = vmatpush.msra.mxu0 0.0
        %620 = vmatpush.msra.mxu0 0.0
        %621 = vmatpush.msra.mxu0 0.0
        %622 = vmatpush.msra.mxu0 0.0
        %623 = vmatpush.msra.mxu0 %v562
        %624 = vmatpush.msra.mxu0 %v552
        %625 = vmatpush.msra.mxu0 %v542
        %626 = vmatpush.msra.mxu0 %v532
        %627 = vmatpush.msra.mxu0 %v473
        %628 = vmatpush.msra.mxu0 %v520
        %629 = vmatpush.msra.mxu0 %v510
        %630 = vmatpush.msra.mxu0 %v500
        %631 = vmatpush.msra.mxu0 %v490
        %632 = vmatmul.f32.gmra.mxu0 %v565
        %v633 = vpop.f32.mrf.mxu0
        %v634 = vadd.f32 0.0, %v633
        %635 = vmatmul.f32.gmra.mxu0 %v568
        %v636 = vpop.f32.mrf.mxu0
        %v637 = vadd.f32 0.0, %v636
        %638 = vdwg.mxu0
        %v639 = vmax.f32 %v588, 0.0
        %v640 = vmax.f32 %v611, 0.0
        %v641 = vmax.f32 %v634, 0.0
        %v642 = vmax.f32 %v591, 0.0
        %v643 = vmax.f32 %v614, 0.0
        %v644 = vmax.f32 %v637, 0.0
        %v646 = vperm.slane %v453, 0
        %v647 = vperm.slane %v453, 1
        %v648 = vperm.slane %v453, 2
        %v652 = vmul.f32 %v639, %v646
        %v653 = vmul.f32 %v640, %v647
        %v654 = vmul.f32 %v641, %v648
        %v655 = vmul.f32 %v642, %v646
        %v656 = vmul.f32 %v643, %v647
        %v657 = vmul.f32 %v644, %v648
        %v658 = vmul.f32 %v652, %v639
        %v659 = vmul.f32 %v653, %v640
        %v660 = vmul.f32 %v654, %v641
        %v661 = vmul.f32 %v655, %v642
        %v662 = vmul.f32 %v656, %v643
        %v663 = vmul.f32 %v657, %v644
        %v664 = vadd.f32 %v652, %v653
        %v665 = vadd.f32 %v664, %v654
        %666 = vadd.xlane.f32.xlu0 %v665
        %v667 = vpop.xlane.xlu0 %666
        %v668 = vadd.f32 %v655, %v656
        %v669 = vadd.f32 %v668, %v657
        %670 = vadd.xlane.f32.xlu0 %v669
        %v671 = vpop.xlane.xlu0 %670
        %v672 = vadd.f32 %v658, %v659
        %v673 = vadd.f32 %v672, %v660
        %674 = vadd.xlane.f32.xlu0 %v673
        %v675 = vpop.xlane.xlu0 %674
        %v676 = vadd.f32 %v661, %v662
        %v677 = vadd.f32 %v676, %v663
        %678 = vadd.xlane.f32.xlu0 %v677
        %v679 = vpop.xlane.xlu0 %678
        %vm680 = vcmask 7168
        %v681 = vsel %vm680, %v667, %v675
        %v682 = vsel %vm680, %v671, %v679
        %vm683 = vcmask 130048
        %v685 = vsel %vm683, %v466, 0
        %v688 = vsel %vm683, %v467, 0
        %690 = vmatpush.msra.mxu0 0.0
        %691 = vmatpush.msra.mxu0 0.0
        %692 = vmatpush.msra.mxu0 0.0
        %693 = vmatpush.msra.mxu0 0.0
        %694 = vmatpush.msra.mxu0 0.0
        %695 = vmatpush.msra.mxu0 0.0
        %696 = vmatpush.msra.mxu0 0.0
        %697 = vmatpush.msra.mxu0 0.0
        %698 = vmatpush.msra.mxu0 0.0
        %699 = vmatpush.msra.mxu0 0.0
        %700 = vmatpush.msra.mxu0 0.0
        %701 = vmatpush.msra.mxu0 0.0
        %702 = vmatpush.msra.mxu0 0.0
        %703 = vmatpush.msra.mxu0 0.0
        %704 = vmatpush.msra.mxu0 %v682
        %705 = vmatpush.msra.mxu0 %v681
        %706 = vmatmul.f32.gmra.mxu0 %v685
        %v707 = vpop.f32.mrf.mxu0
        %v708 = vadd.f32 0.0, %v707
        %709 = vmatmul.f32.gmra.mxu0 %v688
        %v710 = vpop.f32.mrf.mxu0
        %v711 = vadd.f32 0.0, %v710
        %712 = vdwg.mxu0
        %v713 = vmul.f32 %v708, 0.0009765625
        %v714 = vmul.f32 %v711, 0.0009765625
        %v715 = vmul.f32 %v713, %v713
        %v716 = vmul.f32 %v714, %v714
        %719 = vrot.lane.b32.xlu0 %v715, 1
        %v720 = vpop.permute.xlu0 %719
        %721 = vrot.lane.b32.xlu0 %v716, 1
        %v722 = vpop.permute.xlu0 %721
        %v725 = vsub.f32 %v713, %v720
        %v726 = vsub.f32 %v714, %v722
        %v727 = vmax.f32 %v725, 0.0
        %v728 = vmax.f32 %v726, 0.0
        %v729 = vadd.f32 %v727, 1e-05
        %v730 = vadd.f32 %v728, 1e-05
        %v731 = vrsqrt.pop %v729
        %v732 = vmul.f32 %v731, %v729
        %v733 = vmul.f32 %v732, %v731
        %v734 = vmul.f32 0.5, %v733
        %v735 = vsub.f32 1.5, %v734
        %v736 = vmul.f32 %v731, %v735
        %vm737 = vweird.f32 %v729
        %vm738 = vweird.f32 %v731
        %vm739 = vmor %vm737, %vm738
        %v740 = vsel %vm739, %v731, %v736
        %v741 = vrsqrt.pop %v730
        %v742 = vmul.f32 %v741, %v730
        %v743 = vmul.f32 %v742, %v741
        %v744 = vmul.f32 0.5, %v743
        %v745 = vsub.f32 1.5, %v744
        %v746 = vmul.f32 %v741, %v745
        %vm747 = vweird.f32 %v730
        %vm748 = vweird.f32 %v741
        %vm749 = vmor %vm747, %vm748
        %v750 = vsel %vm749, %v741, %v746
        %753 = vrot.lane.b32.xlu0 %v740, 127
        %v754 = vpop.permute.xlu0 %753
        %755 = vrot.lane.b32.xlu0 %v750, 127
        %v756 = vpop.permute.xlu0 %755
        %v759 = vmul.f32 %v458, %v754
        %v760 = vmul.f32 %v459, %v756
        %v761 = vmul.f32 %v713, %v759
        %v762 = vmul.f32 %v714, %v760
        %v763 = vsub.f32 %v460, %v761
        %v764 = vsub.f32 %v461, %v762
        %766 = vset.pattern.permute.xlu0 0
        %767 = vperm.xlu0 %766, %v759
        %v768 = vpop.permute.xlu0 %767
        %771 = vset.pattern.permute.xlu0 0
        %772 = vperm.xlu0 %771, %v760
        %v773 = vpop.permute.xlu0 %772
        %v775 = vmul.f32 %v639, %v768
        %v776 = vmul.f32 %v640, %v768
        %v777 = vmul.f32 %v641, %v768
        %v778 = vmul.f32 %v642, %v773
        %v779 = vmul.f32 %v643, %v773
        %v780 = vmul.f32 %v644, %v773
        %782 = vset.pattern.permute.xlu0 0
        %783 = vperm.xlu0 %782, %v763
        %v784 = vpop.permute.xlu0 %783
        %787 = vset.pattern.permute.xlu0 0
        %788 = vperm.xlu0 %787, %v764
        %v789 = vpop.permute.xlu0 %788
        %v791 = vadd.f32 %v775, %v784
        %v792 = vadd.f32 %v776, %v784
        %v793 = vadd.f32 %v777, %v784
        %v794 = vadd.f32 %v778, %v789
        %v795 = vadd.f32 %v779, %v789
        %v796 = vadd.f32 %v780, %v789
        %v797 = vmul.f32 %v791, %v646
        %v798 = vmul.f32 %v792, %v647
        %v799 = vmul.f32 %v793, %v648
        %v800 = vmul.f32 %v794, %v646
        %v801 = vmul.f32 %v795, %v647
        %v802 = vmul.f32 %v796, %v648
        %803 = vrot.lane.b32.xlu0 %v797, 19
        %v804 = vpop.permute.xlu0 %803
        %805 = vrot.lane.b32.xlu0 %v800, 19
        %v806 = vpop.permute.xlu0 %805
        %807 = vrot.lane.b32.xlu0 %v798, 19
        %v808 = vpop.permute.xlu0 %807
        %809 = vrot.lane.b32.xlu0 %v801, 19
        %v810 = vpop.permute.xlu0 %809
        %811 = vrot.lane.b32.xlu0 %v799, 19
        %v812 = vpop.permute.xlu0 %811
        %813 = vrot.lane.b32.xlu0 %v802, 19
        %v814 = vpop.permute.xlu0 %813
        %v815 = vsel %vm489, %v808, %v812
        %v816 = vsel %vm489, %v810, %v814
        %v817 = vsel %vm489, %v804, %v808
        %v818 = vsel %vm489, %v806, %v810
        %v819 = vsel %vm489, %v812, %v804
        %v820 = vsel %vm489, %v814, %v806
        %821 = vrot.lane.b32.xlu0 %v797, 18
        %v822 = vpop.permute.xlu0 %821
        %823 = vrot.lane.b32.xlu0 %v800, 18
        %v824 = vpop.permute.xlu0 %823
        %825 = vrot.lane.b32.xlu0 %v798, 18
        %v826 = vpop.permute.xlu0 %825
        %827 = vrot.lane.b32.xlu0 %v801, 18
        %v828 = vpop.permute.xlu0 %827
        %829 = vrot.lane.b32.xlu0 %v799, 18
        %v830 = vpop.permute.xlu0 %829
        %831 = vrot.lane.b32.xlu0 %v802, 18
        %v832 = vpop.permute.xlu0 %831
        %v833 = vsel %vm499, %v826, %v830
        %v834 = vsel %vm499, %v828, %v832
        %v835 = vsel %vm499, %v822, %v826
        %v836 = vsel %vm499, %v824, %v828
        %v837 = vsel %vm499, %v830, %v822
        %v838 = vsel %vm499, %v832, %v824
        %839 = vrot.lane.b32.xlu0 %v797, 17
        %v840 = vpop.permute.xlu0 %839
        %841 = vrot.lane.b32.xlu0 %v800, 17
        %v842 = vpop.permute.xlu0 %841
        %843 = vrot.lane.b32.xlu0 %v798, 17
        %v844 = vpop.permute.xlu0 %843
        %845 = vrot.lane.b32.xlu0 %v801, 17
        %v846 = vpop.permute.xlu0 %845
        %847 = vrot.lane.b32.xlu0 %v799, 17
        %v848 = vpop.permute.xlu0 %847
        %849 = vrot.lane.b32.xlu0 %v802, 17
        %v850 = vpop.permute.xlu0 %849
        %v851 = vsel %vm509, %v844, %v848
        %v852 = vsel %vm509, %v846, %v850
        %v853 = vsel %vm509, %v840, %v844
        %v854 = vsel %vm509, %v842, %v846
        %v855 = vsel %vm509, %v848, %v840
        %v856 = vsel %vm509, %v850, %v842
        %857 = vrot.lane.b32.xlu0 %v797, 1
        %v858 = vpop.permute.xlu0 %857
        %859 = vrot.lane.b32.xlu0 %v800, 1
        %v860 = vpop.permute.xlu0 %859
        %861 = vrot.lane.b32.xlu0 %v798, 1
        %v862 = vpop.permute.xlu0 %861
        %863 = vrot.lane.b32.xlu0 %v801, 1
        %v864 = vpop.permute.xlu0 %863
        %865 = vrot.lane.b32.xlu0 %v799, 1
        %v866 = vpop.permute.xlu0 %865
        %867 = vrot.lane.b32.xlu0 %v802, 1
        %v868 = vpop.permute.xlu0 %867
        %v869 = vsel %vm519, %v862, %v866
        %v870 = vsel %vm519, %v864, %v868
        %v871 = vsel %vm519, %v858, %v862
        %v872 = vsel %vm519, %v860, %v864
        %v873 = vsel %vm519, %v866, %v858
        %v874 = vsel %vm519, %v868, %v860
        %875 = vrot.lane.b32.xlu0 %v797, 127
        %v876 = vpop.permute.xlu0 %875
        %877 = vrot.lane.b32.xlu0 %v800, 127
        %v878 = vpop.permute.xlu0 %877
        %879 = vrot.lane.b32.xlu0 %v798, 127
        %v880 = vpop.permute.xlu0 %879
        %881 = vrot.lane.b32.xlu0 %v801, 127
        %v882 = vpop.permute.xlu0 %881
        %883 = vrot.lane.b32.xlu0 %v799, 127
        %v884 = vpop.permute.xlu0 %883
        %885 = vrot.lane.b32.xlu0 %v802, 127
        %v886 = vpop.permute.xlu0 %885
        %v887 = vsel %vm529, %v880, %v884
        %v888 = vsel %vm529, %v882, %v886
        %v889 = vsel %vm529, %v876, %v880
        %v890 = vsel %vm529, %v878, %v882
        %v891 = vsel %vm529, %v884, %v876
        %v892 = vsel %vm529, %v886, %v878
        %893 = vrot.lane.b32.xlu0 %v797, 111
        %v894 = vpop.permute.xlu0 %893
        %895 = vrot.lane.b32.xlu0 %v800, 111
        %v896 = vpop.permute.xlu0 %895
        %897 = vrot.lane.b32.xlu0 %v798, 111
        %v898 = vpop.permute.xlu0 %897
        %899 = vrot.lane.b32.xlu0 %v801, 111
        %v900 = vpop.permute.xlu0 %899
        %901 = vrot.lane.b32.xlu0 %v799, 111
        %v902 = vpop.permute.xlu0 %901
        %903 = vrot.lane.b32.xlu0 %v802, 111
        %v904 = vpop.permute.xlu0 %903
        %v905 = vsel %vm539, %v898, %v902
        %v906 = vsel %vm539, %v900, %v904
        %v907 = vsel %vm539, %v894, %v898
        %v908 = vsel %vm539, %v896, %v900
        %v909 = vsel %vm539, %v902, %v894
        %v910 = vsel %vm539, %v904, %v896
        %911 = vrot.lane.b32.xlu0 %v797, 110
        %v912 = vpop.permute.xlu0 %911
        %913 = vrot.lane.b32.xlu0 %v800, 110
        %v914 = vpop.permute.xlu0 %913
        %915 = vrot.lane.b32.xlu0 %v798, 110
        %v916 = vpop.permute.xlu0 %915
        %917 = vrot.lane.b32.xlu0 %v801, 110
        %v918 = vpop.permute.xlu0 %917
        %919 = vrot.lane.b32.xlu0 %v799, 110
        %v920 = vpop.permute.xlu0 %919
        %921 = vrot.lane.b32.xlu0 %v802, 110
        %v922 = vpop.permute.xlu0 %921
        %v923 = vsel %vm549, %v916, %v920
        %v924 = vsel %vm549, %v918, %v922
        %v925 = vsel %vm549, %v912, %v916
        %v926 = vsel %vm549, %v914, %v918
        %v927 = vsel %vm549, %v920, %v912
        %v928 = vsel %vm549, %v922, %v914
        %929 = vrot.lane.b32.xlu0 %v797, 109
        %v930 = vpop.permute.xlu0 %929
        %931 = vrot.lane.b32.xlu0 %v800, 109
        %v932 = vpop.permute.xlu0 %931
        %933 = vrot.lane.b32.xlu0 %v798, 109
        %v934 = vpop.permute.xlu0 %933
        %935 = vrot.lane.b32.xlu0 %v801, 109
        %v936 = vpop.permute.xlu0 %935
        %937 = vrot.lane.b32.xlu0 %v799, 109
        %v938 = vpop.permute.xlu0 %937
        %939 = vrot.lane.b32.xlu0 %v802, 109
        %v940 = vpop.permute.xlu0 %939
        %v941 = vsel %vm559, %v934, %v938
        %v942 = vsel %vm559, %v936, %v940
        %v943 = vsel %vm559, %v930, %v934
        %v944 = vsel %vm559, %v932, %v936
        %v945 = vsel %vm559, %v938, %v930
        %v946 = vsel %vm559, %v940, %v932
        %v948 = vsel %vm683, %v457, 0
        %950 = vmatpush.msra.mxu0 %v926
        %951 = vmatpush.msra.mxu0 %v925
        %952 = vmatpush.msra.mxu0 %v908
        %953 = vmatpush.msra.mxu0 %v907
        %954 = vmatpush.msra.mxu0 %v890
        %955 = vmatpush.msra.mxu0 %v889
        %956 = vmatpush.msra.mxu0 %v800
        %957 = vmatpush.msra.mxu0 %v797
        %958 = vmatpush.msra.mxu0 %v874
        %959 = vmatpush.msra.mxu0 %v873
        %960 = vmatpush.msra.mxu0 %v856
        %961 = vmatpush.msra.mxu0 %v855
        %962 = vmatpush.msra.mxu0 %v838
        %963 = vmatpush.msra.mxu0 %v837
        %964 = vmatpush.msra.mxu0 %v820
        %965 = vmatpush.msra.mxu0 %v819
        %966 = vmatmul.f32.gmra.mxu0 %v456
        %v967 = vpop.f32.mrf.mxu0
        %v968 = vadd.f32 0.0, %v967
        %969 = vdwg.mxu0
        %970 = vmatpush.msra.mxu0 0.0
        %971 = vmatpush.msra.mxu0 0.0
        %972 = vmatpush.msra.mxu0 0.0
        %973 = vmatpush.msra.mxu0 0.0
        %974 = vmatpush.msra.mxu0 0.0
        %975 = vmatpush.msra.mxu0 0.0
        %976 = vmatpush.msra.mxu0 0.0
        %977 = vmatpush.msra.mxu0 0.0
        %978 = vmatpush.msra.mxu0 0.0
        %979 = vmatpush.msra.mxu0 0.0
        %980 = vmatpush.msra.mxu0 0.0
        %981 = vmatpush.msra.mxu0 0.0
        %982 = vmatpush.msra.mxu0 0.0
        %983 = vmatpush.msra.mxu0 0.0
        %984 = vmatpush.msra.mxu0 %v944
        %985 = vmatpush.msra.mxu0 %v943
        %986 = vmatmul.f32.gmra.mxu0 %v948
        %v987 = vpop.f32.mrf.mxu0
        %v988 = vadd.f32 %v968, %v987
        %989 = vdwg.mxu0
        %990 = vmatpush.msra.mxu0 %v924
        %991 = vmatpush.msra.mxu0 %v923
        %992 = vmatpush.msra.mxu0 %v906
        %993 = vmatpush.msra.mxu0 %v905
        %994 = vmatpush.msra.mxu0 %v888
        %995 = vmatpush.msra.mxu0 %v887
        %996 = vmatpush.msra.mxu0 %v801
        %997 = vmatpush.msra.mxu0 %v798
        %998 = vmatpush.msra.mxu0 %v872
        %999 = vmatpush.msra.mxu0 %v871
        %1000 = vmatpush.msra.mxu0 %v854
        %1001 = vmatpush.msra.mxu0 %v853
        %1002 = vmatpush.msra.mxu0 %v836
        %1003 = vmatpush.msra.mxu0 %v835
        %1004 = vmatpush.msra.mxu0 %v818
        %1005 = vmatpush.msra.mxu0 %v817
        %1006 = vmatmul.f32.gmra.mxu0 %v456
        %v1007 = vpop.f32.mrf.mxu0
        %v1008 = vadd.f32 0.0, %v1007
        %1009 = vdwg.mxu0
        %1010 = vmatpush.msra.mxu0 0.0
        %1011 = vmatpush.msra.mxu0 0.0
        %1012 = vmatpush.msra.mxu0 0.0
        %1013 = vmatpush.msra.mxu0 0.0
        %1014 = vmatpush.msra.mxu0 0.0
        %1015 = vmatpush.msra.mxu0 0.0
        %1016 = vmatpush.msra.mxu0 0.0
        %1017 = vmatpush.msra.mxu0 0.0
        %1018 = vmatpush.msra.mxu0 0.0
        %1019 = vmatpush.msra.mxu0 0.0
        %1020 = vmatpush.msra.mxu0 0.0
        %1021 = vmatpush.msra.mxu0 0.0
        %1022 = vmatpush.msra.mxu0 0.0
        %1023 = vmatpush.msra.mxu0 0.0
        %1024 = vmatpush.msra.mxu0 %v942
        %1025 = vmatpush.msra.mxu0 %v941
        %1026 = vmatmul.f32.gmra.mxu0 %v948
        %v1027 = vpop.f32.mrf.mxu0
        %v1028 = vadd.f32 %v1008, %v1027
        %1029 = vdwg.mxu0
        %1030 = vmatpush.msra.mxu0 %v928
        %1031 = vmatpush.msra.mxu0 %v927
        %1032 = vmatpush.msra.mxu0 %v910
        %1033 = vmatpush.msra.mxu0 %v909
        %1034 = vmatpush.msra.mxu0 %v892
        %1035 = vmatpush.msra.mxu0 %v891
        %1036 = vmatpush.msra.mxu0 %v802
        %1037 = vmatpush.msra.mxu0 %v799
        %1038 = vmatpush.msra.mxu0 %v870
        %1039 = vmatpush.msra.mxu0 %v869
        %1040 = vmatpush.msra.mxu0 %v852
        %1041 = vmatpush.msra.mxu0 %v851
        %1042 = vmatpush.msra.mxu0 %v834
        %1043 = vmatpush.msra.mxu0 %v833
        %1044 = vmatpush.msra.mxu0 %v816
        %1045 = vmatpush.msra.mxu0 %v815
        %1046 = vmatmul.f32.gmra.mxu0 %v456
        %v1047 = vpop.f32.mrf.mxu0
        %v1048 = vadd.f32 0.0, %v1047
        %1049 = vdwg.mxu0
        %1050 = vmatpush.msra.mxu0 0.0
        %1051 = vmatpush.msra.mxu0 0.0
        %1052 = vmatpush.msra.mxu0 0.0
        %1053 = vmatpush.msra.mxu0 0.0
        %1054 = vmatpush.msra.mxu0 0.0
        %1055 = vmatpush.msra.mxu0 0.0
        %1056 = vmatpush.msra.mxu0 0.0
        %1057 = vmatpush.msra.mxu0 0.0
        %1058 = vmatpush.msra.mxu0 0.0
        %1059 = vmatpush.msra.mxu0 0.0
        %1060 = vmatpush.msra.mxu0 0.0
        %1061 = vmatpush.msra.mxu0 0.0
        %1062 = vmatpush.msra.mxu0 0.0
        %1063 = vmatpush.msra.mxu0 0.0
        %1064 = vmatpush.msra.mxu0 %v946
        %1065 = vmatpush.msra.mxu0 %v945
        %1066 = vmatmul.f32.gmra.mxu0 %v948
        %v1067 = vpop.f32.mrf.mxu0
        %v1068 = vadd.f32 %v1048, %v1067
        %1069 = vdwg.mxu0
        %v1070 = vadd.f32 %v450, %v988
        %v1071 = vadd.f32 %v451, %v1028
        %v1072 = vadd.f32 %v452, %v1068
        %v1073 = vmul.f32 %v1070, %v646
        %v1074 = vmul.f32 %v1071, %v647
        %v1075 = vmul.f32 %v1072, %v648
        %v1076 = vmul.f32 %v1073, %v1070
        %v1077 = vmul.f32 %v1074, %v1071
        %v1078 = vmul.f32 %v1075, %v1072
        %v1079 = vadd.f32 %v1073, %v1074
        %v1080 = vadd.f32 %v1079, %v1075
        %1081 = vadd.xlane.f32.xlu0 %v1080
        %v1082 = vpop.xlane.xlu0 %1081
        %v1083 = vadd.f32 %v1076, %v1077
        %v1084 = vadd.f32 %v1083, %v1078
        %1085 = vadd.xlane.f32.xlu0 %v1084
        %v1086 = vpop.xlane.xlu0 %1085
        %v1087 = vsel %vm680, %v1082, %v1086
        %vm1088 = vcmask 64512
        %v1090 = vsel %vm1088, %v468, 0
        %1092 = vmatpush.msra.mxu0 0.0
        %1093 = vmatpush.msra.mxu0 0.0
        %1094 = vmatpush.msra.mxu0 0.0
        %1095 = vmatpush.msra.mxu0 0.0
        %1096 = vmatpush.msra.mxu0 0.0
        %1097 = vmatpush.msra.mxu0 0.0
        %1098 = vmatpush.msra.mxu0 0.0
        %1099 = vmatpush.msra.mxu0 0.0
        %1100 = vmatpush.msra.mxu0 0.0
        %1101 = vmatpush.msra.mxu0 0.0
        %1102 = vmatpush.msra.mxu0 0.0
        %1103 = vmatpush.msra.mxu0 0.0
        %1104 = vmatpush.msra.mxu0 0.0
        %1105 = vmatpush.msra.mxu0 0.0
        %1106 = vmatpush.msra.mxu0 0.0
        %1107 = vmatpush.msra.mxu0 %v1087
        %1108 = vmatmul.f32.gmra.mxu0 %v1090
        %v1109 = vpop.f32.mrf.mxu0
        %v1110 = vadd.f32 0.0, %v1109
        %1111 = vdwg.mxu0
        %v1112 = vmul.f32 %v1110, 0.001953125
        %v1113 = vmul.f32 %v1112, %v1112
        %1115 = vrot.lane.b32.xlu0 %v1113, 1
        %v1116 = vpop.permute.xlu0 %1115
        %v1118 = vsub.f32 %v1112, %v1116
        %v1119 = vmax.f32 %v1118, 0.0
        %v1120 = vadd.f32 %v1119, 1e-05
        %v1121 = vrsqrt.pop %v1120
        %v1122 = vmul.f32 %v1121, %v1120
        %v1123 = vmul.f32 %v1122, %v1121
        %v1124 = vmul.f32 0.5, %v1123
        %v1125 = vsub.f32 1.5, %v1124
        %v1126 = vmul.f32 %v1121, %v1125
        %vm1127 = vweird.f32 %v1120
        %vm1128 = vweird.f32 %v1121
        %vm1129 = vmor %vm1127, %vm1128
        %v1130 = vsel %vm1129, %v1121, %v1126
        %1132 = vrot.lane.b32.xlu0 %v1130, 127
        %v1133 = vpop.permute.xlu0 %1132
        %v1135 = vmul.f32 %v462, %v1133
        %v1136 = vmul.f32 %v1112, %v1135
        %v1137 = vsub.f32 %v463, %v1136
        %1139 = vset.pattern.permute.xlu0 0
        %1140 = vperm.xlu0 %1139, %v1135
        %v1141 = vpop.permute.xlu0 %1140
        %v1143 = vmul.f32 %v1070, %v1141
        %v1144 = vmul.f32 %v1071, %v1141
        %v1145 = vmul.f32 %v1072, %v1141
        %1147 = vset.pattern.permute.xlu0 0
        %1148 = vperm.xlu0 %1147, %v1137
        %v1149 = vpop.permute.xlu0 %1148
        %v1151 = vadd.f32 %v1143, %v1149
        %v1152 = vadd.f32 %v1144, %v1149
        %v1153 = vadd.f32 %v1145, %v1149
        %v1154 = vadd.f32 %v471, %v1151
        %v1155 = vadd.f32 %v472, %v1152
        %v1156 = vadd.f32 %v473, %v1153
        %v1157 = vmax.f32 %v1154, 0.0
        %v1158 = vmax.f32 %v1155, 0.0
        %v1159 = vmax.f32 %v1156, 0.0
        %v1160 = vmul.f32 %v1157, %v646
        %v1161 = vmul.f32 %v1158, %v647
        %v1162 = vmul.f32 %v1159, %v648
        %v1163 = vmul.f32 %v1160, %v1157
        %v1164 = vmul.f32 %v1161, %v1158
        %v1165 = vmul.f32 %v1162, %v1159
        %v1166 = vadd.f32 %v1160, %v1161
        %v1167 = vadd.f32 %v1166, %v1162
        %1168 = vadd.xlane.f32.xlu0 %v1167
        %v1169 = vpop.xlane.xlu0 %1168
        %v1170 = vadd.f32 %v1163, %v1164
        %v1171 = vadd.f32 %v1170, %v1165
        %1172 = vadd.xlane.f32.xlu0 %v1171
        %v1173 = vpop.xlane.xlu0 %1172
        %v1174 = vsel %vm680, %v1169, %v1173
        %1175 = vmatpush.msra.mxu0 0.0
        %1176 = vmatpush.msra.mxu0 0.0
        %1177 = vmatpush.msra.mxu0 0.0
        %1178 = vmatpush.msra.mxu0 0.0
        %1179 = vmatpush.msra.mxu0 0.0
        %1180 = vmatpush.msra.mxu0 0.0
        %1181 = vmatpush.msra.mxu0 0.0
        %1182 = vmatpush.msra.mxu0 0.0
        %1183 = vmatpush.msra.mxu0 0.0
        %1184 = vmatpush.msra.mxu0 0.0
        %1185 = vmatpush.msra.mxu0 0.0
        %1186 = vmatpush.msra.mxu0 0.0
        %1187 = vmatpush.msra.mxu0 0.0
        %1188 = vmatpush.msra.mxu0 0.0
        %1189 = vmatpush.msra.mxu0 0.0
        %1190 = vmatpush.msra.mxu0 %v1174
        %1191 = vmatmul.f32.gmra.mxu0 %v1090
        %v1192 = vpop.f32.mrf.mxu0
        %v1193 = vadd.f32 0.0, %v1192
        %1194 = vdwg.mxu0
        %v1195 = vmul.f32 %v1193, 0.001953125
        %v1196 = vmul.f32 %v1195, %v1195
        %1198 = vrot.lane.b32.xlu0 %v1196, 1
        %v1199 = vpop.permute.xlu0 %1198
        %v1201 = vsub.f32 %v1195, %v1199
        %v1202 = vmax.f32 %v1201, 0.0
        %v1203 = vadd.f32 %v1202, 1e-05
        %v1204 = vrsqrt.pop %v1203
        %v1205 = vmul.f32 %v1204, %v1203
        %v1206 = vmul.f32 %v1205, %v1204
        %v1207 = vmul.f32 0.5, %v1206
        %v1208 = vsub.f32 1.5, %v1207
        %v1209 = vmul.f32 %v1204, %v1208
        %vm1210 = vweird.f32 %v1203
        %vm1211 = vweird.f32 %v1204
        %vm1212 = vmor %vm1210, %vm1211
        %v1213 = vsel %vm1212, %v1204, %v1209
        %1215 = vrot.lane.b32.xlu0 %v1213, 127
        %v1216 = vpop.permute.xlu0 %1215
        %v1218 = vmul.f32 %v464, %v1216
        %v1219 = vmul.f32 %v1195, %v1218
        %v1220 = vsub.f32 %v465, %v1219
        %1222 = vset.pattern.permute.xlu0 0
        %1223 = vperm.xlu0 %1222, %v1218
        %v1224 = vpop.permute.xlu0 %1223
        %v1226 = vmul.f32 %v1157, %v1224
        %v1227 = vmul.f32 %v1158, %v1224
        %v1228 = vmul.f32 %v1159, %v1224
        %1230 = vset.pattern.permute.xlu0 0
        %1231 = vperm.xlu0 %1230, %v1220
        %v1232 = vpop.permute.xlu0 %1231
        %v1234 = vadd.f32 %v1226, %v1232
        %v1235 = vadd.f32 %v1227, %v1232
        %v1236 = vadd.f32 %v1228, %v1232
        %v1237 = vmul.f32 %v1234, %v646
        %v1238 = vmul.f32 %v1235, %v647
        %v1239 = vmul.f32 %v1236, %v648
        %1240 = vrot.lane.b32.xlu0 %v1237, 19
        %v1241 = vpop.permute.xlu0 %1240
        %1242 = vrot.lane.b32.xlu0 %v1238, 19
        %v1243 = vpop.permute.xlu0 %1242
        %1244 = vrot.lane.b32.xlu0 %v1239, 19
        %v1245 = vpop.permute.xlu0 %1244
        %v1246 = vsel %vm489, %v1243, %v1245
        %v1247 = vsel %vm489, %v1241, %v1243
        %v1248 = vsel %vm489, %v1245, %v1241
        %1249 = vrot.lane.b32.xlu0 %v1237, 18
        %v1250 = vpop.permute.xlu0 %1249
        %1251 = vrot.lane.b32.xlu0 %v1238, 18
        %v1252 = vpop.permute.xlu0 %1251
        %1253 = vrot.lane.b32.xlu0 %v1239, 18
        %v1254 = vpop.permute.xlu0 %1253
        %v1255 = vsel %vm499, %v1252, %v1254
        %v1256 = vsel %vm499, %v1250, %v1252
        %v1257 = vsel %vm499, %v1254, %v1250
        %1258 = vrot.lane.b32.xlu0 %v1237, 17
        %v1259 = vpop.permute.xlu0 %1258
        %1260 = vrot.lane.b32.xlu0 %v1238, 17
        %v1261 = vpop.permute.xlu0 %1260
        %1262 = vrot.lane.b32.xlu0 %v1239, 17
        %v1263 = vpop.permute.xlu0 %1262
        %v1264 = vsel %vm509, %v1261, %v1263
        %v1265 = vsel %vm509, %v1259, %v1261
        %v1266 = vsel %vm509, %v1263, %v1259
        %1267 = vrot.lane.b32.xlu0 %v1237, 1
        %v1268 = vpop.permute.xlu0 %1267
        %1269 = vrot.lane.b32.xlu0 %v1238, 1
        %v1270 = vpop.permute.xlu0 %1269
        %1271 = vrot.lane.b32.xlu0 %v1239, 1
        %v1272 = vpop.permute.xlu0 %1271
        %v1273 = vsel %vm519, %v1270, %v1272
        %v1274 = vsel %vm519, %v1268, %v1270
        %v1275 = vsel %vm519, %v1272, %v1268
        %1276 = vrot.lane.b32.xlu0 %v1237, 127
        %v1277 = vpop.permute.xlu0 %1276
        %1278 = vrot.lane.b32.xlu0 %v1238, 127
        %v1279 = vpop.permute.xlu0 %1278
        %1280 = vrot.lane.b32.xlu0 %v1239, 127
        %v1281 = vpop.permute.xlu0 %1280
        %v1282 = vsel %vm529, %v1279, %v1281
        %v1283 = vsel %vm529, %v1277, %v1279
        %v1284 = vsel %vm529, %v1281, %v1277
        %1285 = vrot.lane.b32.xlu0 %v1237, 111
        %v1286 = vpop.permute.xlu0 %1285
        %1287 = vrot.lane.b32.xlu0 %v1238, 111
        %v1288 = vpop.permute.xlu0 %1287
        %1289 = vrot.lane.b32.xlu0 %v1239, 111
        %v1290 = vpop.permute.xlu0 %1289
        %v1291 = vsel %vm539, %v1288, %v1290
        %v1292 = vsel %vm539, %v1286, %v1288
        %v1293 = vsel %vm539, %v1290, %v1286
        %1294 = vrot.lane.b32.xlu0 %v1237, 110
        %v1295 = vpop.permute.xlu0 %1294
        %1296 = vrot.lane.b32.xlu0 %v1238, 110
        %v1297 = vpop.permute.xlu0 %1296
        %1298 = vrot.lane.b32.xlu0 %v1239, 110
        %v1299 = vpop.permute.xlu0 %1298
        %v1300 = vsel %vm549, %v1297, %v1299
        %v1301 = vsel %vm549, %v1295, %v1297
        %v1302 = vsel %vm549, %v1299, %v1295
        %1303 = vrot.lane.b32.xlu0 %v1237, 109
        %v1304 = vpop.permute.xlu0 %1303
        %1305 = vrot.lane.b32.xlu0 %v1238, 109
        %v1306 = vpop.permute.xlu0 %1305
        %1307 = vrot.lane.b32.xlu0 %v1239, 109
        %v1308 = vpop.permute.xlu0 %1307
        %v1309 = vsel %vm559, %v1306, %v1308
        %v1310 = vsel %vm559, %v1304, %v1306
        %v1311 = vsel %vm559, %v1308, %v1304
        %1312 = vmatpush.msra.mxu0 0.0
        %1313 = vmatpush.msra.mxu0 0.0
        %1314 = vmatpush.msra.mxu0 0.0
        %1315 = vmatpush.msra.mxu0 0.0
        %1316 = vmatpush.msra.mxu0 0.0
        %1317 = vmatpush.msra.mxu0 0.0
        %1318 = vmatpush.msra.mxu0 0.0
        %1319 = vmatpush.msra.mxu0 %v1310
        %1320 = vmatpush.msra.mxu0 %v1301
        %1321 = vmatpush.msra.mxu0 %v1292
        %1322 = vmatpush.msra.mxu0 %v1283
        %1323 = vmatpush.msra.mxu0 %v1237
        %1324 = vmatpush.msra.mxu0 %v1275
        %1325 = vmatpush.msra.mxu0 %v1266
        %1326 = vmatpush.msra.mxu0 %v1257
        %1327 = vmatpush.msra.mxu0 %v1248
        %1328 = vmatmul.f32.gmra.mxu0 %v565
        %v1329 = vpop.f32.mrf.mxu0
        %v1330 = vadd.f32 0.0, %v1329
        %1331 = vmatmul.f32.gmra.mxu0 %v568
        %v1332 = vpop.f32.mrf.mxu0
        %v1333 = vadd.f32 0.0, %v1332
        %1334 = vdwg.mxu0
        %1335 = vmatpush.msra.mxu0 0.0
        %1336 = vmatpush.msra.mxu0 0.0
        %1337 = vmatpush.msra.mxu0 0.0
        %1338 = vmatpush.msra.mxu0 0.0
        %1339 = vmatpush.msra.mxu0 0.0
        %1340 = vmatpush.msra.mxu0 0.0
        %1341 = vmatpush.msra.mxu0 0.0
        %1342 = vmatpush.msra.mxu0 %v1309
        %1343 = vmatpush.msra.mxu0 %v1300
        %1344 = vmatpush.msra.mxu0 %v1291
        %1345 = vmatpush.msra.mxu0 %v1282
        %1346 = vmatpush.msra.mxu0 %v1238
        %1347 = vmatpush.msra.mxu0 %v1274
        %1348 = vmatpush.msra.mxu0 %v1265
        %1349 = vmatpush.msra.mxu0 %v1256
        %1350 = vmatpush.msra.mxu0 %v1247
        %1351 = vmatmul.f32.gmra.mxu0 %v565
        %v1352 = vpop.f32.mrf.mxu0
        %v1353 = vadd.f32 0.0, %v1352
        %1354 = vmatmul.f32.gmra.mxu0 %v568
        %v1355 = vpop.f32.mrf.mxu0
        %v1356 = vadd.f32 0.0, %v1355
        %1357 = vdwg.mxu0
        %1358 = vmatpush.msra.mxu0 0.0
        %1359 = vmatpush.msra.mxu0 0.0
        %1360 = vmatpush.msra.mxu0 0.0
        %1361 = vmatpush.msra.mxu0 0.0
        %1362 = vmatpush.msra.mxu0 0.0
        %1363 = vmatpush.msra.mxu0 0.0
        %1364 = vmatpush.msra.mxu0 0.0
        %1365 = vmatpush.msra.mxu0 %v1311
        %1366 = vmatpush.msra.mxu0 %v1302
        %1367 = vmatpush.msra.mxu0 %v1293
        %1368 = vmatpush.msra.mxu0 %v1284
        %1369 = vmatpush.msra.mxu0 %v1239
        %1370 = vmatpush.msra.mxu0 %v1273
        %1371 = vmatpush.msra.mxu0 %v1264
        %1372 = vmatpush.msra.mxu0 %v1255
        %1373 = vmatpush.msra.mxu0 %v1246
        %1374 = vmatmul.f32.gmra.mxu0 %v565
        %v1375 = vpop.f32.mrf.mxu0
        %v1376 = vadd.f32 0.0, %v1375
        %1377 = vmatmul.f32.gmra.mxu0 %v568
        %v1378 = vpop.f32.mrf.mxu0
        %v1379 = vadd.f32 0.0, %v1378
        %1380 = vdwg.mxu0
        %v1381 = vmax.f32 %v1330, 0.0
        %v1382 = vmax.f32 %v1353, 0.0
        %v1383 = vmax.f32 %v1376, 0.0
        %v1384 = vmax.f32 %v1333, 0.0
        %v1385 = vmax.f32 %v1356, 0.0
        %v1386 = vmax.f32 %v1379, 0.0
        %v1387 = vmul.f32 %v1381, %v646
        %v1388 = vmul.f32 %v1382, %v647
        %v1389 = vmul.f32 %v1383, %v648
        %v1390 = vmul.f32 %v1384, %v646
        %v1391 = vmul.f32 %v1385, %v647
        %v1392 = vmul.f32 %v1386, %v648
        %v1393 = vmul.f32 %v1387, %v1381
        %v1394 = vmul.f32 %v1388, %v1382
        %v1395 = vmul.f32 %v1389, %v1383
        %v1396 = vmul.f32 %v1390, %v1384
        %v1397 = vmul.f32 %v1391, %v1385
        %v1398 = vmul.f32 %v1392, %v1386
        %v1399 = vadd.f32 %v1387, %v1388
        %v1400 = vadd.f32 %v1399, %v1389
        %1401 = vadd.xlane.f32.xlu0 %v1400
        %v1402 = vpop.xlane.xlu0 %1401
        %v1403 = vadd.f32 %v1390, %v1391
        %v1404 = vadd.f32 %v1403, %v1392
        %1405 = vadd.xlane.f32.xlu0 %v1404
        %v1406 = vpop.xlane.xlu0 %1405
        %v1407 = vadd.f32 %v1393, %v1394
        %v1408 = vadd.f32 %v1407, %v1395
        %1409 = vadd.xlane.f32.xlu0 %v1408
        %v1410 = vpop.xlane.xlu0 %1409
        %v1411 = vadd.f32 %v1396, %v1397
        %v1412 = vadd.f32 %v1411, %v1398
        %1413 = vadd.xlane.f32.xlu0 %v1412
        %v1414 = vpop.xlane.xlu0 %1413
        %v1415 = vsel %vm680, %v1402, %v1410
        %v1416 = vsel %vm680, %v1406, %v1414
        %1417 = vmatpush.msra.mxu0 0.0
        %1418 = vmatpush.msra.mxu0 0.0
        %1419 = vmatpush.msra.mxu0 0.0
        %1420 = vmatpush.msra.mxu0 0.0
        %1421 = vmatpush.msra.mxu0 0.0
        %1422 = vmatpush.msra.mxu0 0.0
        %1423 = vmatpush.msra.mxu0 0.0
        %1424 = vmatpush.msra.mxu0 0.0
        %1425 = vmatpush.msra.mxu0 0.0
        %1426 = vmatpush.msra.mxu0 0.0
        %1427 = vmatpush.msra.mxu0 0.0
        %1428 = vmatpush.msra.mxu0 0.0
        %1429 = vmatpush.msra.mxu0 0.0
        %1430 = vmatpush.msra.mxu0 0.0
        %1431 = vmatpush.msra.mxu0 %v1416
        %1432 = vmatpush.msra.mxu0 %v1415
        %1433 = vmatmul.f32.gmra.mxu0 %v685
        %v1434 = vpop.f32.mrf.mxu0
        %v1435 = vadd.f32 0.0, %v1434
        %1436 = vmatmul.f32.gmra.mxu0 %v688
        %v1437 = vpop.f32.mrf.mxu0
        %v1438 = vadd.f32 0.0, %v1437
        %1439 = vdwg.mxu0
        %v1440 = vmul.f32 %v1435, 0.0009765625
        %v1441 = vmul.f32 %v1438, 0.0009765625
        %v1442 = vmul.f32 %v1440, %v1440
        %v1443 = vmul.f32 %v1441, %v1441
        %1446 = vrot.lane.b32.xlu0 %v1442, 1
        %v1447 = vpop.permute.xlu0 %1446
        %1448 = vrot.lane.b32.xlu0 %v1443, 1
        %v1449 = vpop.permute.xlu0 %1448
        %v1452 = vsub.f32 %v1440, %v1447
        %v1453 = vsub.f32 %v1441, %v1449
        %v1454 = vmax.f32 %v1452, 0.0
        %v1455 = vmax.f32 %v1453, 0.0
        %v1456 = vadd.f32 %v1454, 1e-05
        %v1457 = vadd.f32 %v1455, 1e-05
        %v1458 = vrsqrt.pop %v1456
        %v1459 = vmul.f32 %v1458, %v1456
        %v1460 = vmul.f32 %v1459, %v1458
        %v1461 = vmul.f32 0.5, %v1460
        %v1462 = vsub.f32 1.5, %v1461
        %v1463 = vmul.f32 %v1458, %v1462
        %vm1464 = vweird.f32 %v1456
        %vm1465 = vweird.f32 %v1458
        %vm1466 = vmor %vm1464, %vm1465
        %v1467 = vsel %vm1466, %v1458, %v1463
        %v1468 = vrsqrt.pop %v1457
        %v1469 = vmul.f32 %v1468, %v1457
        %v1470 = vmul.f32 %v1469, %v1468
        %v1471 = vmul.f32 0.5, %v1470
        %v1472 = vsub.f32 1.5, %v1471
        %v1473 = vmul.f32 %v1468, %v1472
        %vm1474 = vweird.f32 %v1457
        %vm1475 = vweird.f32 %v1468
        %vm1476 = vmor %vm1474, %vm1475
        %v1477 = vsel %vm1476, %v1468, %v1473
        %1480 = vrot.lane.b32.xlu0 %v1467, 127
        %v1481 = vpop.permute.xlu0 %1480
        %1482 = vrot.lane.b32.xlu0 %v1477, 127
        %v1483 = vpop.permute.xlu0 %1482
        %v1486 = vmul.f32 %v458, %v1481
        %v1487 = vmul.f32 %v459, %v1483
        %v1488 = vmul.f32 %v1440, %v1486
        %v1489 = vmul.f32 %v1441, %v1487
        %v1490 = vsub.f32 %v460, %v1488
        %v1491 = vsub.f32 %v461, %v1489
        %1493 = vset.pattern.permute.xlu0 0
        %1494 = vperm.xlu0 %1493, %v1486
        %v1495 = vpop.permute.xlu0 %1494
        %1498 = vset.pattern.permute.xlu0 0
        %1499 = vperm.xlu0 %1498, %v1487
        %v1500 = vpop.permute.xlu0 %1499
        %v1502 = vmul.f32 %v1381, %v1495
        %v1503 = vmul.f32 %v1382, %v1495
        %v1504 = vmul.f32 %v1383, %v1495
        %v1505 = vmul.f32 %v1384, %v1500
        %v1506 = vmul.f32 %v1385, %v1500
        %v1507 = vmul.f32 %v1386, %v1500
        %1509 = vset.pattern.permute.xlu0 0
        %1510 = vperm.xlu0 %1509, %v1490
        %v1511 = vpop.permute.xlu0 %1510
        %1514 = vset.pattern.permute.xlu0 0
        %1515 = vperm.xlu0 %1514, %v1491
        %v1516 = vpop.permute.xlu0 %1515
        %v1518 = vadd.f32 %v1502, %v1511
        %v1519 = vadd.f32 %v1503, %v1511
        %v1520 = vadd.f32 %v1504, %v1511
        %v1521 = vadd.f32 %v1505, %v1516
        %v1522 = vadd.f32 %v1506, %v1516
        %v1523 = vadd.f32 %v1507, %v1516
        %v1524 = vmul.f32 %v1518, %v646
        %v1525 = vmul.f32 %v1519, %v647
        %v1526 = vmul.f32 %v1520, %v648
        %v1527 = vmul.f32 %v1521, %v646
        %v1528 = vmul.f32 %v1522, %v647
        %v1529 = vmul.f32 %v1523, %v648
        %1530 = vrot.lane.b32.xlu0 %v1524, 19
        %v1531 = vpop.permute.xlu0 %1530
        %1532 = vrot.lane.b32.xlu0 %v1527, 19
        %v1533 = vpop.permute.xlu0 %1532
        %1534 = vrot.lane.b32.xlu0 %v1525, 19
        %v1535 = vpop.permute.xlu0 %1534
        %1536 = vrot.lane.b32.xlu0 %v1528, 19
        %v1537 = vpop.permute.xlu0 %1536
        %1538 = vrot.lane.b32.xlu0 %v1526, 19
        %v1539 = vpop.permute.xlu0 %1538
        %1540 = vrot.lane.b32.xlu0 %v1529, 19
        %v1541 = vpop.permute.xlu0 %1540
        %v1542 = vsel %vm489, %v1535, %v1539
        %v1543 = vsel %vm489, %v1537, %v1541
        %v1544 = vsel %vm489, %v1531, %v1535
        %v1545 = vsel %vm489, %v1533, %v1537
        %v1546 = vsel %vm489, %v1539, %v1531
        %v1547 = vsel %vm489, %v1541, %v1533
        %1548 = vrot.lane.b32.xlu0 %v1524, 18
        %v1549 = vpop.permute.xlu0 %1548
        %1550 = vrot.lane.b32.xlu0 %v1527, 18
        %v1551 = vpop.permute.xlu0 %1550
        %1552 = vrot.lane.b32.xlu0 %v1525, 18
        %v1553 = vpop.permute.xlu0 %1552
        %1554 = vrot.lane.b32.xlu0 %v1528, 18
        %v1555 = vpop.permute.xlu0 %1554
        %1556 = vrot.lane.b32.xlu0 %v1526, 18
        %v1557 = vpop.permute.xlu0 %1556
        %1558 = vrot.lane.b32.xlu0 %v1529, 18
        %v1559 = vpop.permute.xlu0 %1558
        %v1560 = vsel %vm499, %v1553, %v1557
        %v1561 = vsel %vm499, %v1555, %v1559
        %v1562 = vsel %vm499, %v1549, %v1553
        %v1563 = vsel %vm499, %v1551, %v1555
        %v1564 = vsel %vm499, %v1557, %v1549
        %v1565 = vsel %vm499, %v1559, %v1551
        %1566 = vrot.lane.b32.xlu0 %v1524, 17
        %v1567 = vpop.permute.xlu0 %1566
        %1568 = vrot.lane.b32.xlu0 %v1527, 17
        %v1569 = vpop.permute.xlu0 %1568
        %1570 = vrot.lane.b32.xlu0 %v1525, 17
        %v1571 = vpop.permute.xlu0 %1570
        %1572 = vrot.lane.b32.xlu0 %v1528, 17
        %v1573 = vpop.permute.xlu0 %1572
        %1574 = vrot.lane.b32.xlu0 %v1526, 17
        %v1575 = vpop.permute.xlu0 %1574
        %1576 = vrot.lane.b32.xlu0 %v1529, 17
        %v1577 = vpop.permute.xlu0 %1576
        %v1578 = vsel %vm509, %v1571, %v1575
        %v1579 = vsel %vm509, %v1573, %v1577
        %v1580 = vsel %vm509, %v1567, %v1571
        %v1581 = vsel %vm509, %v1569, %v1573
        %v1582 = vsel %vm509, %v1575, %v1567
        %v1583 = vsel %vm509, %v1577, %v1569
        %1584 = vrot.lane.b32.xlu0 %v1524, 1
        %v1585 = vpop.permute.xlu0 %1584
        %1586 = vrot.lane.b32.xlu0 %v1527, 1
        %v1587 = vpop.permute.xlu0 %1586
        %1588 = vrot.lane.b32.xlu0 %v1525, 1
        %v1589 = vpop.permute.xlu0 %1588
        %1590 = vrot.lane.b32.xlu0 %v1528, 1
        %v1591 = vpop.permute.xlu0 %1590
        %1592 = vrot.lane.b32.xlu0 %v1526, 1
        %v1593 = vpop.permute.xlu0 %1592
        %1594 = vrot.lane.b32.xlu0 %v1529, 1
        %v1595 = vpop.permute.xlu0 %1594
        %v1596 = vsel %vm519, %v1589, %v1593
        %v1597 = vsel %vm519, %v1591, %v1595
        %v1598 = vsel %vm519, %v1585, %v1589
        %v1599 = vsel %vm519, %v1587, %v1591
        %v1600 = vsel %vm519, %v1593, %v1585
        %v1601 = vsel %vm519, %v1595, %v1587
        %1602 = vrot.lane.b32.xlu0 %v1524, 127
        %v1603 = vpop.permute.xlu0 %1602
        %1604 = vrot.lane.b32.xlu0 %v1527, 127
        %v1605 = vpop.permute.xlu0 %1604
        %1606 = vrot.lane.b32.xlu0 %v1525, 127
        %v1607 = vpop.permute.xlu0 %1606
        %1608 = vrot.lane.b32.xlu0 %v1528, 127
        %v1609 = vpop.permute.xlu0 %1608
        %1610 = vrot.lane.b32.xlu0 %v1526, 127
        %v1611 = vpop.permute.xlu0 %1610
        %1612 = vrot.lane.b32.xlu0 %v1529, 127
        %v1613 = vpop.permute.xlu0 %1612
        %v1614 = vsel %vm529, %v1607, %v1611
        %v1615 = vsel %vm529, %v1609, %v1613
        %v1616 = vsel %vm529, %v1603, %v1607
        %v1617 = vsel %vm529, %v1605, %v1609
        %v1618 = vsel %vm529, %v1611, %v1603
        %v1619 = vsel %vm529, %v1613, %v1605
        %1620 = vrot.lane.b32.xlu0 %v1524, 111
        %v1621 = vpop.permute.xlu0 %1620
        %1622 = vrot.lane.b32.xlu0 %v1527, 111
        %v1623 = vpop.permute.xlu0 %1622
        %1624 = vrot.lane.b32.xlu0 %v1525, 111
        %v1625 = vpop.permute.xlu0 %1624
        %1626 = vrot.lane.b32.xlu0 %v1528, 111
        %v1627 = vpop.permute.xlu0 %1626
        %1628 = vrot.lane.b32.xlu0 %v1526, 111
        %v1629 = vpop.permute.xlu0 %1628
        %1630 = vrot.lane.b32.xlu0 %v1529, 111
        %v1631 = vpop.permute.xlu0 %1630
        %v1632 = vsel %vm539, %v1625, %v1629
        %v1633 = vsel %vm539, %v1627, %v1631
        %v1634 = vsel %vm539, %v1621, %v1625
        %v1635 = vsel %vm539, %v1623, %v1627
        %v1636 = vsel %vm539, %v1629, %v1621
        %v1637 = vsel %vm539, %v1631, %v1623
        %1638 = vrot.lane.b32.xlu0 %v1524, 110
        %v1639 = vpop.permute.xlu0 %1638
        %1640 = vrot.lane.b32.xlu0 %v1527, 110
        %v1641 = vpop.permute.xlu0 %1640
        %1642 = vrot.lane.b32.xlu0 %v1525, 110
        %v1643 = vpop.permute.xlu0 %1642
        %1644 = vrot.lane.b32.xlu0 %v1528, 110
        %v1645 = vpop.permute.xlu0 %1644
        %1646 = vrot.lane.b32.xlu0 %v1526, 110
        %v1647 = vpop.permute.xlu0 %1646
        %1648 = vrot.lane.b32.xlu0 %v1529, 110
        %v1649 = vpop.permute.xlu0 %1648
        %v1650 = vsel %vm549, %v1643, %v1647
        %v1651 = vsel %vm549, %v1645, %v1649
        %v1652 = vsel %vm549, %v1639, %v1643
        %v1653 = vsel %vm549, %v1641, %v1645
        %v1654 = vsel %vm549, %v1647, %v1639
        %v1655 = vsel %vm549, %v1649, %v1641
        %1656 = vrot.lane.b32.xlu0 %v1524, 109
        %v1657 = vpop.permute.xlu0 %1656
        %1658 = vrot.lane.b32.xlu0 %v1527, 109
        %v1659 = vpop.permute.xlu0 %1658
        %1660 = vrot.lane.b32.xlu0 %v1525, 109
        %v1661 = vpop.permute.xlu0 %1660
        %1662 = vrot.lane.b32.xlu0 %v1528, 109
        %v1663 = vpop.permute.xlu0 %1662
        %1664 = vrot.lane.b32.xlu0 %v1526, 109
        %v1665 = vpop.permute.xlu0 %1664
        %1666 = vrot.lane.b32.xlu0 %v1529, 109
        %v1667 = vpop.permute.xlu0 %1666
        %v1668 = vsel %vm559, %v1661, %v1665
        %v1669 = vsel %vm559, %v1663, %v1667
        %v1670 = vsel %vm559, %v1657, %v1661
        %v1671 = vsel %vm559, %v1659, %v1663
        %v1672 = vsel %vm559, %v1665, %v1657
        %v1673 = vsel %vm559, %v1667, %v1659
        %1674 = vmatpush.msra.mxu0 %v1653
        %1675 = vmatpush.msra.mxu0 %v1652
        %1676 = vmatpush.msra.mxu0 %v1635
        %1677 = vmatpush.msra.mxu0 %v1634
        %1678 = vmatpush.msra.mxu0 %v1617
        %1679 = vmatpush.msra.mxu0 %v1616
        %1680 = vmatpush.msra.mxu0 %v1527
        %1681 = vmatpush.msra.mxu0 %v1524
        %1682 = vmatpush.msra.mxu0 %v1601
        %1683 = vmatpush.msra.mxu0 %v1600
        %1684 = vmatpush.msra.mxu0 %v1583
        %1685 = vmatpush.msra.mxu0 %v1582
        %1686 = vmatpush.msra.mxu0 %v1565
        %1687 = vmatpush.msra.mxu0 %v1564
        %1688 = vmatpush.msra.mxu0 %v1547
        %1689 = vmatpush.msra.mxu0 %v1546
        %1690 = vmatmul.f32.gmra.mxu0 %v456
        %v1691 = vpop.f32.mrf.mxu0
        %v1692 = vadd.f32 0.0, %v1691
        %1693 = vdwg.mxu0
        %1694 = vmatpush.msra.mxu0 0.0
        %1695 = vmatpush.msra.mxu0 0.0
        %1696 = vmatpush.msra.mxu0 0.0
        %1697 = vmatpush.msra.mxu0 0.0
        %1698 = vmatpush.msra.mxu0 0.0
        %1699 = vmatpush.msra.mxu0 0.0
        %1700 = vmatpush.msra.mxu0 0.0
        %1701 = vmatpush.msra.mxu0 0.0
        %1702 = vmatpush.msra.mxu0 0.0
        %1703 = vmatpush.msra.mxu0 0.0
        %1704 = vmatpush.msra.mxu0 0.0
        %1705 = vmatpush.msra.mxu0 0.0
        %1706 = vmatpush.msra.mxu0 0.0
        %1707 = vmatpush.msra.mxu0 0.0
        %1708 = vmatpush.msra.mxu0 %v1671
        %1709 = vmatpush.msra.mxu0 %v1670
        %1710 = vmatmul.f32.gmra.mxu0 %v948
        %v1711 = vpop.f32.mrf.mxu0
        %v1712 = vadd.f32 %v1692, %v1711
        %1713 = vdwg.mxu0
        %1714 = vmatpush.msra.mxu0 %v1651
        %1715 = vmatpush.msra.mxu0 %v1650
        %1716 = vmatpush.msra.mxu0 %v1633
        %1717 = vmatpush.msra.mxu0 %v1632
        %1718 = vmatpush.msra.mxu0 %v1615
        %1719 = vmatpush.msra.mxu0 %v1614
        %1720 = vmatpush.msra.mxu0 %v1528
        %1721 = vmatpush.msra.mxu0 %v1525
        %1722 = vmatpush.msra.mxu0 %v1599
        %1723 = vmatpush.msra.mxu0 %v1598
        %1724 = vmatpush.msra.mxu0 %v1581
        %1725 = vmatpush.msra.mxu0 %v1580
        %1726 = vmatpush.msra.mxu0 %v1563
        %1727 = vmatpush.msra.mxu0 %v1562
        %1728 = vmatpush.msra.mxu0 %v1545
        %1729 = vmatpush.msra.mxu0 %v1544
        %1730 = vmatmul.f32.gmra.mxu0 %v456
        %v1731 = vpop.f32.mrf.mxu0
        %v1732 = vadd.f32 0.0, %v1731
        %1733 = vdwg.mxu0
        %1734 = vmatpush.msra.mxu0 0.0
        %1735 = vmatpush.msra.mxu0 0.0
        %1736 = vmatpush.msra.mxu0 0.0
        %1737 = vmatpush.msra.mxu0 0.0
        %1738 = vmatpush.msra.mxu0 0.0
        %1739 = vmatpush.msra.mxu0 0.0
        %1740 = vmatpush.msra.mxu0 0.0
        %1741 = vmatpush.msra.mxu0 0.0
        %1742 = vmatpush.msra.mxu0 0.0
        %1743 = vmatpush.msra.mxu0 0.0
        %1744 = vmatpush.msra.mxu0 0.0
        %1745 = vmatpush.msra.mxu0 0.0
        %1746 = vmatpush.msra.mxu0 0.0
        %1747 = vmatpush.msra.mxu0 0.0
        %1748 = vmatpush.msra.mxu0 %v1669
        %1749 = vmatpush.msra.mxu0 %v1668
        %1750 = vmatmul.f32.gmra.mxu0 %v948
        %v1751 = vpop.f32.mrf.mxu0
        %v1752 = vadd.f32 %v1732, %v1751
        %1753 = vdwg.mxu0
        %1754 = vmatpush.msra.mxu0 %v1655
        %1755 = vmatpush.msra.mxu0 %v1654
        %1756 = vmatpush.msra.mxu0 %v1637
        %1757 = vmatpush.msra.mxu0 %v1636
        %1758 = vmatpush.msra.mxu0 %v1619
        %1759 = vmatpush.msra.mxu0 %v1618
        %1760 = vmatpush.msra.mxu0 %v1529
        %1761 = vmatpush.msra.mxu0 %v1526
        %1762 = vmatpush.msra.mxu0 %v1597
        %1763 = vmatpush.msra.mxu0 %v1596
        %1764 = vmatpush.msra.mxu0 %v1579
        %1765 = vmatpush.msra.mxu0 %v1578
        %1766 = vmatpush.msra.mxu0 %v1561
        %1767 = vmatpush.msra.mxu0 %v1560
        %1768 = vmatpush.msra.mxu0 %v1543
        %1769 = vmatpush.msra.mxu0 %v1542
        %1770 = vmatmul.f32.gmra.mxu0 %v456
        %v1771 = vpop.f32.mrf.mxu0
        %v1772 = vadd.f32 0.0, %v1771
        %1773 = vdwg.mxu0
        %1774 = vmatpush.msra.mxu0 0.0
        %1775 = vmatpush.msra.mxu0 0.0
        %1776 = vmatpush.msra.mxu0 0.0
        %1777 = vmatpush.msra.mxu0 0.0
        %1778 = vmatpush.msra.mxu0 0.0
        %1779 = vmatpush.msra.mxu0 0.0
        %1780 = vmatpush.msra.mxu0 0.0
        %1781 = vmatpush.msra.mxu0 0.0
        %1782 = vmatpush.msra.mxu0 0.0
        %1783 = vmatpush.msra.mxu0 0.0
        %1784 = vmatpush.msra.mxu0 0.0
        %1785 = vmatpush.msra.mxu0 0.0
        %1786 = vmatpush.msra.mxu0 0.0
        %1787 = vmatpush.msra.mxu0 0.0
        %1788 = vmatpush.msra.mxu0 %v1673
        %1789 = vmatpush.msra.mxu0 %v1672
        %1790 = vmatmul.f32.gmra.mxu0 %v948
        %v1791 = vpop.f32.mrf.mxu0
        %v1792 = vadd.f32 %v1772, %v1791
        %1793 = vdwg.mxu0
        %v1794 = vadd.f32 %v450, %v1712
        %v1795 = vadd.f32 %v451, %v1752
        %v1796 = vadd.f32 %v452, %v1792
        %v1797 = vmul.f32 %v1794, %v646
        %v1798 = vmul.f32 %v1795, %v647
        %v1799 = vmul.f32 %v1796, %v648
        %v1800 = vmul.f32 %v1797, %v1794
        %v1801 = vmul.f32 %v1798, %v1795
        %v1802 = vmul.f32 %v1799, %v1796
        %v1803 = vadd.f32 %v1797, %v1798
        %v1804 = vadd.f32 %v1803, %v1799
        %1805 = vadd.xlane.f32.xlu0 %v1804
        %v1806 = vpop.xlane.xlu0 %1805
        %v1807 = vadd.f32 %v1800, %v1801
        %v1808 = vadd.f32 %v1807, %v1802
        %1809 = vadd.xlane.f32.xlu0 %v1808
        %v1810 = vpop.xlane.xlu0 %1809
        %v1811 = vsel %vm680, %v1806, %v1810
        %1812 = vmatpush.msra.mxu0 0.0
        %1813 = vmatpush.msra.mxu0 0.0
        %1814 = vmatpush.msra.mxu0 0.0
        %1815 = vmatpush.msra.mxu0 0.0
        %1816 = vmatpush.msra.mxu0 0.0
        %1817 = vmatpush.msra.mxu0 0.0
        %1818 = vmatpush.msra.mxu0 0.0
        %1819 = vmatpush.msra.mxu0 0.0
        %1820 = vmatpush.msra.mxu0 0.0
        %1821 = vmatpush.msra.mxu0 0.0
        %1822 = vmatpush.msra.mxu0 0.0
        %1823 = vmatpush.msra.mxu0 0.0
        %1824 = vmatpush.msra.mxu0 0.0
        %1825 = vmatpush.msra.mxu0 0.0
        %1826 = vmatpush.msra.mxu0 0.0
        %1827 = vmatpush.msra.mxu0 %v1811
        %1828 = vmatmul.f32.gmra.mxu0 %v1090
        %v1829 = vpop.f32.mrf.mxu0
        %v1830 = vadd.f32 0.0, %v1829
        %1831 = vdwg.mxu0
        %v1832 = vmul.f32 %v1830, 0.001953125
        %v1833 = vmul.f32 %v1832, %v1832
        %1835 = vrot.lane.b32.xlu0 %v1833, 1
        %v1836 = vpop.permute.xlu0 %1835
        %v1838 = vsub.f32 %v1832, %v1836
        %v1839 = vmax.f32 %v1838, 0.0
        %v1840 = vadd.f32 %v1839, 1e-05
        %v1841 = vrsqrt.pop %v1840
        %v1842 = vmul.f32 %v1841, %v1840
        %v1843 = vmul.f32 %v1842, %v1841
        %v1844 = vmul.f32 0.5, %v1843
        %v1845 = vsub.f32 1.5, %v1844
        %v1846 = vmul.f32 %v1841, %v1845
        %vm1847 = vweird.f32 %v1840
        %vm1848 = vweird.f32 %v1841
        %vm1849 = vmor %vm1847, %vm1848
        %v1850 = vsel %vm1849, %v1841, %v1846
        %1852 = vrot.lane.b32.xlu0 %v1850, 127
        %v1853 = vpop.permute.xlu0 %1852
        %v1855 = vmul.f32 %v462, %v1853
        %v1856 = vmul.f32 %v1832, %v1855
        %v1857 = vsub.f32 %v463, %v1856
        %1859 = vset.pattern.permute.xlu0 0
        %1860 = vperm.xlu0 %1859, %v1855
        %v1861 = vpop.permute.xlu0 %1860
        %v1863 = vmul.f32 %v1794, %v1861
        %v1864 = vmul.f32 %v1795, %v1861
        %v1865 = vmul.f32 %v1796, %v1861
        %1867 = vset.pattern.permute.xlu0 0
        %1868 = vperm.xlu0 %1867, %v1857
        %v1869 = vpop.permute.xlu0 %1868
        %v1871 = vadd.f32 %v1863, %v1869
        %v1872 = vadd.f32 %v1864, %v1869
        %v1873 = vadd.f32 %v1865, %v1869
        %v1874 = vadd.f32 %v1237, %v1871
        %v1875 = vadd.f32 %v1238, %v1872
        %v1876 = vadd.f32 %v1239, %v1873
        %v1877 = vmax.f32 %v1874, 0.0
        %v1878 = vmax.f32 %v1875, 0.0
        %v1879 = vmax.f32 %v1876, 0.0
        %v1880 = vmul.f32 %v1877, %v646
        %v1881 = vmul.f32 %v1878, %v647
        %v1882 = vmul.f32 %v1879, %v648
        %v1883 = vmul.f32 %v1880, %v1877
        %v1884 = vmul.f32 %v1881, %v1878
        %v1885 = vmul.f32 %v1882, %v1879
        %v1886 = vadd.f32 %v1880, %v1881
        %v1887 = vadd.f32 %v1886, %v1882
        %1888 = vadd.xlane.f32.xlu0 %v1887
        %v1889 = vpop.xlane.xlu0 %1888
        %v1890 = vadd.f32 %v1883, %v1884
        %v1891 = vadd.f32 %v1890, %v1885
        %1892 = vadd.xlane.f32.xlu0 %v1891
        %v1893 = vpop.xlane.xlu0 %1892
        %v1894 = vsel %vm680, %v1889, %v1893
        %1895 = vmatpush.msra.mxu0 0.0
        %1896 = vmatpush.msra.mxu0 0.0
        %1897 = vmatpush.msra.mxu0 0.0
        %1898 = vmatpush.msra.mxu0 0.0
        %1899 = vmatpush.msra.mxu0 0.0
        %1900 = vmatpush.msra.mxu0 0.0
        %1901 = vmatpush.msra.mxu0 0.0
        %1902 = vmatpush.msra.mxu0 0.0
        %1903 = vmatpush.msra.mxu0 0.0
        %1904 = vmatpush.msra.mxu0 0.0
        %1905 = vmatpush.msra.mxu0 0.0
        %1906 = vmatpush.msra.mxu0 0.0
        %1907 = vmatpush.msra.mxu0 0.0
        %1908 = vmatpush.msra.mxu0 0.0
        %1909 = vmatpush.msra.mxu0 0.0
        %1910 = vmatpush.msra.mxu0 %v1894
        %1911 = vmatmul.f32.gmra.mxu0 %v1090
        %v1912 = vpop.f32.mrf.mxu0
        %v1913 = vadd.f32 0.0, %v1912
        %1914 = vdwg.mxu0
        %v1915 = vmul.f32 %v1913, 0.001953125
        %v1916 = vmul.f32 %v1915, %v1915
        %1918 = vrot.lane.b32.xlu0 %v1916, 1
        %v1919 = vpop.permute.xlu0 %1918
        %v1921 = vsub.f32 %v1915, %v1919
        %v1922 = vmax.f32 %v1921, 0.0
        %v1923 = vadd.f32 %v1922, 1e-05
        %v1924 = vrsqrt.pop %v1923
        %v1925 = vmul.f32 %v1924, %v1923
        %v1926 = vmul.f32 %v1925, %v1924
        %v1927 = vmul.f32 0.5, %v1926
        %v1928 = vsub.f32 1.5, %v1927
        %v1929 = vmul.f32 %v1924, %v1928
        %vm1930 = vweird.f32 %v1923
        %vm1931 = vweird.f32 %v1924
        %vm1932 = vmor %vm1930, %vm1931
        %v1933 = vsel %vm1932, %v1924, %v1929
        %1935 = vrot.lane.b32.xlu0 %v1933, 127
        %v1936 = vpop.permute.xlu0 %1935
        %v1938 = vmul.f32 %v464, %v1936
        %v1939 = vmul.f32 %v1915, %v1938
        %v1940 = vsub.f32 %v465, %v1939
        %1942 = vset.pattern.permute.xlu0 0
        %1943 = vperm.xlu0 %1942, %v1938
        %v1944 = vpop.permute.xlu0 %1943
        %v1946 = vmul.f32 %v1877, %v1944
        %v1947 = vmul.f32 %v1878, %v1944
        %v1948 = vmul.f32 %v1879, %v1944
        %1950 = vset.pattern.permute.xlu0 0
        %1951 = vperm.xlu0 %1950, %v1940
        %v1952 = vpop.permute.xlu0 %1951
        %v1954 = vadd.f32 %v1946, %v1952
        %v1955 = vadd.f32 %v1947, %v1952
        %v1956 = vadd.f32 %v1948, %v1952
        %v1957 = vmul.f32 %v1954, %v646
        %v1958 = vmul.f32 %v1955, %v647
        %v1959 = vmul.f32 %v1956, %v648
        %s1960 = sadd.s32 %s470, 2
        %v1961 = vsub.f32 %v1957, %v1237
        %v1962 = vsub.f32 %v1958, %v1238
        %v1963 = vsub.f32 %v1959, %v1239
        %v1964 = vmul.f32 %v1961, %v1961
        %v1965 = vmul.f32 %v1962, %v1962
        %v1966 = vmul.f32 %v1963, %v1963
        %v1967 = vmul.f32 %v1957, %v1957
        %v1968 = vmul.f32 %v1958, %v1958
        %v1969 = vmul.f32 %v1959, %v1959
        %v1970 = vadd.f32 %v1964, %v1965
        %v1971 = vadd.f32 %v1970, %v1966
        %1972 = vadd.xlane.f32.xlu0 %v1971
        %v1973 = vpop.xlane.xlu0 %1972
        %v1974 = vadd.f32 %v1967, %v1968
        %v1975 = vadd.f32 %v1974, %v1969
        %1976 = vadd.xlane.f32.xlu0 %v1975
        %v1977 = vpop.xlane.xlu0 %1976
        %v1978 = vsel %vm680, %v1973, 0.0
        %1979 = vadd.xlane.f32.xlu0 %v1978
        %v1980 = vpop.xlane.xlu0 %1979
        %v1981 = vrot.slane %v1980, 4
        %v1982 = vadd.f32 %v1980, %v1981
        %v1983 = vrot.slane %v1982, 2
        %v1984 = vadd.f32 %v1982, %v1983
        %v1985 = vrot.slane %v1984, 1
        %v1986 = vadd.f32 %v1984, %v1985
        %s1987 = vtos %v1986
        %v1988 = vstv %s1987
        %v1989 = vrsqrt.pop %v1988
        %v1990 = vmul.f32 %v1989, %v1988
        %v1991 = vmul.f32 %v1990, %v1989
        %v1992 = vmul.f32 0.5, %v1991
        %v1993 = vsub.f32 1.5, %v1992
        %v1994 = vmul.f32 %v1989, %v1993
        %v1995 = vmul.f32 %v1988, %v1994
        %vm1996 = vcmp.eq.f32.partialorder %v1988, inf
        %v1997 = vsel %vm1996, %v1988, %v1995
        %vm1998 = vcmp.eq.f32.partialorder %v1988, 0.0
        %v1999 = vand.u32 %v1988, 2147483648
        %v2000 = vsel %vm1998, %v1999, %v1997
        %s2001 = vtos %v2000
        %v2002 = vsel %vm680, %v1977, 0.0
        %2003 = vadd.xlane.f32.xlu0 %v2002
        %v2004 = vpop.xlane.xlu0 %2003
        %v2005 = vrot.slane %v2004, 4
        %v2006 = vadd.f32 %v2004, %v2005
        %v2007 = vrot.slane %v2006, 2
        %v2008 = vadd.f32 %v2006, %v2007
        %v2009 = vrot.slane %v2008, 1
        %v2010 = vadd.f32 %v2008, %v2009
        %s2011 = vtos %v2010
        %v2012 = vstv %s2011
        %v2013 = vrsqrt.pop %v2012
        %v2014 = vmul.f32 %v2013, %v2012
        %v2015 = vmul.f32 %v2014, %v2013
        %v2016 = vmul.f32 0.5, %v2015
        %v2017 = vsub.f32 1.5, %v2016
        %v2018 = vmul.f32 %v2013, %v2017
        %v2019 = vmul.f32 %v2012, %v2018
        %vm2020 = vcmp.eq.f32.partialorder %v2012, inf
        %v2021 = vsel %vm2020, %v2012, %v2019
        %vm2022 = vcmp.eq.f32.partialorder %v2012, 0.0
        %v2023 = vand.u32 %v2012, 2147483648
        %v2024 = vsel %vm2022, %v2023, %v2021
        %s2025 = vtos %v2024
        %s2026 = sadd.f32 %s2025, 1e-08
        %v2027 = vstv %s2026
        %v2028 = vrcp.pop %v2027
        %v2029 = vmul.f32 %v2027, %v2028
        %v2030 = vsub.f32 1.0, %v2029
        %v2031 = vmul.f32 %v2028, %v2030
        %v2032 = vadd.f32 %v2028, %v2031
        %vm2033 = vweird.f32 %v2027
        %vm2034 = vweird.f32 %v2028
        %vm2035 = vmor %vm2033, %vm2034
        %v2036 = vsel %vm2035, %v2028, %v2032
        %v2037 = vand.u32 2147483647, %v2027
        %vm2038 = vcmp.eq.f32.partialorder %v2037, 8.507059e+37
        %v2039 = vand.u32 %v2027, 2147483648
        %v2040 = vor.u32 1.1754944e-38, %v2039
        %v2041 = vsel %vm2038, %v2040, %v2036
        %s2042 = vtos %v2041
        %s2043 = smul.f32 %s2001, %s2042
      $region73: #{deq_forward.1} parent=67 // loop_footer
        _
      $region74: #{deq_forward.1} parent=67 // loop_footer_branch
        %469 = sbr.rel target = $region70
      $region75: #{deq_forward.1} parent=67 // loop_exit
        _
      %2044 = vrot.lane.b32.xlu0 %v471, 19
      %v2045 = vpop.permute.xlu0 %2044
      %2046 = vrot.lane.b32.xlu0 %v472, 19
      %v2047 = vpop.permute.xlu0 %2046
      %2048 = vrot.lane.b32.xlu0 %v473, 19
      %v2049 = vpop.permute.xlu0 %2048
      %v2050 = vlaneseq
      %v2051 = vand.u32 %v2050, 127
      %vm2052 = vcmp.lt.s32.totalorder %v2051, 19
      %v2053 = vsel %vm2052, %v2047, %v2049
      %v2054 = vsel %vm2052, %v2045, %v2047
      %v2055 = vsel %vm2052, %v2049, %v2045
      %2056 = vrot.lane.b32.xlu0 %v471, 18
      %v2057 = vpop.permute.xlu0 %2056
      %2058 = vrot.lane.b32.xlu0 %v472, 18
      %v2059 = vpop.permute.xlu0 %2058
      %2060 = vrot.lane.b32.xlu0 %v473, 18
      %v2061 = vpop.permute.xlu0 %2060
      %vm2062 = vcmp.lt.s32.totalorder %v2051, 18
      %v2063 = vsel %vm2062, %v2059, %v2061
      %v2064 = vsel %vm2062, %v2057, %v2059
      %v2065 = vsel %vm2062, %v2061, %v2057
      %2066 = vrot.lane.b32.xlu0 %v471, 17
      %v2067 = vpop.permute.xlu0 %2066
      %2068 = vrot.lane.b32.xlu0 %v472, 17
      %v2069 = vpop.permute.xlu0 %2068
      %2070 = vrot.lane.b32.xlu0 %v473, 17
      %v2071 = vpop.permute.xlu0 %2070
      %vm2072 = vcmp.lt.s32.totalorder %v2051, 17
      %v2073 = vsel %vm2072, %v2069, %v2071
      %v2074 = vsel %vm2072, %v2067, %v2069
      %v2075 = vsel %vm2072, %v2071, %v2067
      %2076 = vrot.lane.b32.xlu0 %v471, 1
      %v2077 = vpop.permute.xlu0 %2076
      %2078 = vrot.lane.b32.xlu0 %v472, 1
      %v2079 = vpop.permute.xlu0 %2078
      %2080 = vrot.lane.b32.xlu0 %v473, 1
      %v2081 = vpop.permute.xlu0 %2080
      %vm2082 = vcmp.lt.s32.totalorder %v2051, 1
      %v2083 = vsel %vm2082, %v2079, %v2081
      %v2084 = vsel %vm2082, %v2077, %v2079
      %v2085 = vsel %vm2082, %v2081, %v2077
      %2086 = vrot.lane.b32.xlu0 %v471, 127
      %v2087 = vpop.permute.xlu0 %2086
      %2088 = vrot.lane.b32.xlu0 %v472, 127
      %v2089 = vpop.permute.xlu0 %2088
      %2090 = vrot.lane.b32.xlu0 %v473, 127
      %v2091 = vpop.permute.xlu0 %2090
      %vm2092 = vcmp.lt.s32.totalorder %v2051, 127
      %v2093 = vsel %vm2092, %v2089, %v2091
      %v2094 = vsel %vm2092, %v2087, %v2089
      %v2095 = vsel %vm2092, %v2091, %v2087
      %2096 = vrot.lane.b32.xlu0 %v471, 111
      %v2097 = vpop.permute.xlu0 %2096
      %2098 = vrot.lane.b32.xlu0 %v472, 111
      %v2099 = vpop.permute.xlu0 %2098
      %2100 = vrot.lane.b32.xlu0 %v473, 111
      %v2101 = vpop.permute.xlu0 %2100
      %vm2102 = vcmp.lt.s32.totalorder %v2051, 111
      %v2103 = vsel %vm2102, %v2099, %v2101
      %v2104 = vsel %vm2102, %v2097, %v2099
      %v2105 = vsel %vm2102, %v2101, %v2097
      %2106 = vrot.lane.b32.xlu0 %v471, 110
      %v2107 = vpop.permute.xlu0 %2106
      %2108 = vrot.lane.b32.xlu0 %v472, 110
      %v2109 = vpop.permute.xlu0 %2108
      %2110 = vrot.lane.b32.xlu0 %v473, 110
      %v2111 = vpop.permute.xlu0 %2110
      %vm2112 = vcmp.lt.s32.totalorder %v2051, 110
      %v2113 = vsel %vm2112, %v2109, %v2111
      %v2114 = vsel %vm2112, %v2107, %v2109
      %v2115 = vsel %vm2112, %v2111, %v2107
      %2116 = vrot.lane.b32.xlu0 %v471, 109
      %v2117 = vpop.permute.xlu0 %2116
      %2118 = vrot.lane.b32.xlu0 %v472, 109
      %v2119 = vpop.permute.xlu0 %2118
      %2120 = vrot.lane.b32.xlu0 %v473, 109
      %v2121 = vpop.permute.xlu0 %2120
      %vm2122 = vcmp.lt.s32.totalorder %v2051, 109
      %v2123 = vsel %vm2122, %v2119, %v2121
      %v2124 = vsel %vm2122, %v2117, %v2119
      %v2125 = vsel %vm2122, %v2121, %v2117
      %vm2126 = vcmask 588800
      %v2128 = vsel %vm2126, %v454, 0
      %v2131 = vsel %vm2126, %v455, 0
      %2133 = vmatpush.msra.mxu0 0.0
      %2134 = vmatpush.msra.mxu0 0.0
      %2135 = vmatpush.msra.mxu0 0.0
      %2136 = vmatpush.msra.mxu0 0.0
      %2137 = vmatpush.msra.mxu0 0.0
      %2138 = vmatpush.msra.mxu0 0.0
      %2139 = vmatpush.msra.mxu0 0.0
      %2140 = vmatpush.msra.mxu0 %v2124
      %2141 = vmatpush.msra.mxu0 %v2114
      %2142 = vmatpush.msra.mxu0 %v2104
      %2143 = vmatpush.msra.mxu0 %v2094
      %2144 = vmatpush.msra.mxu0 %v471
      %2145 = vmatpush.msra.mxu0 %v2085
      %2146 = vmatpush.msra.mxu0 %v2075
      %2147 = vmatpush.msra.mxu0 %v2065
      %2148 = vmatpush.msra.mxu0 %v2055
      %2149 = vmatmul.f32.gmra.mxu0 %v2128
      %v2150 = vpop.f32.mrf.mxu0
      %v2151 = vadd.f32 0.0, %v2150
      %2152 = vmatmul.f32.gmra.mxu0 %v2131
      %v2153 = vpop.f32.mrf.mxu0
      %v2154 = vadd.f32 0.0, %v2153
      %2155 = vdwg.mxu0
      %2156 = vmatpush.msra.mxu0 0.0
      %2157 = vmatpush.msra.mxu0 0.0
      %2158 = vmatpush.msra.mxu0 0.0
      %2159 = vmatpush.msra.mxu0 0.0
      %2160 = vmatpush.msra.mxu0 0.0
      %2161 = vmatpush.msra.mxu0 0.0
      %2162 = vmatpush.msra.mxu0 0.0
      %2163 = vmatpush.msra.mxu0 %v2123
      %2164 = vmatpush.msra.mxu0 %v2113
      %2165 = vmatpush.msra.mxu0 %v2103
      %2166 = vmatpush.msra.mxu0 %v2093
      %2167 = vmatpush.msra.mxu0 %v472
      %2168 = vmatpush.msra.mxu0 %v2084
      %2169 = vmatpush.msra.mxu0 %v2074
      %2170 = vmatpush.msra.mxu0 %v2064
      %2171 = vmatpush.msra.mxu0 %v2054
      %2172 = vmatmul.f32.gmra.mxu0 %v2128
      %v2173 = vpop.f32.mrf.mxu0
      %v2174 = vadd.f32 0.0, %v2173
      %2175 = vmatmul.f32.gmra.mxu0 %v2131
      %v2176 = vpop.f32.mrf.mxu0
      %v2177 = vadd.f32 0.0, %v2176
      %2178 = vdwg.mxu0
      %2179 = vmatpush.msra.mxu0 0.0
      %2180 = vmatpush.msra.mxu0 0.0
      %2181 = vmatpush.msra.mxu0 0.0
      %2182 = vmatpush.msra.mxu0 0.0
      %2183 = vmatpush.msra.mxu0 0.0
      %2184 = vmatpush.msra.mxu0 0.0
      %2185 = vmatpush.msra.mxu0 0.0
      %2186 = vmatpush.msra.mxu0 %v2125
      %2187 = vmatpush.msra.mxu0 %v2115
      %2188 = vmatpush.msra.mxu0 %v2105
      %2189 = vmatpush.msra.mxu0 %v2095
      %2190 = vmatpush.msra.mxu0 %v473
      %2191 = vmatpush.msra.mxu0 %v2083
      %2192 = vmatpush.msra.mxu0 %v2073
      %2193 = vmatpush.msra.mxu0 %v2063
      %2194 = vmatpush.msra.mxu0 %v2053
      %2195 = vmatmul.f32.gmra.mxu0 %v2128
      %v2196 = vpop.f32.mrf.mxu0
      %v2197 = vadd.f32 0.0, %v2196
      %2198 = vmatmul.f32.gmra.mxu0 %v2131
      %v2199 = vpop.f32.mrf.mxu0
      %v2200 = vadd.f32 0.0, %v2199
      %2201 = vdwg.mxu0
      %v2202 = vmax.f32 %v2151, 0.0
      %v2203 = vmax.f32 %v2174, 0.0
      %v2204 = vmax.f32 %v2197, 0.0
      %v2205 = vmax.f32 %v2154, 0.0
      %v2206 = vmax.f32 %v2177, 0.0
      %v2207 = vmax.f32 %v2200, 0.0
      %v2209 = vperm.slane %v453, 0
      %v2210 = vperm.slane %v453, 1
      %v2211 = vperm.slane %v453, 2
      %v2215 = vmul.f32 %v2202, %v2209
      %v2216 = vmul.f32 %v2203, %v2210
      %v2217 = vmul.f32 %v2204, %v2211
      %v2218 = vmul.f32 %v2205, %v2209
      %v2219 = vmul.f32 %v2206, %v2210
      %v2220 = vmul.f32 %v2207, %v2211
      %v2221 = vmul.f32 %v2215, %v2202
      %v2222 = vmul.f32 %v2216, %v2203
      %v2223 = vmul.f32 %v2217, %v2204
      %v2224 = vmul.f32 %v2218, %v2205
      %v2225 = vmul.f32 %v2219, %v2206
      %v2226 = vmul.f32 %v2220, %v2207
      %v2227 = vadd.f32 %v2215, %v2216
      %v2228 = vadd.f32 %v2227, %v2217
      %2229 = vadd.xlane.f32.xlu0 %v2228
      %v2230 = vpop.xlane.xlu0 %2229
      %v2231 = vadd.f32 %v2218, %v2219
      %v2232 = vadd.f32 %v2231, %v2220
      %2233 = vadd.xlane.f32.xlu0 %v2232
      %v2234 = vpop.xlane.xlu0 %2233
      %v2235 = vadd.f32 %v2221, %v2222
      %v2236 = vadd.f32 %v2235, %v2223
      %2237 = vadd.xlane.f32.xlu0 %v2236
      %v2238 = vpop.xlane.xlu0 %2237
      %v2239 = vadd.f32 %v2224, %v2225
      %v2240 = vadd.f32 %v2239, %v2226
      %2241 = vadd.xlane.f32.xlu0 %v2240
      %v2242 = vpop.xlane.xlu0 %2241
      %vm2243 = vcmask 7168
      %v2244 = vsel %vm2243, %v2230, %v2238
      %v2245 = vsel %vm2243, %v2234, %v2242
      %vm2246 = vcmask 130048
      %v2248 = vsel %vm2246, %v466, 0
      %v2251 = vsel %vm2246, %v467, 0
      %2253 = vmatpush.msra.mxu0 0.0
      %2254 = vmatpush.msra.mxu0 0.0
      %2255 = vmatpush.msra.mxu0 0.0
      %2256 = vmatpush.msra.mxu0 0.0
      %2257 = vmatpush.msra.mxu0 0.0
      %2258 = vmatpush.msra.mxu0 0.0
      %2259 = vmatpush.msra.mxu0 0.0
      %2260 = vmatpush.msra.mxu0 0.0
      %2261 = vmatpush.msra.mxu0 0.0
      %2262 = vmatpush.msra.mxu0 0.0
      %2263 = vmatpush.msra.mxu0 0.0
      %2264 = vmatpush.msra.mxu0 0.0
      %2265 = vmatpush.msra.mxu0 0.0
      %2266 = vmatpush.msra.mxu0 0.0
      %2267 = vmatpush.msra.mxu0 %v2245
      %2268 = vmatpush.msra.mxu0 %v2244
      %2269 = vmatmul.f32.gmra.mxu0 %v2248
      %v2270 = vpop.f32.mrf.mxu0
      %v2271 = vadd.f32 0.0, %v2270
      %2272 = vmatmul.f32.gmra.mxu0 %v2251
      %v2273 = vpop.f32.mrf.mxu0
      %v2274 = vadd.f32 0.0, %v2273
      %2275 = vdwg.mxu0
      %v2276 = vmul.f32 %v2271, 0.0009765625
      %v2277 = vmul.f32 %v2274, 0.0009765625
      %v2278 = vmul.f32 %v2276, %v2276
      %v2279 = vmul.f32 %v2277, %v2277
      %2282 = vrot.lane.b32.xlu0 %v2278, 1
      %v2283 = vpop.permute.xlu0 %2282
      %2284 = vrot.lane.b32.xlu0 %v2279, 1
      %v2285 = vpop.permute.xlu0 %2284
      %v2288 = vsub.f32 %v2276, %v2283
      %v2289 = vsub.f32 %v2277, %v2285
      %v2290 = vmax.f32 %v2288, 0.0
      %v2291 = vmax.f32 %v2289, 0.0
      %v2292 = vadd.f32 %v2290, 1e-05
      %v2293 = vadd.f32 %v2291, 1e-05
      %v2294 = vrsqrt.pop %v2292
      %v2295 = vmul.f32 %v2294, %v2292
      %v2296 = vmul.f32 %v2295, %v2294
      %v2297 = vmul.f32 0.5, %v2296
      %v2298 = vsub.f32 1.5, %v2297
      %v2299 = vmul.f32 %v2294, %v2298
      %vm2300 = vweird.f32 %v2292
      %vm2301 = vweird.f32 %v2294
      %vm2302 = vmor %vm2300, %vm2301
      %v2303 = vsel %vm2302, %v2294, %v2299
      %v2304 = vrsqrt.pop %v2293
      %v2305 = vmul.f32 %v2304, %v2293
      %v2306 = vmul.f32 %v2305, %v2304
      %v2307 = vmul.f32 0.5, %v2306
      %v2308 = vsub.f32 1.5, %v2307
      %v2309 = vmul.f32 %v2304, %v2308
      %vm2310 = vweird.f32 %v2293
      %vm2311 = vweird.f32 %v2304
      %vm2312 = vmor %vm2310, %vm2311
      %v2313 = vsel %vm2312, %v2304, %v2309
      %2316 = vrot.lane.b32.xlu0 %v2303, 127
      %v2317 = vpop.permute.xlu0 %2316
      %2318 = vrot.lane.b32.xlu0 %v2313, 127
      %v2319 = vpop.permute.xlu0 %2318
      %v2322 = vmul.f32 %v458, %v2317
      %v2323 = vmul.f32 %v459, %v2319
      %v2324 = vmul.f32 %v2276, %v2322
      %v2325 = vmul.f32 %v2277, %v2323
      %v2326 = vsub.f32 %v460, %v2324
      %v2327 = vsub.f32 %v461, %v2325
      %2329 = vset.pattern.permute.xlu0 0
      %2330 = vperm.xlu0 %2329, %v2322
      %v2331 = vpop.permute.xlu0 %2330
      %2334 = vset.pattern.permute.xlu0 0
      %2335 = vperm.xlu0 %2334, %v2323
      %v2336 = vpop.permute.xlu0 %2335
      %v2338 = vmul.f32 %v2202, %v2331
      %v2339 = vmul.f32 %v2203, %v2331
      %v2340 = vmul.f32 %v2204, %v2331
      %v2341 = vmul.f32 %v2205, %v2336
      %v2342 = vmul.f32 %v2206, %v2336
      %v2343 = vmul.f32 %v2207, %v2336
      %2345 = vset.pattern.permute.xlu0 0
      %2346 = vperm.xlu0 %2345, %v2326
      %v2347 = vpop.permute.xlu0 %2346
      %2350 = vset.pattern.permute.xlu0 0
      %2351 = vperm.xlu0 %2350, %v2327
      %v2352 = vpop.permute.xlu0 %2351
      %v2354 = vadd.f32 %v2338, %v2347
      %v2355 = vadd.f32 %v2339, %v2347
      %v2356 = vadd.f32 %v2340, %v2347
      %v2357 = vadd.f32 %v2341, %v2352
      %v2358 = vadd.f32 %v2342, %v2352
      %v2359 = vadd.f32 %v2343, %v2352
      %v2360 = vmul.f32 %v2354, %v2209
      %v2361 = vmul.f32 %v2355, %v2210
      %v2362 = vmul.f32 %v2356, %v2211
      %v2363 = vmul.f32 %v2357, %v2209
      %v2364 = vmul.f32 %v2358, %v2210
      %v2365 = vmul.f32 %v2359, %v2211
      %2366 = vrot.lane.b32.xlu0 %v2360, 19
      %v2367 = vpop.permute.xlu0 %2366
      %2368 = vrot.lane.b32.xlu0 %v2363, 19
      %v2369 = vpop.permute.xlu0 %2368
      %2370 = vrot.lane.b32.xlu0 %v2361, 19
      %v2371 = vpop.permute.xlu0 %2370
      %2372 = vrot.lane.b32.xlu0 %v2364, 19
      %v2373 = vpop.permute.xlu0 %2372
      %2374 = vrot.lane.b32.xlu0 %v2362, 19
      %v2375 = vpop.permute.xlu0 %2374
      %2376 = vrot.lane.b32.xlu0 %v2365, 19
      %v2377 = vpop.permute.xlu0 %2376
      %v2378 = vsel %vm2052, %v2371, %v2375
      %v2379 = vsel %vm2052, %v2373, %v2377
      %v2380 = vsel %vm2052, %v2367, %v2371
      %v2381 = vsel %vm2052, %v2369, %v2373
      %v2382 = vsel %vm2052, %v2375, %v2367
      %v2383 = vsel %vm2052, %v2377, %v2369
      %2384 = vrot.lane.b32.xlu0 %v2360, 18
      %v2385 = vpop.permute.xlu0 %2384
      %2386 = vrot.lane.b32.xlu0 %v2363, 18
      %v2387 = vpop.permute.xlu0 %2386
      %2388 = vrot.lane.b32.xlu0 %v2361, 18
      %v2389 = vpop.permute.xlu0 %2388
      %2390 = vrot.lane.b32.xlu0 %v2364, 18
      %v2391 = vpop.permute.xlu0 %2390
      %2392 = vrot.lane.b32.xlu0 %v2362, 18
      %v2393 = vpop.permute.xlu0 %2392
      %2394 = vrot.lane.b32.xlu0 %v2365, 18
      %v2395 = vpop.permute.xlu0 %2394
      %v2396 = vsel %vm2062, %v2389, %v2393
      %v2397 = vsel %vm2062, %v2391, %v2395
      %v2398 = vsel %vm2062, %v2385, %v2389
      %v2399 = vsel %vm2062, %v2387, %v2391
      %v2400 = vsel %vm2062, %v2393, %v2385
      %v2401 = vsel %vm2062, %v2395, %v2387
      %2402 = vrot.lane.b32.xlu0 %v2360, 17
      %v2403 = vpop.permute.xlu0 %2402
      %2404 = vrot.lane.b32.xlu0 %v2363, 17
      %v2405 = vpop.permute.xlu0 %2404
      %2406 = vrot.lane.b32.xlu0 %v2361, 17
      %v2407 = vpop.permute.xlu0 %2406
      %2408 = vrot.lane.b32.xlu0 %v2364, 17
      %v2409 = vpop.permute.xlu0 %2408
      %2410 = vrot.lane.b32.xlu0 %v2362, 17
      %v2411 = vpop.permute.xlu0 %2410
      %2412 = vrot.lane.b32.xlu0 %v2365, 17
      %v2413 = vpop.permute.xlu0 %2412
      %v2414 = vsel %vm2072, %v2407, %v2411
      %v2415 = vsel %vm2072, %v2409, %v2413
      %v2416 = vsel %vm2072, %v2403, %v2407
      %v2417 = vsel %vm2072, %v2405, %v2409
      %v2418 = vsel %vm2072, %v2411, %v2403
      %v2419 = vsel %vm2072, %v2413, %v2405
      %2420 = vrot.lane.b32.xlu0 %v2360, 1
      %v2421 = vpop.permute.xlu0 %2420
      %2422 = vrot.lane.b32.xlu0 %v2363, 1
      %v2423 = vpop.permute.xlu0 %2422
      %2424 = vrot.lane.b32.xlu0 %v2361, 1
      %v2425 = vpop.permute.xlu0 %2424
      %2426 = vrot.lane.b32.xlu0 %v2364, 1
      %v2427 = vpop.permute.xlu0 %2426
      %2428 = vrot.lane.b32.xlu0 %v2362, 1
      %v2429 = vpop.permute.xlu0 %2428
      %2430 = vrot.lane.b32.xlu0 %v2365, 1
      %v2431 = vpop.permute.xlu0 %2430
      %v2432 = vsel %vm2082, %v2425, %v2429
      %v2433 = vsel %vm2082, %v2427, %v2431
      %v2434 = vsel %vm2082, %v2421, %v2425
      %v2435 = vsel %vm2082, %v2423, %v2427
      %v2436 = vsel %vm2082, %v2429, %v2421
      %v2437 = vsel %vm2082, %v2431, %v2423
      %2438 = vrot.lane.b32.xlu0 %v2360, 127
      %v2439 = vpop.permute.xlu0 %2438
      %2440 = vrot.lane.b32.xlu0 %v2363, 127
      %v2441 = vpop.permute.xlu0 %2440
      %2442 = vrot.lane.b32.xlu0 %v2361, 127
      %v2443 = vpop.permute.xlu0 %2442
      %2444 = vrot.lane.b32.xlu0 %v2364, 127
      %v2445 = vpop.permute.xlu0 %2444
      %2446 = vrot.lane.b32.xlu0 %v2362, 127
      %v2447 = vpop.permute.xlu0 %2446
      %2448 = vrot.lane.b32.xlu0 %v2365, 127
      %v2449 = vpop.permute.xlu0 %2448
      %v2450 = vsel %vm2092, %v2443, %v2447
      %v2451 = vsel %vm2092, %v2445, %v2449
      %v2452 = vsel %vm2092, %v2439, %v2443
      %v2453 = vsel %vm2092, %v2441, %v2445
      %v2454 = vsel %vm2092, %v2447, %v2439
      %v2455 = vsel %vm2092, %v2449, %v2441
      %2456 = vrot.lane.b32.xlu0 %v2360, 111
      %v2457 = vpop.permute.xlu0 %2456
      %2458 = vrot.lane.b32.xlu0 %v2363, 111
      %v2459 = vpop.permute.xlu0 %2458
      %2460 = vrot.lane.b32.xlu0 %v2361, 111
      %v2461 = vpop.permute.xlu0 %2460
      %2462 = vrot.lane.b32.xlu0 %v2364, 111
      %v2463 = vpop.permute.xlu0 %2462
      %2464 = vrot.lane.b32.xlu0 %v2362, 111
      %v2465 = vpop.permute.xlu0 %2464
      %2466 = vrot.lane.b32.xlu0 %v2365, 111
      %v2467 = vpop.permute.xlu0 %2466
      %v2468 = vsel %vm2102, %v2461, %v2465
      %v2469 = vsel %vm2102, %v2463, %v2467
      %v2470 = vsel %vm2102, %v2457, %v2461
      %v2471 = vsel %vm2102, %v2459, %v2463
      %v2472 = vsel %vm2102, %v2465, %v2457
      %v2473 = vsel %vm2102, %v2467, %v2459
      %2474 = vrot.lane.b32.xlu0 %v2360, 110
      %v2475 = vpop.permute.xlu0 %2474
      %2476 = vrot.lane.b32.xlu0 %v2363, 110
      %v2477 = vpop.permute.xlu0 %2476
      %2478 = vrot.lane.b32.xlu0 %v2361, 110
      %v2479 = vpop.permute.xlu0 %2478
      %2480 = vrot.lane.b32.xlu0 %v2364, 110
      %v2481 = vpop.permute.xlu0 %2480
      %2482 = vrot.lane.b32.xlu0 %v2362, 110
      %v2483 = vpop.permute.xlu0 %2482
      %2484 = vrot.lane.b32.xlu0 %v2365, 110
      %v2485 = vpop.permute.xlu0 %2484
      %v2486 = vsel %vm2112, %v2479, %v2483
      %v2487 = vsel %vm2112, %v2481, %v2485
      %v2488 = vsel %vm2112, %v2475, %v2479
      %v2489 = vsel %vm2112, %v2477, %v2481
      %v2490 = vsel %vm2112, %v2483, %v2475
      %v2491 = vsel %vm2112, %v2485, %v2477
      %2492 = vrot.lane.b32.xlu0 %v2360, 109
      %v2493 = vpop.permute.xlu0 %2492
      %2494 = vrot.lane.b32.xlu0 %v2363, 109
      %v2495 = vpop.permute.xlu0 %2494
      %2496 = vrot.lane.b32.xlu0 %v2361, 109
      %v2497 = vpop.permute.xlu0 %2496
      %2498 = vrot.lane.b32.xlu0 %v2364, 109
      %v2499 = vpop.permute.xlu0 %2498
      %2500 = vrot.lane.b32.xlu0 %v2362, 109
      %v2501 = vpop.permute.xlu0 %2500
      %2502 = vrot.lane.b32.xlu0 %v2365, 109
      %v2503 = vpop.permute.xlu0 %2502
      %v2504 = vsel %vm2122, %v2497, %v2501
      %v2505 = vsel %vm2122, %v2499, %v2503
      %v2506 = vsel %vm2122, %v2493, %v2497
      %v2507 = vsel %vm2122, %v2495, %v2499
      %v2508 = vsel %vm2122, %v2501, %v2493
      %v2509 = vsel %vm2122, %v2503, %v2495
      %v2511 = vsel %vm2246, %v457, 0
      %2513 = vmatpush.msra.mxu0 %v2489
      %2514 = vmatpush.msra.mxu0 %v2488
      %2515 = vmatpush.msra.mxu0 %v2471
      %2516 = vmatpush.msra.mxu0 %v2470
      %2517 = vmatpush.msra.mxu0 %v2453
      %2518 = vmatpush.msra.mxu0 %v2452
      %2519 = vmatpush.msra.mxu0 %v2363
      %2520 = vmatpush.msra.mxu0 %v2360
      %2521 = vmatpush.msra.mxu0 %v2437
      %2522 = vmatpush.msra.mxu0 %v2436
      %2523 = vmatpush.msra.mxu0 %v2419
      %2524 = vmatpush.msra.mxu0 %v2418
      %2525 = vmatpush.msra.mxu0 %v2401
      %2526 = vmatpush.msra.mxu0 %v2400
      %2527 = vmatpush.msra.mxu0 %v2383
      %2528 = vmatpush.msra.mxu0 %v2382
      %2529 = vmatmul.f32.gmra.mxu0 %v456
      %v2530 = vpop.f32.mrf.mxu0
      %v2531 = vadd.f32 0.0, %v2530
      %2532 = vdwg.mxu0
      %2533 = vmatpush.msra.mxu0 0.0
      %2534 = vmatpush.msra.mxu0 0.0
      %2535 = vmatpush.msra.mxu0 0.0
      %2536 = vmatpush.msra.mxu0 0.0
      %2537 = vmatpush.msra.mxu0 0.0
      %2538 = vmatpush.msra.mxu0 0.0
      %2539 = vmatpush.msra.mxu0 0.0
      %2540 = vmatpush.msra.mxu0 0.0
      %2541 = vmatpush.msra.mxu0 0.0
      %2542 = vmatpush.msra.mxu0 0.0
      %2543 = vmatpush.msra.mxu0 0.0
      %2544 = vmatpush.msra.mxu0 0.0
      %2545 = vmatpush.msra.mxu0 0.0
      %2546 = vmatpush.msra.mxu0 0.0
      %2547 = vmatpush.msra.mxu0 %v2507
      %2548 = vmatpush.msra.mxu0 %v2506
      %2549 = vmatmul.f32.gmra.mxu0 %v2511
      %v2550 = vpop.f32.mrf.mxu0
      %v2551 = vadd.f32 %v2531, %v2550
      %2552 = vdwg.mxu0
      %2553 = vmatpush.msra.mxu0 %v2487
      %2554 = vmatpush.msra.mxu0 %v2486
      %2555 = vmatpush.msra.mxu0 %v2469
      %2556 = vmatpush.msra.mxu0 %v2468
      %2557 = vmatpush.msra.mxu0 %v2451
      %2558 = vmatpush.msra.mxu0 %v2450
      %2559 = vmatpush.msra.mxu0 %v2364
      %2560 = vmatpush.msra.mxu0 %v2361
      %2561 = vmatpush.msra.mxu0 %v2435
      %2562 = vmatpush.msra.mxu0 %v2434
      %2563 = vmatpush.msra.mxu0 %v2417
      %2564 = vmatpush.msra.mxu0 %v2416
      %2565 = vmatpush.msra.mxu0 %v2399
      %2566 = vmatpush.msra.mxu0 %v2398
      %2567 = vmatpush.msra.mxu0 %v2381
      %2568 = vmatpush.msra.mxu0 %v2380
      %2569 = vmatmul.f32.gmra.mxu0 %v456
      %v2570 = vpop.f32.mrf.mxu0
      %v2571 = vadd.f32 0.0, %v2570
      %2572 = vdwg.mxu0
      %2573 = vmatpush.msra.mxu0 0.0
      %2574 = vmatpush.msra.mxu0 0.0
      %2575 = vmatpush.msra.mxu0 0.0
      %2576 = vmatpush.msra.mxu0 0.0
      %2577 = vmatpush.msra.mxu0 0.0
      %2578 = vmatpush.msra.mxu0 0.0
      %2579 = vmatpush.msra.mxu0 0.0
      %2580 = vmatpush.msra.mxu0 0.0
      %2581 = vmatpush.msra.mxu0 0.0
      %2582 = vmatpush.msra.mxu0 0.0
      %2583 = vmatpush.msra.mxu0 0.0
      %2584 = vmatpush.msra.mxu0 0.0
      %2585 = vmatpush.msra.mxu0 0.0
      %2586 = vmatpush.msra.mxu0 0.0
      %2587 = vmatpush.msra.mxu0 %v2505
      %2588 = vmatpush.msra.mxu0 %v2504
      %2589 = vmatmul.f32.gmra.mxu0 %v2511
      %v2590 = vpop.f32.mrf.mxu0
      %v2591 = vadd.f32 %v2571, %v2590
      %2592 = vdwg.mxu0
      %2593 = vmatpush.msra.mxu0 %v2491
      %2594 = vmatpush.msra.mxu0 %v2490
      %2595 = vmatpush.msra.mxu0 %v2473
      %2596 = vmatpush.msra.mxu0 %v2472
      %2597 = vmatpush.msra.mxu0 %v2455
      %2598 = vmatpush.msra.mxu0 %v2454
      %2599 = vmatpush.msra.mxu0 %v2365
      %2600 = vmatpush.msra.mxu0 %v2362
      %2601 = vmatpush.msra.mxu0 %v2433
      %2602 = vmatpush.msra.mxu0 %v2432
      %2603 = vmatpush.msra.mxu0 %v2415
      %2604 = vmatpush.msra.mxu0 %v2414
      %2605 = vmatpush.msra.mxu0 %v2397
      %2606 = vmatpush.msra.mxu0 %v2396
      %2607 = vmatpush.msra.mxu0 %v2379
      %2608 = vmatpush.msra.mxu0 %v2378
      %2609 = vmatmul.f32.gmra.mxu0 %v456
      %v2610 = vpop.f32.mrf.mxu0
      %v2611 = vadd.f32 0.0, %v2610
      %2612 = vdwg.mxu0
      %2613 = vmatpush.msra.mxu0 0.0
      %2614 = vmatpush.msra.mxu0 0.0
      %2615 = vmatpush.msra.mxu0 0.0
      %2616 = vmatpush.msra.mxu0 0.0
      %2617 = vmatpush.msra.mxu0 0.0
      %2618 = vmatpush.msra.mxu0 0.0
      %2619 = vmatpush.msra.mxu0 0.0
      %2620 = vmatpush.msra.mxu0 0.0
      %2621 = vmatpush.msra.mxu0 0.0
      %2622 = vmatpush.msra.mxu0 0.0
      %2623 = vmatpush.msra.mxu0 0.0
      %2624 = vmatpush.msra.mxu0 0.0
      %2625 = vmatpush.msra.mxu0 0.0
      %2626 = vmatpush.msra.mxu0 0.0
      %2627 = vmatpush.msra.mxu0 %v2509
      %2628 = vmatpush.msra.mxu0 %v2508
      %2629 = vmatmul.f32.gmra.mxu0 %v2511
      %v2630 = vpop.f32.mrf.mxu0
      %v2631 = vadd.f32 %v2611, %v2630
      %2632 = vdwg.mxu0
      %v2633 = vadd.f32 %v450, %v2551
      %v2634 = vadd.f32 %v451, %v2591
      %v2635 = vadd.f32 %v452, %v2631
      %v2636 = vmul.f32 %v2633, %v2209
      %v2637 = vmul.f32 %v2634, %v2210
      %v2638 = vmul.f32 %v2635, %v2211
      %v2639 = vmul.f32 %v2636, %v2633
      %v2640 = vmul.f32 %v2637, %v2634
      %v2641 = vmul.f32 %v2638, %v2635
      %v2642 = vadd.f32 %v2636, %v2637
      %v2643 = vadd.f32 %v2642, %v2638
      %2644 = vadd.xlane.f32.xlu0 %v2643
      %v2645 = vpop.xlane.xlu0 %2644
      %v2646 = vadd.f32 %v2639, %v2640
      %v2647 = vadd.f32 %v2646, %v2641
      %2648 = vadd.xlane.f32.xlu0 %v2647
      %v2649 = vpop.xlane.xlu0 %2648
      %v2650 = vsel %vm2243, %v2645, %v2649
      %vm2651 = vcmask 64512
      %v2653 = vsel %vm2651, %v468, 0
      %2655 = vmatpush.msra.mxu0 0.0
      %2656 = vmatpush.msra.mxu0 0.0
      %2657 = vmatpush.msra.mxu0 0.0
      %2658 = vmatpush.msra.mxu0 0.0
      %2659 = vmatpush.msra.mxu0 0.0
      %2660 = vmatpush.msra.mxu0 0.0
      %2661 = vmatpush.msra.mxu0 0.0
      %2662 = vmatpush.msra.mxu0 0.0
      %2663 = vmatpush.msra.mxu0 0.0
      %2664 = vmatpush.msra.mxu0 0.0
      %2665 = vmatpush.msra.mxu0 0.0
      %2666 = vmatpush.msra.mxu0 0.0
      %2667 = vmatpush.msra.mxu0 0.0
      %2668 = vmatpush.msra.mxu0 0.0
      %2669 = vmatpush.msra.mxu0 0.0
      %2670 = vmatpush.msra.mxu0 %v2650
      %2671 = vmatmul.f32.gmra.mxu0 %v2653
      %v2672 = vpop.f32.mrf.mxu0
      %v2673 = vadd.f32 0.0, %v2672
      %2674 = vdwg.mxu0
      %v2675 = vmul.f32 %v2673, 0.001953125
      %v2676 = vmul.f32 %v2675, %v2675
      %2678 = vrot.lane.b32.xlu0 %v2676, 1
      %v2679 = vpop.permute.xlu0 %2678
      %v2681 = vsub.f32 %v2675, %v2679
      %v2682 = vmax.f32 %v2681, 0.0
      %v2683 = vadd.f32 %v2682, 1e-05
      %v2684 = vrsqrt.pop %v2683
      %v2685 = vmul.f32 %v2684, %v2683
      %v2686 = vmul.f32 %v2685, %v2684
      %v2687 = vmul.f32 0.5, %v2686
      %v2688 = vsub.f32 1.5, %v2687
      %v2689 = vmul.f32 %v2684, %v2688
      %vm2690 = vweird.f32 %v2683
      %vm2691 = vweird.f32 %v2684
      %vm2692 = vmor %vm2690, %vm2691
      %v2693 = vsel %vm2692, %v2684, %v2689
      %2695 = vrot.lane.b32.xlu0 %v2693, 127
      %v2696 = vpop.permute.xlu0 %2695
      %v2698 = vmul.f32 %v462, %v2696
      %v2699 = vmul.f32 %v2675, %v2698
      %v2700 = vsub.f32 %v463, %v2699
      %2702 = vset.pattern.permute.xlu0 0
      %2703 = vperm.xlu0 %2702, %v2698
      %v2704 = vpop.permute.xlu0 %2703
      %v2706 = vmul.f32 %v2633, %v2704
      %v2707 = vmul.f32 %v2634, %v2704
      %v2708 = vmul.f32 %v2635, %v2704
      %2710 = vset.pattern.permute.xlu0 0
      %2711 = vperm.xlu0 %2710, %v2700
      %v2712 = vpop.permute.xlu0 %2711
      %v2714 = vadd.f32 %v2706, %v2712
      %v2715 = vadd.f32 %v2707, %v2712
      %v2716 = vadd.f32 %v2708, %v2712
      %v2717 = vadd.f32 %v471, %v2714
      %v2718 = vadd.f32 %v472, %v2715
      %v2719 = vadd.f32 %v473, %v2716
      %v2720 = vmax.f32 %v2717, 0.0
      %v2721 = vmax.f32 %v2718, 0.0
      %v2722 = vmax.f32 %v2719, 0.0
      %v2723 = vmul.f32 %v2720, %v2209
      %v2724 = vmul.f32 %v2721, %v2210
      %v2725 = vmul.f32 %v2722, %v2211
      %v2726 = vmul.f32 %v2723, %v2720
      %v2727 = vmul.f32 %v2724, %v2721
      %v2728 = vmul.f32 %v2725, %v2722
      %v2729 = vadd.f32 %v2723, %v2724
      %v2730 = vadd.f32 %v2729, %v2725
      %2731 = vadd.xlane.f32.xlu0 %v2730
      %v2732 = vpop.xlane.xlu0 %2731
      %v2733 = vadd.f32 %v2726, %v2727
      %v2734 = vadd.f32 %v2733, %v2728
      %2735 = vadd.xlane.f32.xlu0 %v2734
      %v2736 = vpop.xlane.xlu0 %2735
      %v2737 = vsel %vm2243, %v2732, %v2736
      %2738 = vmatpush.msra.mxu0 0.0
      %2739 = vmatpush.msra.mxu0 0.0
      %2740 = vmatpush.msra.mxu0 0.0
      %2741 = vmatpush.msra.mxu0 0.0
      %2742 = vmatpush.msra.mxu0 0.0
      %2743 = vmatpush.msra.mxu0 0.0
      %2744 = vmatpush.msra.mxu0 0.0
      %2745 = vmatpush.msra.mxu0 0.0
      %2746 = vmatpush.msra.mxu0 0.0
      %2747 = vmatpush.msra.mxu0 0.0
      %2748 = vmatpush.msra.mxu0 0.0
      %2749 = vmatpush.msra.mxu0 0.0
      %2750 = vmatpush.msra.mxu0 0.0
      %2751 = vmatpush.msra.mxu0 0.0
      %2752 = vmatpush.msra.mxu0 0.0
      %2753 = vmatpush.msra.mxu0 %v2737
      %2754 = vmatmul.f32.gmra.mxu0 %v2653
      %v2755 = vpop.f32.mrf.mxu0
      %v2756 = vadd.f32 0.0, %v2755
      %2757 = vdwg.mxu0
      %v2758 = vmul.f32 %v2756, 0.001953125
      %v2759 = vmul.f32 %v2758, %v2758
      %2761 = vrot.lane.b32.xlu0 %v2759, 1
      %v2762 = vpop.permute.xlu0 %2761
      %v2764 = vsub.f32 %v2758, %v2762
      %v2765 = vmax.f32 %v2764, 0.0
      %v2766 = vadd.f32 %v2765, 1e-05
      %v2767 = vrsqrt.pop %v2766
      %v2768 = vmul.f32 %v2767, %v2766
      %v2769 = vmul.f32 %v2768, %v2767
      %v2770 = vmul.f32 0.5, %v2769
      %v2771 = vsub.f32 1.5, %v2770
      %v2772 = vmul.f32 %v2767, %v2771
      %vm2773 = vweird.f32 %v2766
      %vm2774 = vweird.f32 %v2767
      %vm2775 = vmor %vm2773, %vm2774
      %v2776 = vsel %vm2775, %v2767, %v2772
      %2778 = vrot.lane.b32.xlu0 %v2776, 127
      %v2779 = vpop.permute.xlu0 %2778
      %v2781 = vmul.f32 %v464, %v2779
      %v2782 = vmul.f32 %v2758, %v2781
      %v2783 = vsub.f32 %v465, %v2782
      %2785 = vset.pattern.permute.xlu0 0
      %2786 = vperm.xlu0 %2785, %v2781
      %v2787 = vpop.permute.xlu0 %2786
      %v2789 = vmul.f32 %v2720, %v2787
      %v2790 = vmul.f32 %v2721, %v2787
      %v2791 = vmul.f32 %v2722, %v2787
      %2793 = vset.pattern.permute.xlu0 0
      %2794 = vperm.xlu0 %2793, %v2783
      %v2795 = vpop.permute.xlu0 %2794
      %v2797 = vadd.f32 %v2789, %v2795
      %v2798 = vadd.f32 %v2790, %v2795
      %v2799 = vadd.f32 %v2791, %v2795
      %v2800 = vmul.f32 %v2797, %v2209
      %v2801 = vmul.f32 %v2798, %v2210
      %v2802 = vmul.f32 %v2799, %v2211
      %2803 = vst [vmem:[%s446] sm:$0xff] %v2800
      %2804 = vst [vmem:[%s446 + $0x8] sm:$0xff] %v2801
      %2805 = vst [vmem:[%s446 + $0x10] sm:$0xff] %v2802
      %v2806 = vstv %s474
      %2807 = vst [vmem:[%s449] sm:$0x1] %v2806
      %p2808 = scmp.lt.s32.totalorder %s25, 1
      %s2809 = scalar_select %p2808, %s25, 1
      %s2810 = smul.addr %s2809, 3
      %s2811 = smul.addr %s2810, 8
      %s2812 = scalar_lea.vmem %s12, %s2811
      %p2813 = scmp.lt.s32.totalorder %s25, 1
      %s2814 = scalar_select %p2813, %s25, 1
      %s2815 = scalar_lea.vmem %s13, %s2814
      // Predicated region
      $region76: #{deq_forward.1} parent=67 // pred_check
        %p2816 = pneg %p300
      $region77: #{deq_forward.1} parent=67 // pred_check_branch
        %2818 = sbr.rel (%p2816) target = $region79
      $region78: #{deq_forward.1} parent=67 // pred_region
        _
      $region79: #{deq_forward.1} parent=67 // pred_fallthru
        _
      // Predicated region
      $region80: #{deq_forward.1} parent=67 // pred_check
        %p2819 = pneg %p326
      $region81: #{deq_forward.1} parent=67 // pred_check_branch
        %2821 = sbr.rel (%p2819) target = $region83
      $region82: #{deq_forward.1} parent=67 // pred_region
        _
      $region83: #{deq_forward.1} parent=67 // pred_fallthru
        _
    $region68: #{deq_forward.1} parent=5 // pred_fallthru
      _
    %p2822 = scmp.le.s32.totalorder 2, %s20
    // Predicated region
    $region84: #{deq_forward.1} parent=5 // pred_check
      %p2823 = pneg %p2822
    $region85: #{deq_forward.1} parent=5 // pred_check_branch
      %2825 = sbr.rel (%p2823) target = $region87
    $region86: #{deq_forward.1} parent=5 // pred_region
      %s2826 = ssub.s32 %s20, 2
      // Predicated region
      $region88: #{deq_forward.1} parent=86 // pred_check
        %p2827 = pneg %p306
      $region89: #{deq_forward.1} parent=86 // pred_check_branch
        %2829 = sbr.rel (%p2827) target = $region91
      $region90: #{deq_forward.1} parent=86 // pred_region
        %p2830 = scmp.lt.s32.totalorder %s26, 1
        %s2831 = scalar_select %p2830, %s26, 1
        %s2832 = smul.addr %s2831, 3
        %s2833 = smul.addr %s2832, 8
        %s2834 = scalar_lea.vmem %s12, %s2833
      $region91: #{deq_forward.1} parent=86 // pred_fallthru
        _
      // Predicated region
      $region92: #{deq_forward.1} parent=86 // pred_check
        %p2835 = pneg %p332
      $region93: #{deq_forward.1} parent=86 // pred_check_branch
        %2837 = sbr.rel (%p2835) target = $region95
      $region94: #{deq_forward.1} parent=86 // pred_region
        %p2838 = scmp.lt.s32.totalorder %s26, 1
        %s2839 = scalar_select %p2838, %s26, 1
        %s2840 = scalar_lea.vmem %s13, %s2839
      $region95: #{deq_forward.1} parent=86 // pred_fallthru
        _
    $region87: #{deq_forward.1} parent=5 // pred_fallthru
      _
  $region6: #{deq_forward.1} parent=0 // loop_footer
    %s24 = sadd.s32 1, %s20
  $region7: #{deq_forward.1} parent=0 // loop_footer_branch
    %19 = sbr.rel target = $region3
  $region8: #{deq_forward.1} parent=0 // loop_exit
    _

</llo_original>
